<compile_context>
chip_gen: v7x
topology: tpu7x:2x2x1
jax: 0.10.0
libtpu: 0.0.40
codegen_flags: <defaults>
</compile_context>

<pallas_src>
import jax
import jax.numpy as jnp
from jax.experimental import pallas as pl
from jax.experimental.pallas import tpu as pltpu


# ----------------------------- Pallas kernels ------------------------------

def _gemm_lrelu_kernel(a_ref, b_ref, o_ref):
    """o = leaky_relu(a @ b, 0.2); bf16 in, f32 accumulate, bf16 out."""
    acc = jnp.dot(a_ref[...], b_ref[...], preferred_element_type=jnp.float32)
    y = jnp.where(acc >= 0, acc, 0.2 * acc)
    o_ref[...] = y.astype(o_ref.dtype)


def _gemm_stats_kernel(a_ref, b_ref, o_ref, s_ref):
    """o = a @ b (bf16 out); also emit per-tile BN partials (sum, sum_sq)."""
    acc = jnp.dot(a_ref[...], b_ref[...], preferred_element_type=jnp.float32)
    y = acc.astype(o_ref.dtype)
    o_ref[...] = y
    yf = y.astype(jnp.float32)
    s_ref[0:1, :] = jnp.sum(yf, axis=0, keepdims=True)
    s_ref[1:2, :] = jnp.sum(yf * yf, axis=0, keepdims=True)


def _bn_norm_lrelu_kernel(x_ref, scale_ref, shift_ref, o_ref):
    """o = leaky_relu(x * scale + shift, 0.2) with precomputed scale/shift."""
    x = x_ref[...].astype(jnp.float32)
    y = x * scale_ref[...] + shift_ref[...]
    o_ref[...] = jnp.where(y >= 0, y, 0.2 * y).astype(o_ref.dtype)


def _dot_sigmoid_kernel(x_ref, w_ref, o_ref):
    """o = sigmoid(sum(x * w, -1)) — VPU mul + lane reduce (lane-1 MXU avoided)."""
    x = x_ref[...].astype(jnp.float32)            # (TILE_M, K)
    w = w_ref[...].astype(jnp.float32)            # (1, K)
    s = jnp.sum(x * w, axis=-1, keepdims=True)    # (TILE_M, 1)
    o_ref[...] = jax.nn.sigmoid(s)


# ----------------------------- Pallas wrappers -----------------------------

_PARALLEL = pltpu.CompilerParams(dimension_semantics=("parallel",))


def _round_up(x, mult):
    return ((x + mult - 1) // mult) * mult


def _choose_tile(m, target):
    """Tile over M: full (padded) extent if small, otherwise `target` rows."""
    if m <= target:
        return _round_up(m, 8)
    return target


def _pad_rows(x, tile):
    m = x.shape[0]
    mp = _round_up(m, tile)
    if mp != m:
        x = jnp.pad(x, ((0, mp - m), (0, 0)))
    return x


def _gemm_lrelu(a, b, tile_m):
    m, k = a.shape
    _, n = b.shape
    return pl.pallas_call(
        _gemm_lrelu_kernel,
        out_shape=jax.ShapeDtypeStruct((m, n), jnp.bfloat16),
        grid=(m // tile_m,),
        in_specs=[pl.BlockSpec((tile_m, k), lambda i: (i, 0)),
                  pl.BlockSpec((k, n), lambda i: (0, 0))],      # weight resident
        out_specs=pl.BlockSpec((tile_m, n), lambda i: (i, 0)),
        compiler_params=_PARALLEL,
    )(a, b)


def _gemm_stats(a, b, tile_m):
    m, k = a.shape
    _, n = b.shape
    nt = m // tile_m
    return pl.pallas_call(
        _gemm_stats_kernel,
        out_shape=(jax.ShapeDtypeStruct((m, n), jnp.bfloat16),
                   jax.ShapeDtypeStruct((nt, 2, n), jnp.float32)),
        grid=(nt,),
        in_specs=[pl.BlockSpec((tile_m, k), lambda i: (i, 0)),
                  pl.BlockSpec((k, n), lambda i: (0, 0))],      # weight resident
        out_specs=(pl.BlockSpec((tile_m, n), lambda i: (i, 0)),
                   pl.BlockSpec((None, 2, n), lambda i: (i, 0, 0))),
        compiler_params=_PARALLEL,
    )(a, b)


def _bn_lrelu(x, scale, shift, tile_m):
    m, c = x.shape
    return pl.pallas_call(
        _bn_norm_lrelu_kernel,
        out_shape=jax.ShapeDtypeStruct((m, c), jnp.bfloat16),
        grid=(m // tile_m,),
        in_specs=[pl.BlockSpec((tile_m, c), lambda i: (i, 0)),
                  pl.BlockSpec((1, c), lambda i: (0, 0)),
                  pl.BlockSpec((1, c), lambda i: (0, 0))],
        out_specs=pl.BlockSpec((tile_m, c), lambda i: (i, 0)),
        compiler_params=_PARALLEL,
    )(x, scale, shift)


def _dot_sigmoid(x, w, tile_m):
    m, k = x.shape
    return pl.pallas_call(
        _dot_sigmoid_kernel,
        out_shape=jax.ShapeDtypeStruct((m, 1), jnp.float32),
        grid=(m // tile_m,),
        in_specs=[pl.BlockSpec((tile_m, k), lambda i: (i, 0)),
                  pl.BlockSpec((1, k), lambda i: (0, 0))],
        out_specs=pl.BlockSpec((tile_m, 1), lambda i: (i, 0)),
        compiler_params=_PARALLEL,
    )(x, w)


# ------------------------------ JAX-side glue -------------------------------

def _im2col(x_nhwc, k, stride, pad):
    """Extract conv patches -> ((N*Ho*Wo, k*k*C), Ho, Wo).

    Patch feature ordering is (ki, kj, c_in); conv weights are reshaped to
    the matching ordering in _conv_weight_to_gemm.
    """
    n, h, w, c = x_nhwc.shape
    xp = jnp.pad(x_nhwc, ((0, 0), (pad, pad), (pad, pad), (0, 0)))
    ho = (h + 2 * pad - k) // stride + 1
    wo = (w + 2 * pad - k) // stride + 1
    patches = []
    for i in range(k):
        for j in range(k):
            patches.append(
                xp[:, i:i + (ho - 1) * stride + 1:stride,
                      j:j + (wo - 1) * stride + 1:stride, :])
    p = jnp.stack(patches, axis=3)            # (N, Ho, Wo, k*k, C)
    return p.reshape(n * ho * wo, k * k * c), ho, wo


def _conv_weight_to_gemm(w_oihw):
    """(Cout, Cin, K, K) -> (K*K*Cin, Cout), matching _im2col ordering."""
    cout, cin, k, _ = w_oihw.shape
    return jnp.transpose(w_oihw, (2, 3, 1, 0)).reshape(k * k * cin, cout)


def _bn_scale_shift(partial, gamma, beta, m_true):
    """Reduce per-tile (sum, sum_sq) partials into BN scale/shift (f32)."""
    s = jnp.sum(partial, axis=0)                      # (2, C)
    mean = s[0] / m_true
    var = jnp.maximum(s[1] / m_true - mean * mean, 0.0)   # biased variance
    inv = jax.lax.rsqrt(var + 1e-5)
    scale = gamma.reshape(-1) * inv
    shift = beta.reshape(-1) - mean * scale
    return (scale.reshape(1, -1).astype(jnp.float32),
            shift.reshape(1, -1).astype(jnp.float32))


def init_params(key):
    """Deterministic parameter init (shapes from Discriminator.__init__)."""
    keys = jax.random.split(key, 4)
    std = 0.02
    return {
        "w1": jax.random.normal(keys[0], (64, 1, 4, 4), jnp.float32) * std,
        "w2": jax.random.normal(keys[1], (128, 64, 4, 4), jnp.float32) * std,
        "w3": jax.random.normal(keys[2], (256, 128, 4, 4), jnp.float32) * std,
        "w4": jax.random.normal(keys[3], (1, 256, 4, 4), jnp.float32) * std,
        # BatchNorm2d defaults: weight = 1, bias = 0
        "g2": jnp.ones((1, 128), jnp.float32),
        "b2": jnp.zeros((1, 128), jnp.float32),
        "g3": jnp.ones((1, 256), jnp.float32),
        "b3": jnp.zeros((1, 256), jnp.float32),
    }


@jax.jit
def discriminator_forward(x_nchw, params):
    # layout: input is NCHW (PyTorch); transpose to NHWC, compute in bf16.
    x = jnp.transpose(x_nchw, (0, 2, 3, 1)).astype(jnp.bfloat16)  # (N,32,32,1)
    n = x.shape[0]

    # ---- layer 1: Conv(1->64, k4 s2 p1) + LeakyReLU(0.2)  (fused epilogue)
    p, ho, wo = _im2col(x, 4, 2, 1)                       # (N*16*16, 16)
    w = _conv_weight_to_gemm(params["w1"]).astype(jnp.bfloat16)
    m = p.shape[0]
    tile = _choose_tile(m, 1024)                          # tiny K -> big M tile
    h = _gemm_lrelu(_pad_rows(p, tile), w, tile)[:m]
    x = h.reshape(n, ho, wo, 64)

    # ---- layer 2: Conv(64->128) + BN(128) + LeakyReLU(0.2)
    p, ho, wo = _im2col(x, 4, 2, 1)                       # (N*8*8, 1024)
    w = _conv_weight_to_gemm(params["w2"]).astype(jnp.bfloat16)
    m = p.shape[0]
    tile = _choose_tile(m, 512)
    h, part = _gemm_stats(_pad_rows(p, tile), w, tile)    # BN stats fused in GEMM
    scale, shift = _bn_scale_shift(part, params["g2"], params["b2"], m)
    h = _bn_lrelu(h, scale, shift, tile)[:m]
    x = h.reshape(n, ho, wo, 128)

    # ---- layer 3: Conv(128->256) + BN(256) + LeakyReLU(0.2)
    p, ho, wo = _im2col(x, 4, 2, 1)                       # (N*4*4, 2048)
    w = _conv_weight_to_gemm(params["w3"]).astype(jnp.bfloat16)
    m = p.shape[0]
    tile = _choose_tile(m, 512)
    h, part = _gemm_stats(_pad_rows(p, tile), w, tile)
    scale, shift = _bn_scale_shift(part, params["g3"], params["b3"], m)
    h = _bn_lrelu(h, scale, shift, tile)[:m]
    x = h.reshape(n, ho, wo, 256)

    # ---- layer 4: Conv(256->1, k4 s1 p0) + Sigmoid  (VPU dot, lane-1 MXU avoided)
    p, _, _ = _im2col(x, 4, 1, 0)                         # (N, 4096)
    w = _conv_weight_to_gemm(params["w4"]).astype(jnp.bfloat16).T  # (1, 4096)
    m = p.shape[0]
    tile = _choose_tile(m, 512)
    out = _dot_sigmoid(_pad_rows(p, tile), w, tile)[:m]   # (N, 1) f32

    # TODO(synk): BatchNorm running_mean/running_var are not tracked, so
    # eval-mode parity with PyTorch is not provided (training-mode forward only).
    return out.reshape(-1, 1)                             # .view(-1, 1)


if __name__ == "__main__":
    key = jax.random.PRNGKey(0)
    k_in, k_par = jax.random.split(key)

    # DCGAN-MNIST discriminator expects 32x32 single-channel images (NCHW).
    x = jax.random.normal(k_in, (2, 1, 32, 32), jnp.float32)
    params = init_params(k_par)

    y = discriminator_forward(x, params)
    y = jax.block_until_ready(y)

    assert y.shape == (2, 1), y.shape
    assert bool(jnp.all(jnp.isfinite(y)))
    assert bool(jnp.all((y >= 0.0) & (y <= 1.0)))
    print("KERNEL_OK")
</pallas_src>

<mosaic_0001>
module attributes {stable_mosaic.version = 11 : i64} {
  func.func @_gemm_lrelu_kernel(%arg0: i32, %arg1: memref<512x16xbf16, #tpu.memory_space<vmem>>, %arg2: memref<16x64xbf16, #tpu.memory_space<vmem>>, %arg3: memref<512x64xbf16, #tpu.memory_space<vmem>>) attributes {dimension_semantics = [#tpu.dimension_semantics<parallel>], iteration_bounds = array<i64: 1>, scalar_prefetch = 0 : i64, scratch_operands = 0 : i64, tpu.core_type = #tpu.core_type<tc>, window_params = [{transform_indices = @transform_0, window_bounds = array<i64: 512, 16>}, {pipeline_mode = #tpu.pipeline_mode<synchronous>, transform_indices = @transform_1, window_bounds = array<i64: 16, 64>}, {transform_indices = @transform_2, window_bounds = array<i64: 512, 64>}]} {
    %c0 = arith.constant 0 : index
    %c0_0 = arith.constant 0 : index
    %0 = vector.load %arg1[%c0, %c0_0] : memref<512x16xbf16, #tpu.memory_space<vmem>>, vector<512x16xbf16>
    %c0_1 = arith.constant 0 : index
    %c0_2 = arith.constant 0 : index
    %1 = vector.load %arg2[%c0_1, %c0_2] : memref<16x64xbf16, #tpu.memory_space<vmem>>, vector<16x64xbf16>
    %cst = arith.constant dense<0.000000e+00> : vector<512x64xf32>
    %2 = tpu.matmul %0, %1, %cst {dimension_numbers = #tpu.dot_dimension_numbers<[1], [0], [0], [1], [0, 0, 1, 1], [], []>} : vector<512x16xbf16>, vector<16x64xbf16>, vector<512x64xf32> -> vector<512x64xf32>
    %cst_3 = arith.constant 0.000000e+00 : f32
    %3 = vector.broadcast %cst_3 : f32 to vector<512x64xf32>
    %4 = arith.cmpf oge, %2, %3 : vector<512x64xf32>
    %cst_4 = arith.constant 2.000000e-01 : f32
    %5 = vector.broadcast %cst_4 : f32 to vector<512x64xf32>
    %6 = arith.mulf %5, %2 : vector<512x64xf32>
    %7 = arith.select %4, %2, %6 : vector<512x64xi1>, vector<512x64xf32>
    %8 = arith.truncf %7 : vector<512x64xf32> to vector<512x64xbf16>
    %c0_5 = arith.constant 0 : index
    %c0_6 = arith.constant 0 : index
    %9 = vector.load %arg3[%c0_5, %c0_6] : memref<512x64xbf16, #tpu.memory_space<vmem>>, vector<512x64xbf16>
    tpu.vector_store %arg3[%c0_5, %c0_6], %8 {strides = array<i32>} : memref<512x64xbf16, #tpu.memory_space<vmem>>, vector<512x64xbf16>,
    return
  }
  func.func @transform_0(%arg0: i32) -> (i32, i32) {
    %c0_i32 = arith.constant 0 : i32
    %c0_i32_0 = arith.constant 0 : i32
    return %arg0, %c0_i32 : i32, i32
  }
  func.func @transform_1(%arg0: i32) -> (i32, i32) {
    %c0_i32 = arith.constant 0 : i32
    %c0_i32_0 = arith.constant 0 : i32
    %c0_i32_1 = arith.constant 0 : i32
    return %c0_i32, %c0_i32_0 : i32, i32
  }
  func.func @transform_2(%arg0: i32) -> (i32, i32) {
    %c0_i32 = arith.constant 0 : i32
    %c0_i32_0 = arith.constant 0 : i32
    return %arg0, %c0_i32 : i32, i32
  }
}

module attributes {stable_mosaic.version = 11 : i64} {
  func.func @_gemm_stats_kernel(%arg0: i32, %arg1: memref<128x1024xbf16, #tpu.memory_space<vmem>>, %arg2: memref<1024x128xbf16, #tpu.memory_space<vmem>>, %arg3: memref<128x128xbf16, #tpu.memory_space<vmem>>, %arg4: memref<1x2x128xf32, #tpu.memory_space<vmem>>) attributes {dimension_semantics = [#tpu.dimension_semantics<parallel>], iteration_bounds = array<i64: 1>, scalar_prefetch = 0 : i64, scratch_operands = 0 : i64, tpu.core_type = #tpu.core_type<tc>, window_params = [{transform_indices = @transform_0, window_bounds = array<i64: 128, 1024>}, {pipeline_mode = #tpu.pipeline_mode<synchronous>, transform_indices = @transform_1, window_bounds = array<i64: 1024, 128>}, {transform_indices = @transform_2, window_bounds = array<i64: 128, 128>}, {transform_indices = @transform_3, window_bounds = array<i64: 1, 2, 128>}]} {
    %c0 = arith.constant 0 : index
    %c0_0 = arith.constant 0 : index
    %0 = vector.load %arg1[%c0, %c0_0] : memref<128x1024xbf16, #tpu.memory_space<vmem>>, vector<128x1024xbf16>
    %c0_1 = arith.constant 0 : index
    %c0_2 = arith.constant 0 : index
    %1 = vector.load %arg2[%c0_1, %c0_2] : memref<1024x128xbf16, #tpu.memory_space<vmem>>, vector<1024x128xbf16>
    %cst = arith.constant dense<0.000000e+00> : vector<128x128xf32>
    %2 = tpu.matmul %0, %1, %cst {dimension_numbers = #tpu.dot_dimension_numbers<[1], [0], [0], [1], [0, 0, 1, 1], [], []>} : vector<128x1024xbf16>, vector<1024x128xbf16>, vector<128x128xf32> -> vector<128x128xf32>
    %3 = arith.truncf %2 : vector<128x128xf32> to vector<128x128xbf16>
    %c0_3 = arith.constant 0 : index
    %c0_4 = arith.constant 0 : index
    %4 = vector.load %arg3[%c0_3, %c0_4] : memref<128x128xbf16, #tpu.memory_space<vmem>>, vector<128x128xbf16>
    tpu.vector_store %arg3[%c0_3, %c0_4], %3 {strides = array<i32>} : memref<128x128xbf16, #tpu.memory_space<vmem>>, vector<128x128xbf16>,
    %5 = arith.extf %3 : vector<128x128xbf16> to vector<128x128xf32>
    %cst_5 = arith.constant dense<0.000000e+00> : vector<128xf32>
    %6 = vector.multi_reduction <add>, %5, %cst_5 [0] : vector<128x128xf32> to vector<128xf32>
    %7 = vector.shape_cast %6 : vector<128xf32> to vector<1x128xf32>
    %c0_6 = arith.constant 0 : index
    %c0_7 = arith.constant 0 : index
    %c0_8 = arith.constant 0 : index
    %8 = vector.load %arg4[%c0_6, %c0_7, %c0_8] : memref<1x2x128xf32, #tpu.memory_space<vmem>>, vector<1x1x128xf32>
    %9 = vector.shape_cast %8 : vector<1x1x128xf32> to vector<1x128xf32>
    %10 = vector.shape_cast %7 : vector<1x128xf32> to vector<1x1x128xf32>
    tpu.vector_store %arg4[%c0_6, %c0_7, %c0_8], %10 {strides = array<i32>} : memref<1x2x128xf32, #tpu.memory_space<vmem>>, vector<1x1x128xf32>,
    %11 = arith.mulf %5, %5 : vector<128x128xf32>
    %cst_9 = arith.constant dense<0.000000e+00> : vector<128xf32>
    %12 = vector.multi_reduction <add>, %11, %cst_9 [0] : vector<128x128xf32> to vector<128xf32>
    %13 = vector.shape_cast %12 : vector<128xf32> to vector<1x128xf32>
    %c0_10 = arith.constant 0 : index
    %c1 = arith.constant 1 : index
    %c0_11 = arith.constant 0 : index
    %14 = vector.load %arg4[%c0_10, %c1, %c0_11] : memref<1x2x128xf32, #tpu.memory_space<vmem>>, vector<1x1x128xf32>
    %15 = vector.shape_cast %14 : vector<1x1x128xf32> to vector<1x128xf32>
    %16 = vector.shape_cast %13 : vector<1x128xf32> to vector<1x1x128xf32>
    tpu.vector_store %arg4[%c0_10, %c1, %c0_11], %16 {strides = array<i32>} : memref<1x2x128xf32, #tpu.memory_space<vmem>>, vector<1x1x128xf32>,
    return
  }
  func.func @transform_0(%arg0: i32) -> (i32, i32) {
    %c0_i32 = arith.constant 0 : i32
    %c0_i32_0 = arith.constant 0 : i32
    return %arg0, %c0_i32 : i32, i32
  }
  func.func @transform_1(%arg0: i32) -> (i32, i32) {
    %c0_i32 = arith.constant 0 : i32
    %c0_i32_0 = arith.constant 0 : i32
    %c0_i32_1 = arith.constant 0 : i32
    return %c0_i32, %c0_i32_0 : i32, i32
  }
  func.func @transform_2(%arg0: i32) -> (i32, i32) {
    %c0_i32 = arith.constant 0 : i32
    %c0_i32_0 = arith.constant 0 : i32
    return %arg0, %c0_i32 : i32, i32
  }
  func.func @transform_3(%arg0: i32) -> (i32, i32, i32) {
    %c0_i32 = arith.constant 0 : i32
    %c0_i32_0 = arith.constant 0 : i32
    %c0_i32_1 = arith.constant 0 : i32
    return %arg0, %c0_i32, %c0_i32_0 : i32, i32, i32
  }
}

module attributes {stable_mosaic.version = 11 : i64} {
  func.func @_bn_norm_lrelu_kernel(%arg0: i32, %arg1: memref<128x128xbf16, #tpu.memory_space<vmem>>, %arg2: memref<1x128xf32, #tpu.memory_space<vmem>>, %arg3: memref<1x128xf32, #tpu.memory_space<vmem>>, %arg4: memref<128x128xbf16, #tpu.memory_space<vmem>>) attributes {dimension_semantics = [#tpu.dimension_semantics<parallel>], iteration_bounds = array<i64: 1>, scalar_prefetch = 0 : i64, scratch_operands = 0 : i64, tpu.core_type = #tpu.core_type<tc>, window_params = [{transform_indices = @transform_0, window_bounds = array<i64: 128, 128>}, {pipeline_mode = #tpu.pipeline_mode<synchronous>, transform_indices = @transform_1, window_bounds = array<i64: 1, 128>}, {pipeline_mode = #tpu.pipeline_mode<synchronous>, transform_indices = @transform_2, window_bounds = array<i64: 1, 128>}, {transform_indices = @transform_3, window_bounds = array<i64: 128, 128>}]} {
    %c0 = arith.constant 0 : index
    %c0_0 = arith.constant 0 : index
    %0 = vector.load %arg1[%c0, %c0_0] : memref<128x128xbf16, #tpu.memory_space<vmem>>, vector<128x128xbf16>
    %1 = arith.extf %0 : vector<128x128xbf16> to vector<128x128xf32>
    %c0_1 = arith.constant 0 : index
    %c0_2 = arith.constant 0 : index
    %2 = vector.load %arg2[%c0_1, %c0_2] : memref<1x128xf32, #tpu.memory_space<vmem>>, vector<1x128xf32>
    %3 = vector.broadcast %2 : vector<1x128xf32> to vector<128x128xf32>
    %4 = arith.mulf %1, %3 : vector<128x128xf32>
    %c0_3 = arith.constant 0 : index
    %c0_4 = arith.constant 0 : index
    %5 = vector.load %arg3[%c0_3, %c0_4] : memref<1x128xf32, #tpu.memory_space<vmem>>, vector<1x128xf32>
    %6 = vector.broadcast %5 : vector<1x128xf32> to vector<128x128xf32>
    %7 = arith.addf %4, %6 : vector<128x128xf32>
    %cst = arith.constant 0.000000e+00 : f32
    %8 = vector.broadcast %cst : f32 to vector<128x128xf32>
    %9 = arith.cmpf oge, %7, %8 : vector<128x128xf32>
    %cst_5 = arith.constant 2.000000e-01 : f32
    %10 = vector.broadcast %cst_5 : f32 to vector<128x128xf32>
    %11 = arith.mulf %10, %7 : vector<128x128xf32>
    %12 = arith.select %9, %7, %11 : vector<128x128xi1>, vector<128x128xf32>
    %13 = arith.truncf %12 : vector<128x128xf32> to vector<128x128xbf16>
    %c0_6 = arith.constant 0 : index
    %c0_7 = arith.constant 0 : index
    %14 = vector.load %arg4[%c0_6, %c0_7] : memref<128x128xbf16, #tpu.memory_space<vmem>>, vector<128x128xbf16>
    tpu.vector_store %arg4[%c0_6, %c0_7], %13 {strides = array<i32>} : memref<128x128xbf16, #tpu.memory_space<vmem>>, vector<128x128xbf16>,
    return
  }
  func.func @transform_0(%arg0: i32) -> (i32, i32) {
    %c0_i32 = arith.constant 0 : i32
    %c0_i32_0 = arith.constant 0 : i32
    return %arg0, %c0_i32 : i32, i32
  }
  func.func @transform_1(%arg0: i32) -> (i32, i32) {
    %c0_i32 = arith.constant 0 : i32
    %c0_i32_0 = arith.constant 0 : i32
    %c0_i32_1 = arith.constant 0 : i32
    return %c0_i32, %c0_i32_0 : i32, i32
  }
  func.func @transform_2(%arg0: i32) -> (i32, i32) {
    %c0_i32 = arith.constant 0 : i32
    %c0_i32_0 = arith.constant 0 : i32
    %c0_i32_1 = arith.constant 0 : i32
    return %c0_i32, %c0_i32_0 : i32, i32
  }
  func.func @transform_3(%arg0: i32) -> (i32, i32) {
    %c0_i32 = arith.constant 0 : i32
    %c0_i32_0 = arith.constant 0 : i32
    return %arg0, %c0_i32 : i32, i32
  }
}

module attributes {stable_mosaic.version = 11 : i64} {
  func.func @_gemm_stats_kernel(%arg0: i32, %arg1: memref<32x2048xbf16, #tpu.memory_space<vmem>>, %arg2: memref<2048x256xbf16, #tpu.memory_space<vmem>>, %arg3: memref<32x256xbf16, #tpu.memory_space<vmem>>, %arg4: memref<1x2x256xf32, #tpu.memory_space<vmem>>) attributes {dimension_semantics = [#tpu.dimension_semantics<parallel>], iteration_bounds = array<i64: 1>, scalar_prefetch = 0 : i64, scratch_operands = 0 : i64, tpu.core_type = #tpu.core_type<tc>, window_params = [{transform_indices = @transform_0, window_bounds = array<i64: 32, 2048>}, {pipeline_mode = #tpu.pipeline_mode<synchronous>, transform_indices = @transform_1, window_bounds = array<i64: 2048, 256>}, {transform_indices = @transform_2, window_bounds = array<i64: 32, 256>}, {transform_indices = @transform_3, window_bounds = array<i64: 1, 2, 256>}]} {
    %c0 = arith.constant 0 : index
    %c0_0 = arith.constant 0 : index
    %0 = vector.load %arg1[%c0, %c0_0] : memref<32x2048xbf16, #tpu.memory_space<vmem>>, vector<32x2048xbf16>
    %c0_1 = arith.constant 0 : index
    %c0_2 = arith.constant 0 : index
    %1 = vector.load %arg2[%c0_1, %c0_2] : memref<2048x256xbf16, #tpu.memory_space<vmem>>, vector<2048x256xbf16>
    %cst = arith.constant dense<0.000000e+00> : vector<32x256xf32>
    %2 = tpu.matmul %0, %1, %cst {dimension_numbers = #tpu.dot_dimension_numbers<[1], [0], [0], [1], [0, 0, 1, 1], [], []>} : vector<32x2048xbf16>, vector<2048x256xbf16>, vector<32x256xf32> -> vector<32x256xf32>
    %3 = arith.truncf %2 : vector<32x256xf32> to vector<32x256xbf16>
    %c0_3 = arith.constant 0 : index
    %c0_4 = arith.constant 0 : index
    %4 = vector.load %arg3[%c0_3, %c0_4] : memref<32x256xbf16, #tpu.memory_space<vmem>>, vector<32x256xbf16>
    tpu.vector_store %arg3[%c0_3, %c0_4], %3 {strides = array<i32>} : memref<32x256xbf16, #tpu.memory_space<vmem>>, vector<32x256xbf16>,
    %5 = arith.extf %3 : vector<32x256xbf16> to vector<32x256xf32>
    %cst_5 = arith.constant dense<0.000000e+00> : vector<256xf32>
    %6 = vector.multi_reduction <add>, %5, %cst_5 [0] : vector<32x256xf32> to vector<256xf32>
    %7 = vector.shape_cast %6 : vector<256xf32> to vector<1x256xf32>
    %c0_6 = arith.constant 0 : index
    %c0_7 = arith.constant 0 : index
    %c0_8 = arith.constant 0 : index
    %8 = vector.load %arg4[%c0_6, %c0_7, %c0_8] : memref<1x2x256xf32, #tpu.memory_space<vmem>>, vector<1x1x256xf32>
    %9 = vector.shape_cast %8 : vector<1x1x256xf32> to vector<1x256xf32>
    %10 = vector.shape_cast %7 : vector<1x256xf32> to vector<1x1x256xf32>
    tpu.vector_store %arg4[%c0_6, %c0_7, %c0_8], %10 {strides = array<i32>} : memref<1x2x256xf32, #tpu.memory_space<vmem>>, vector<1x1x256xf32>,
    %11 = arith.mulf %5, %5 : vector<32x256xf32>
    %cst_9 = arith.constant dense<0.000000e+00> : vector<256xf32>
    %12 = vector.multi_reduction <add>, %11, %cst_9 [0] : vector<32x256xf32> to vector<256xf32>
    %13 = vector.shape_cast %12 : vector<256xf32> to vector<1x256xf32>
    %c0_10 = arith.constant 0 : index
    %c1 = arith.constant 1 : index
    %c0_11 = arith.constant 0 : index
    %14 = vector.load %arg4[%c0_10, %c1, %c0_11] : memref<1x2x256xf32, #tpu.memory_space<vmem>>, vector<1x1x256xf32>
    %15 = vector.shape_cast %14 : vector<1x1x256xf32> to vector<1x256xf32>
    %16 = vector.shape_cast %13 : vector<1x256xf32> to vector<1x1x256xf32>
    tpu.vector_store %arg4[%c0_10, %c1, %c0_11], %16 {strides = array<i32>} : memref<1x2x256xf32, #tpu.memory_space<vmem>>, vector<1x1x256xf32>,
    return
  }
  func.func @transform_0(%arg0: i32) -> (i32, i32) {
    %c0_i32 = arith.constant 0 : i32
    %c0_i32_0 = arith.constant 0 : i32
    return %arg0, %c0_i32 : i32, i32
  }
  func.func @transform_1(%arg0: i32) -> (i32, i32) {
    %c0_i32 = arith.constant 0 : i32
    %c0_i32_0 = arith.constant 0 : i32
    %c0_i32_1 = arith.constant 0 : i32
    return %c0_i32, %c0_i32_0 : i32, i32
  }
  func.func @transform_2(%arg0: i32) -> (i32, i32) {
    %c0_i32 = arith.constant 0 : i32
    %c0_i32_0 = arith.constant 0 : i32
    return %arg0, %c0_i32 : i32, i32
  }
  func.func @transform_3(%arg0: i32) -> (i32, i32, i32) {
    %c0_i32 = arith.constant 0 : i32
    %c0_i32_0 = arith.constant 0 : i32
    %c0_i32_1 = arith.constant 0 : i32
    return %arg0, %c0_i32, %c0_i32_0 : i32, i32, i32
  }
}

module attributes {stable_mosaic.version = 11 : i64} {
  func.func @_bn_norm_lrelu_kernel(%arg0: i32, %arg1: memref<32x256xbf16, #tpu.memory_space<vmem>>, %arg2: memref<1x256xf32, #tpu.memory_space<vmem>>, %arg3: memref<1x256xf32, #tpu.memory_space<vmem>>, %arg4: memref<32x256xbf16, #tpu.memory_space<vmem>>) attributes {dimension_semantics = [#tpu.dimension_semantics<parallel>], iteration_bounds = array<i64: 1>, scalar_prefetch = 0 : i64, scratch_operands = 0 : i64, tpu.core_type = #tpu.core_type<tc>, window_params = [{transform_indices = @transform_0, window_bounds = array<i64: 32, 256>}, {pipeline_mode = #tpu.pipeline_mode<synchronous>, transform_indices = @transform_1, window_bounds = array<i64: 1, 256>}, {pipeline_mode = #tpu.pipeline_mode<synchronous>, transform_indices = @transform_2, window_bounds = array<i64: 1, 256>}, {transform_indices = @transform_3, window_bounds = array<i64: 32, 256>}]} {
    %c0 = arith.constant 0 : index
    %c0_0 = arith.constant 0 : index
    %0 = vector.load %arg1[%c0, %c0_0] : memref<32x256xbf16, #tpu.memory_space<vmem>>, vector<32x256xbf16>
    %1 = arith.extf %0 : vector<32x256xbf16> to vector<32x256xf32>
    %c0_1 = arith.constant 0 : index
    %c0_2 = arith.constant 0 : index
    %2 = vector.load %arg2[%c0_1, %c0_2] : memref<1x256xf32, #tpu.memory_space<vmem>>, vector<1x256xf32>
    %3 = vector.broadcast %2 : vector<1x256xf32> to vector<32x256xf32>
    %4 = arith.mulf %1, %3 : vector<32x256xf32>
    %c0_3 = arith.constant 0 : index
    %c0_4 = arith.constant 0 : index
    %5 = vector.load %arg3[%c0_3, %c0_4] : memref<1x256xf32, #tpu.memory_space<vmem>>, vector<1x256xf32>
    %6 = vector.broadcast %5 : vector<1x256xf32> to vector<32x256xf32>
    %7 = arith.addf %4, %6 : vector<32x256xf32>
    %cst = arith.constant 0.000000e+00 : f32
    %8 = vector.broadcast %cst : f32 to vector<32x256xf32>
    %9 = arith.cmpf oge, %7, %8 : vector<32x256xf32>
    %cst_5 = arith.constant 2.000000e-01 : f32
    %10 = vector.broadcast %cst_5 : f32 to vector<32x256xf32>
    %11 = arith.mulf %10, %7 : vector<32x256xf32>
    %12 = arith.select %9, %7, %11 : vector<32x256xi1>, vector<32x256xf32>
    %13 = arith.truncf %12 : vector<32x256xf32> to vector<32x256xbf16>
    %c0_6 = arith.constant 0 : index
    %c0_7 = arith.constant 0 : index
    %14 = vector.load %arg4[%c0_6, %c0_7] : memref<32x256xbf16, #tpu.memory_space<vmem>>, vector<32x256xbf16>
    tpu.vector_store %arg4[%c0_6, %c0_7], %13 {strides = array<i32>} : memref<32x256xbf16, #tpu.memory_space<vmem>>, vector<32x256xbf16>,
    return
  }
  func.func @transform_0(%arg0: i32) -> (i32, i32) {
    %c0_i32 = arith.constant 0 : i32
    %c0_i32_0 = arith.constant 0 : i32
    return %arg0, %c0_i32 : i32, i32
  }
  func.func @transform_1(%arg0: i32) -> (i32, i32) {
    %c0_i32 = arith.constant 0 : i32
    %c0_i32_0 = arith.constant 0 : i32
    %c0_i32_1 = arith.constant 0 : i32
    return %c0_i32, %c0_i32_0 : i32, i32
  }
  func.func @transform_2(%arg0: i32) -> (i32, i32) {
    %c0_i32 = arith.constant 0 : i32
    %c0_i32_0 = arith.constant 0 : i32
    %c0_i32_1 = arith.constant 0 : i32
    return %c0_i32, %c0_i32_0 : i32, i32
  }
  func.func @transform_3(%arg0: i32) -> (i32, i32) {
    %c0_i32 = arith.constant 0 : i32
    %c0_i32_0 = arith.constant 0 : i32
    return %arg0, %c0_i32 : i32, i32
  }
}

module attributes {stable_mosaic.version = 11 : i64} {
  func.func @_dot_sigmoid_kernel(%arg0: i32, %arg1: memref<8x4096xbf16, #tpu.memory_space<vmem>>, %arg2: memref<1x4096xbf16, #tpu.memory_space<vmem>>, %arg3: memref<8x1xf32, #tpu.memory_space<vmem>>) attributes {dimension_semantics = [#tpu.dimension_semantics<parallel>], iteration_bounds = array<i64: 1>, scalar_prefetch = 0 : i64, scratch_operands = 0 : i64, tpu.core_type = #tpu.core_type<tc>, window_params = [{transform_indices = @transform_0, window_bounds = array<i64: 8, 4096>}, {pipeline_mode = #tpu.pipeline_mode<synchronous>, transform_indices = @transform_1, window_bounds = array<i64: 1, 4096>}, {transform_indices = @transform_2, window_bounds = array<i64: 8, 1>}]} {
    %c0 = arith.constant 0 : index
    %c0_0 = arith.constant 0 : index
    %0 = vector.load %arg1[%c0, %c0_0] : memref<8x4096xbf16, #tpu.memory_space<vmem>>, vector<8x4096xbf16>
    %1 = arith.extf %0 : vector<8x4096xbf16> to vector<8x4096xf32>
    %c0_1 = arith.constant 0 : index
    %c0_2 = arith.constant 0 : index
    %2 = vector.load %arg2[%c0_1, %c0_2] : memref<1x4096xbf16, #tpu.memory_space<vmem>>, vector<1x4096xbf16>
    %3 = arith.extf %2 : vector<1x4096xbf16> to vector<1x4096xf32>
    %4 = vector.broadcast %3 : vector<1x4096xf32> to vector<8x4096xf32>
    %5 = arith.mulf %1, %4 : vector<8x4096xf32>
    %cst = arith.constant dense<0.000000e+00> : vector<8xf32>
    %6 = vector.multi_reduction <add>, %5, %cst [1] : vector<8x4096xf32> to vector<8xf32>
    %7 = vector.shape_cast %6 : vector<8xf32> to vector<8x1xf32>
    %8 = arith.negf %7 : vector<8x1xf32>
    %9 = math.exp %8 : vector<8x1xf32>
    %cst_3 = arith.constant 1.000000e+00 : f32
    %10 = vector.broadcast %cst_3 : f32 to vector<8x1xf32>
    %11 = arith.addf %10, %9 : vector<8x1xf32>
    %12 = arith.divf %10, %11 : vector<8x1xf32>
    %c0_4 = arith.constant 0 : index
    %c0_5 = arith.constant 0 : index
    %13 = vector.load %arg3[%c0_4, %c0_5] : memref<8x1xf32, #tpu.memory_space<vmem>>, vector<8x1xf32>
    tpu.vector_store %arg3[%c0_4, %c0_5], %12 {strides = array<i32>} : memref<8x1xf32, #tpu.memory_space<vmem>>, vector<8x1xf32>,
    return
  }
  func.func @transform_0(%arg0: i32) -> (i32, i32) {
    %c0_i32 = arith.constant 0 : i32
    %c0_i32_0 = arith.constant 0 : i32
    return %arg0, %c0_i32 : i32, i32
  }
  func.func @transform_1(%arg0: i32) -> (i32, i32) {
    %c0_i32 = arith.constant 0 : i32
    %c0_i32_0 = arith.constant 0 : i32
    %c0_i32_1 = arith.constant 0 : i32
    return %c0_i32, %c0_i32_0 : i32, i32
  }
  func.func @transform_2(%arg0: i32) -> (i32, i32) {
    %c0_i32 = arith.constant 0 : i32
    %c0_i32_0 = arith.constant 0 : i32
    return %arg0, %c0_i32 : i32, i32
  }
}

</mosaic_0001>

<llo_original>
// kernel: discriminator_forward.6
$region0: #{discriminator_forward.6}
  #allocation0 [shape = 'u32[]', space=smem, size = 0x4, offset = 0x4, fixed_abs, tag = 'smem constant byte address 0x4 - core index']
  #allocation1 [shape = 'u32[144,128]{1,0:T(1,128)}', space=vmem, size = 0x12000, scoped, tag = 'internal scratch']
  %s0 = inlined_call_operand.vmem [shape: bf16[512,16], index: 0, kind: input, shape index: {}]
  %s1 = inlined_call_operand.vmem [shape: bf16[16,64], index: 1, kind: input, shape index: {}]
  %s2 = inlined_call_operand.vmem [shape: bf16[512,64], index: 2, kind: output, shape index: {}]
  %s3 = sld [smem:[#allocation0]]
  $region18: #{discriminator_forward.6} parent=0
    _
  %s5 = ssub.s32 1, %s3
  %s6 = scalar_select 0, %s5, %s3
  // Predicated region
  $region2: #{discriminator_forward.6} parent=0 // pred_check
    _
  $region3: #{discriminator_forward.6} parent=0 // pred_check_branch
    %8 = sbr.rel (0) target = $region5
  $region4: #{discriminator_forward.6} parent=0 // pred_region
    _
  $region5: #{discriminator_forward.6} parent=0 // pred_fallthru
    _
  // Predicated region
  $region6: #{discriminator_forward.6} parent=0 // pred_check
    _
  $region7: #{discriminator_forward.6} parent=0 // pred_check_branch
    %10 = sbr.rel (0) target = $region9
  $region8: #{discriminator_forward.6} parent=0 // pred_region
    _
  $region9: #{discriminator_forward.6} parent=0 // pred_fallthru
    _
  %v12 = vld [vmem:[%s0] sm:$0xf]
  %v13 = vld [vmem:[%s0 + $0x4] sm:$0xf]
  %v14 = vld [vmem:[%s0 + $0x8] sm:$0xf]
  %v15 = vld [vmem:[%s0 + $0xc] sm:$0xf]
  %v16 = vld [vmem:[%s0 + $0x10] sm:$0xf]
  %v17 = vld [vmem:[%s0 + $0x14] sm:$0xf]
  %v18 = vld [vmem:[%s0 + $0x18] sm:$0xf]
  %v19 = vld [vmem:[%s0 + $0x1c] sm:$0xf]
  %v20 = vld [vmem:[%s0 + $0x20] sm:$0xf]
  %v21 = vld [vmem:[%s0 + $0x24] sm:$0xf]
  %v22 = vld [vmem:[%s0 + $0x28] sm:$0xf]
  %v23 = vld [vmem:[%s0 + $0x2c] sm:$0xf]
  %v24 = vld [vmem:[%s0 + $0x30] sm:$0xf]
  %v25 = vld [vmem:[%s0 + $0x34] sm:$0xf]
  %v26 = vld [vmem:[%s0 + $0x38] sm:$0xf]
  %v27 = vld [vmem:[%s0 + $0x3c] sm:$0xf]
  %v28 = vld [vmem:[%s0 + $0x40] sm:$0xf]
  %v29 = vld [vmem:[%s0 + $0x44] sm:$0xf]
  %v30 = vld [vmem:[%s0 + $0x48] sm:$0xf]
  %v31 = vld [vmem:[%s0 + $0x4c] sm:$0xf]
  %v32 = vld [vmem:[%s0 + $0x50] sm:$0xf]
  %v33 = vld [vmem:[%s0 + $0x54] sm:$0xf]
  %v34 = vld [vmem:[%s0 + $0x58] sm:$0xf]
  %v35 = vld [vmem:[%s0 + $0x5c] sm:$0xf]
  %v36 = vld [vmem:[%s0 + $0x60] sm:$0xf]
  %v37 = vld [vmem:[%s0 + $0x64] sm:$0xf]
  %v38 = vld [vmem:[%s0 + $0x68] sm:$0xf]
  %v39 = vld [vmem:[%s0 + $0x6c] sm:$0xf]
  %v40 = vld [vmem:[%s0 + $0x70] sm:$0xf]
  %v41 = vld [vmem:[%s0 + $0x74] sm:$0xf]
  %v42 = vld [vmem:[%s0 + $0x78] sm:$0xf]
  %v43 = vld [vmem:[%s0 + $0x7c] sm:$0xf]
  %v44 = vld [vmem:[%s0 + $0x80] sm:$0xf]
  %v45 = vld [vmem:[%s0 + $0x84] sm:$0xf]
  %v46 = vld [vmem:[%s0 + $0x88] sm:$0xf]
  %v47 = vld [vmem:[%s0 + $0x8c] sm:$0xf]
  %v48 = vld [vmem:[%s0 + $0x90] sm:$0xf]
  %v49 = vld [vmem:[%s0 + $0x94] sm:$0xf]
  %v50 = vld [vmem:[%s0 + $0x98] sm:$0xf]
  %v51 = vld [vmem:[%s0 + $0x9c] sm:$0xf]
  %v52 = vld [vmem:[%s0 + $0xa0] sm:$0xf]
  %v53 = vld [vmem:[%s0 + $0xa4] sm:$0xf]
  %v54 = vld [vmem:[%s0 + $0xa8] sm:$0xf]
  %v55 = vld [vmem:[%s0 + $0xac] sm:$0xf]
  %v56 = vld [vmem:[%s0 + $0xb0] sm:$0xf]
  %v57 = vld [vmem:[%s0 + $0xb4] sm:$0xf]
  %v58 = vld [vmem:[%s0 + $0xb8] sm:$0xf]
  %v59 = vld [vmem:[%s0 + $0xbc] sm:$0xf]
  %v60 = vld [vmem:[%s0 + $0xc0] sm:$0xf]
  %v61 = vld [vmem:[%s0 + $0xc4] sm:$0xf]
  %v62 = vld [vmem:[%s0 + $0xc8] sm:$0xf]
  %v63 = vld [vmem:[%s0 + $0xcc] sm:$0xf]
  %v64 = vld [vmem:[%s0 + $0xd0] sm:$0xf]
  %v65 = vld [vmem:[%s0 + $0xd4] sm:$0xf]
  %v66 = vld [vmem:[%s0 + $0xd8] sm:$0xf]
  %v67 = vld [vmem:[%s0 + $0xdc] sm:$0xf]
  %v68 = vld [vmem:[%s0 + $0xe0] sm:$0xf]
  %v69 = vld [vmem:[%s0 + $0xe4] sm:$0xf]
  %v70 = vld [vmem:[%s0 + $0xe8] sm:$0xf]
  %v71 = vld [vmem:[%s0 + $0xec] sm:$0xf]
  %v72 = vld [vmem:[%s0 + $0xf0] sm:$0xf]
  %v73 = vld [vmem:[%s0 + $0xf4] sm:$0xf]
  %v74 = vld [vmem:[%s0 + $0xf8] sm:$0xf]
  %v75 = vld [vmem:[%s0 + $0xfc] sm:$0xf]
  %v76 = vld [vmem:[%s1] sm:$0xf]
  %v77 = vld [vmem:[%s1 + $0x4] sm:$0xf]
  %v142 = vunpack.c.l.b16 %v12
  %v143 = vunpack.c.l.b16 %v13
  %v144 = vunpack.c.l.b16 %v14
  %v145 = vunpack.c.l.b16 %v15
  %v146 = vunpack.c.l.b16 %v16
  %v147 = vunpack.c.l.b16 %v17
  %v148 = vunpack.c.l.b16 %v18
  %v149 = vunpack.c.l.b16 %v19
  %v150 = vunpack.c.l.b16 %v20
  %v151 = vunpack.c.l.b16 %v21
  %v152 = vunpack.c.l.b16 %v22
  %v153 = vunpack.c.l.b16 %v23
  %v154 = vunpack.c.l.b16 %v24
  %v155 = vunpack.c.l.b16 %v25
  %v156 = vunpack.c.l.b16 %v26
  %v157 = vunpack.c.l.b16 %v27
  %v158 = vunpack.c.l.b16 %v28
  %v159 = vunpack.c.l.b16 %v29
  %v160 = vunpack.c.l.b16 %v30
  %v161 = vunpack.c.l.b16 %v31
  %v162 = vunpack.c.l.b16 %v32
  %v163 = vunpack.c.l.b16 %v33
  %v164 = vunpack.c.l.b16 %v34
  %v165 = vunpack.c.l.b16 %v35
  %v166 = vunpack.c.l.b16 %v36
  %v167 = vunpack.c.l.b16 %v37
  %v168 = vunpack.c.l.b16 %v38
  %v169 = vunpack.c.l.b16 %v39
  %v170 = vunpack.c.l.b16 %v40
  %v171 = vunpack.c.l.b16 %v41
  %v172 = vunpack.c.l.b16 %v42
  %v173 = vunpack.c.l.b16 %v43
  %v174 = vunpack.c.l.b16 %v44
  %v175 = vunpack.c.l.b16 %v45
  %v176 = vunpack.c.l.b16 %v46
  %v177 = vunpack.c.l.b16 %v47
  %v178 = vunpack.c.l.b16 %v48
  %v179 = vunpack.c.l.b16 %v49
  %v180 = vunpack.c.l.b16 %v50
  %v181 = vunpack.c.l.b16 %v51
  %v182 = vunpack.c.l.b16 %v52
  %v183 = vunpack.c.l.b16 %v53
  %v184 = vunpack.c.l.b16 %v54
  %v185 = vunpack.c.l.b16 %v55
  %v186 = vunpack.c.l.b16 %v56
  %v187 = vunpack.c.l.b16 %v57
  %v188 = vunpack.c.l.b16 %v58
  %v189 = vunpack.c.l.b16 %v59
  %v190 = vunpack.c.l.b16 %v60
  %v191 = vunpack.c.l.b16 %v61
  %v192 = vunpack.c.l.b16 %v62
  %v193 = vunpack.c.l.b16 %v63
  %v194 = vunpack.c.l.b16 %v64
  %v195 = vunpack.c.l.b16 %v65
  %v196 = vunpack.c.l.b16 %v66
  %v197 = vunpack.c.l.b16 %v67
  %v198 = vunpack.c.l.b16 %v68
  %v199 = vunpack.c.l.b16 %v69
  %v200 = vunpack.c.l.b16 %v70
  %v201 = vunpack.c.l.b16 %v71
  %v202 = vunpack.c.l.b16 %v72
  %v203 = vunpack.c.l.b16 %v73
  %v204 = vunpack.c.l.b16 %v74
  %v205 = vunpack.c.l.b16 %v75
  %v206 = vpack.c.b16 %v143, %v142
  %v207 = vpack.c.b16 %v145, %v144
  %v208 = vpack.c.b16 %v147, %v146
  %v209 = vpack.c.b16 %v149, %v148
  %v210 = vpack.c.b16 %v151, %v150
  %v211 = vpack.c.b16 %v153, %v152
  %v212 = vpack.c.b16 %v155, %v154
  %v213 = vpack.c.b16 %v157, %v156
  %v214 = vpack.c.b16 %v159, %v158
  %v215 = vpack.c.b16 %v161, %v160
  %v216 = vpack.c.b16 %v163, %v162
  %v217 = vpack.c.b16 %v165, %v164
  %v218 = vpack.c.b16 %v167, %v166
  %v219 = vpack.c.b16 %v169, %v168
  %v220 = vpack.c.b16 %v171, %v170
  %v221 = vpack.c.b16 %v173, %v172
  %v222 = vpack.c.b16 %v175, %v174
  %v223 = vpack.c.b16 %v177, %v176
  %v224 = vpack.c.b16 %v179, %v178
  %v225 = vpack.c.b16 %v181, %v180
  %v226 = vpack.c.b16 %v183, %v182
  %v227 = vpack.c.b16 %v185, %v184
  %v228 = vpack.c.b16 %v187, %v186
  %v229 = vpack.c.b16 %v189, %v188
  %v230 = vpack.c.b16 %v191, %v190
  %v231 = vpack.c.b16 %v193, %v192
  %v232 = vpack.c.b16 %v195, %v194
  %v233 = vpack.c.b16 %v197, %v196
  %v234 = vpack.c.b16 %v199, %v198
  %v235 = vpack.c.b16 %v201, %v200
  %v236 = vpack.c.b16 %v203, %v202
  %v237 = vpack.c.b16 %v205, %v204
  %v240 = vunpack.c.l.b16 %v76
  %v241 = vunpack.c.l.b16 %v77
  %v242 = vpack.c.b16 %v241, %v240
  %vm244 = vcmask 130048
  %v246 = vsel %vm244, %v206, 0
  %v249 = vsel %vm244, %v207, 0
  %v252 = vsel %vm244, %v208, 0
  %v255 = vsel %vm244, %v209, 0
  %v258 = vsel %vm244, %v210, 0
  %v261 = vsel %vm244, %v211, 0
  %v264 = vsel %vm244, %v212, 0
  %v267 = vsel %vm244, %v213, 0
  %v270 = vsel %vm244, %v214, 0
  %v273 = vsel %vm244, %v215, 0
  %v276 = vsel %vm244, %v216, 0
  %v279 = vsel %vm244, %v217, 0
  %v282 = vsel %vm244, %v218, 0
  %v285 = vsel %vm244, %v219, 0
  %v288 = vsel %vm244, %v220, 0
  %v291 = vsel %vm244, %v221, 0
  %v294 = vsel %vm244, %v222, 0
  %v297 = vsel %vm244, %v223, 0
  %v300 = vsel %vm244, %v224, 0
  %v303 = vsel %vm244, %v225, 0
  %v306 = vsel %vm244, %v226, 0
  %v309 = vsel %vm244, %v227, 0
  %v312 = vsel %vm244, %v228, 0
  %v315 = vsel %vm244, %v229, 0
  %v318 = vsel %vm244, %v230, 0
  %v321 = vsel %vm244, %v231, 0
  %v324 = vsel %vm244, %v232, 0
  %v327 = vsel %vm244, %v233, 0
  %v330 = vsel %vm244, %v234, 0
  %v333 = vsel %vm244, %v235, 0
  %v336 = vsel %vm244, %v236, 0
  %v339 = vsel %vm244, %v237, 0
  %341 = vmatprep.subr.bf16.mxu0 0
  %342 = vmatpush1.bf16.msra.mxu0 %v242
  %343 = vmatprep.subr.bf16.mxu0 0
  %344 = vmatpush1.bf16.msra.mxu0 0
  %345 = vmatprep.subr.bf16.mxu0 0
  %346 = vmatpush1.bf16.msra.mxu0 0
  %347 = vmatprep.subr.bf16.mxu0 0
  %348 = vmatpush1.bf16.msra.mxu0 0
  %349 = vmatprep.subr.bf16.mxu0 0
  %350 = vmatpush1.bf16.msra.mxu0 0
  %351 = vmatprep.subr.bf16.mxu0 0
  %352 = vmatpush1.bf16.msra.mxu0 0
  %353 = vmatprep.subr.bf16.mxu0 0
  %354 = vmatpush1.bf16.msra.mxu0 0
  %355 = vmatprep.subr.bf16.mxu0 0
  %356 = vmatpush1.bf16.msra.mxu0 0
  %357 = vmatprep.subr.bf16.mxu0 0
  %358 = vmatpush1.bf16.msra.mxu0 0
  %359 = vmatprep.subr.bf16.mxu0 0
  %360 = vmatpush1.bf16.msra.mxu0 0
  %361 = vmatprep.subr.bf16.mxu0 0
  %362 = vmatpush1.bf16.msra.mxu0 0
  %363 = vmatprep.subr.bf16.mxu0 0
  %364 = vmatpush1.bf16.msra.mxu0 0
  %365 = vmatprep.subr.bf16.mxu0 0
  %366 = vmatpush1.bf16.msra.mxu0 0
  %367 = vmatprep.subr.bf16.mxu0 0
  %368 = vmatpush1.bf16.msra.mxu0 0
  %369 = vmatprep.subr.bf16.mxu0 0
  %370 = vmatpush1.bf16.msra.mxu0 0
  %371 = vmatprep.subr.bf16.mxu0 0
  %372 = vmatpush1.bf16.msra.mxu0 0
  %373 = vmatprep.mubr.bf16.mxu0 0
  %374 = vmatmul.mubr.bf16.gmra.mrb[0].mxu0 %v246
  %v375 = vpop.f32.mrb[0].mxu0
  %v376 = vadd.f32 0.0, %v375
  %v377 = vpop.f32.mrb[0].mxu0
  %v378 = vpop.f32.mrb[0].mxu0
  %v379 = vadd.f32 0.0, %v378
  %v380 = vpop.f32.mrb[0].mxu0
  %381 = vmatprep.mubr.bf16.mxu0 0
  %382 = vmatmul.mubr.bf16.gmra.mrb[0].mxu0 %v249
  %v383 = vpop.f32.mrb[0].mxu0
  %v384 = vadd.f32 0.0, %v383
  %v385 = vpop.f32.mrb[0].mxu0
  %v386 = vpop.f32.mrb[0].mxu0
  %v387 = vadd.f32 0.0, %v386
  %v388 = vpop.f32.mrb[0].mxu0
  %389 = vmatprep.mubr.bf16.mxu0 0
  %390 = vmatmul.mubr.bf16.gmra.mrb[0].mxu0 %v252
  %v391 = vpop.f32.mrb[0].mxu0
  %v392 = vadd.f32 0.0, %v391
  %v393 = vpop.f32.mrb[0].mxu0
  %v394 = vpop.f32.mrb[0].mxu0
  %v395 = vadd.f32 0.0, %v394
  %v396 = vpop.f32.mrb[0].mxu0
  %397 = vmatprep.mubr.bf16.mxu0 0
  %398 = vmatmul.mubr.bf16.gmra.mrb[0].mxu0 %v255
  %v399 = vpop.f32.mrb[0].mxu0
  %v400 = vadd.f32 0.0, %v399
  %v401 = vpop.f32.mrb[0].mxu0
  %v402 = vpop.f32.mrb[0].mxu0
  %v403 = vadd.f32 0.0, %v402
  %v404 = vpop.f32.mrb[0].mxu0
  %405 = vmatprep.mubr.bf16.mxu0 0
  %406 = vmatmul.mubr.bf16.gmra.mrb[0].mxu0 %v258
  %v407 = vpop.f32.mrb[0].mxu0
  %v408 = vadd.f32 0.0, %v407
  %v409 = vpop.f32.mrb[0].mxu0
  %v410 = vpop.f32.mrb[0].mxu0
  %v411 = vadd.f32 0.0, %v410
  %v412 = vpop.f32.mrb[0].mxu0
  %413 = vmatprep.mubr.bf16.mxu0 0
  %414 = vmatmul.mubr.bf16.gmra.mrb[0].mxu0 %v261
  %v415 = vpop.f32.mrb[0].mxu0
  %v416 = vadd.f32 0.0, %v415
  %v417 = vpop.f32.mrb[0].mxu0
  %v418 = vpop.f32.mrb[0].mxu0
  %v419 = vadd.f32 0.0, %v418
  %v420 = vpop.f32.mrb[0].mxu0
  %421 = vmatprep.mubr.bf16.mxu0 0
  %422 = vmatmul.mubr.bf16.gmra.mrb[0].mxu0 %v264
  %v423 = vpop.f32.mrb[0].mxu0
  %v424 = vadd.f32 0.0, %v423
  %v425 = vpop.f32.mrb[0].mxu0
  %v426 = vpop.f32.mrb[0].mxu0
  %v427 = vadd.f32 0.0, %v426
  %v428 = vpop.f32.mrb[0].mxu0
  %429 = vmatprep.mubr.bf16.mxu0 0
  %430 = vmatmul.mubr.bf16.gmra.mrb[0].mxu0 %v267
  %v431 = vpop.f32.mrb[0].mxu0
  %v432 = vadd.f32 0.0, %v431
  %v433 = vpop.f32.mrb[0].mxu0
  %v434 = vpop.f32.mrb[0].mxu0
  %v435 = vadd.f32 0.0, %v434
  %v436 = vpop.f32.mrb[0].mxu0
  %437 = vmatprep.mubr.bf16.mxu0 0
  %438 = vmatmul.mubr.bf16.gmra.mrb[0].mxu0 %v270
  %v439 = vpop.f32.mrb[0].mxu0
  %v440 = vadd.f32 0.0, %v439
  %v441 = vpop.f32.mrb[0].mxu0
  %v442 = vpop.f32.mrb[0].mxu0
  %v443 = vadd.f32 0.0, %v442
  %v444 = vpop.f32.mrb[0].mxu0
  %445 = vmatprep.mubr.bf16.mxu0 0
  %446 = vmatmul.mubr.bf16.gmra.mrb[0].mxu0 %v273
  %v447 = vpop.f32.mrb[0].mxu0
  %v448 = vadd.f32 0.0, %v447
  %v449 = vpop.f32.mrb[0].mxu0
  %v450 = vpop.f32.mrb[0].mxu0
  %v451 = vadd.f32 0.0, %v450
  %v452 = vpop.f32.mrb[0].mxu0
  %453 = vmatprep.mubr.bf16.mxu0 0
  %454 = vmatmul.mubr.bf16.gmra.mrb[0].mxu0 %v276
  %v455 = vpop.f32.mrb[0].mxu0
  %v456 = vadd.f32 0.0, %v455
  %v457 = vpop.f32.mrb[0].mxu0
  %v458 = vpop.f32.mrb[0].mxu0
  %v459 = vadd.f32 0.0, %v458
  %v460 = vpop.f32.mrb[0].mxu0
  %461 = vmatprep.mubr.bf16.mxu0 0
  %462 = vmatmul.mubr.bf16.gmra.mrb[0].mxu0 %v279
  %v463 = vpop.f32.mrb[0].mxu0
  %v464 = vadd.f32 0.0, %v463
  %v465 = vpop.f32.mrb[0].mxu0
  %v466 = vpop.f32.mrb[0].mxu0
  %v467 = vadd.f32 0.0, %v466
  %v468 = vpop.f32.mrb[0].mxu0
  %469 = vmatprep.mubr.bf16.mxu0 0
  %470 = vmatmul.mubr.bf16.gmra.mrb[0].mxu0 %v282
  %v471 = vpop.f32.mrb[0].mxu0
  %v472 = vadd.f32 0.0, %v471
  %v473 = vpop.f32.mrb[0].mxu0
  %v474 = vpop.f32.mrb[0].mxu0
  %v475 = vadd.f32 0.0, %v474
  %v476 = vpop.f32.mrb[0].mxu0
  %477 = vmatprep.mubr.bf16.mxu0 0
  %478 = vmatmul.mubr.bf16.gmra.mrb[0].mxu0 %v285
  %v479 = vpop.f32.mrb[0].mxu0
  %v480 = vadd.f32 0.0, %v479
  %v481 = vpop.f32.mrb[0].mxu0
  %v482 = vpop.f32.mrb[0].mxu0
  %v483 = vadd.f32 0.0, %v482
  %v484 = vpop.f32.mrb[0].mxu0
  %485 = vmatprep.mubr.bf16.mxu0 0
  %486 = vmatmul.mubr.bf16.gmra.mrb[0].mxu0 %v288
  %v487 = vpop.f32.mrb[0].mxu0
  %v488 = vadd.f32 0.0, %v487
  %v489 = vpop.f32.mrb[0].mxu0
  %v490 = vpop.f32.mrb[0].mxu0
  %v491 = vadd.f32 0.0, %v490
  %v492 = vpop.f32.mrb[0].mxu0
  %493 = vmatprep.mubr.bf16.mxu0 0
  %494 = vmatmul.mubr.bf16.gmra.mrb[0].mxu0 %v291
  %v495 = vpop.f32.mrb[0].mxu0
  %v496 = vadd.f32 0.0, %v495
  %v497 = vpop.f32.mrb[0].mxu0
  %v498 = vpop.f32.mrb[0].mxu0
  %v499 = vadd.f32 0.0, %v498
  %v500 = vpop.f32.mrb[0].mxu0
  %501 = vmatprep.mubr.bf16.mxu0 0
  %502 = vmatmul.mubr.bf16.gmra.mrb[0].mxu0 %v294
  %v503 = vpop.f32.mrb[0].mxu0
  %v504 = vadd.f32 0.0, %v503
  %v505 = vpop.f32.mrb[0].mxu0
  %v506 = vpop.f32.mrb[0].mxu0
  %v507 = vadd.f32 0.0, %v506
  %v508 = vpop.f32.mrb[0].mxu0
  %509 = vmatprep.mubr.bf16.mxu0 0
  %510 = vmatmul.mubr.bf16.gmra.mrb[0].mxu0 %v297
  %v511 = vpop.f32.mrb[0].mxu0
  %v512 = vadd.f32 0.0, %v511
  %v513 = vpop.f32.mrb[0].mxu0
  %v514 = vpop.f32.mrb[0].mxu0
  %v515 = vadd.f32 0.0, %v514
  %v516 = vpop.f32.mrb[0].mxu0
  %517 = vmatprep.mubr.bf16.mxu0 0
  %518 = vmatmul.mubr.bf16.gmra.mrb[0].mxu0 %v300
  %v519 = vpop.f32.mrb[0].mxu0
  %v520 = vadd.f32 0.0, %v519
  %v521 = vpop.f32.mrb[0].mxu0
  %v522 = vpop.f32.mrb[0].mxu0
  %v523 = vadd.f32 0.0, %v522
  %v524 = vpop.f32.mrb[0].mxu0
  %525 = vmatprep.mubr.bf16.mxu0 0
  %526 = vmatmul.mubr.bf16.gmra.mrb[0].mxu0 %v303
  %v527 = vpop.f32.mrb[0].mxu0
  %v528 = vadd.f32 0.0, %v527
  %v529 = vpop.f32.mrb[0].mxu0
  %v530 = vpop.f32.mrb[0].mxu0
  %v531 = vadd.f32 0.0, %v530
  %v532 = vpop.f32.mrb[0].mxu0
  %533 = vmatprep.mubr.bf16.mxu0 0
  %534 = vmatmul.mubr.bf16.gmra.mrb[0].mxu0 %v306
  %v535 = vpop.f32.mrb[0].mxu0
  %v536 = vadd.f32 0.0, %v535
  %v537 = vpop.f32.mrb[0].mxu0
  %v538 = vpop.f32.mrb[0].mxu0
  %v539 = vadd.f32 0.0, %v538
  %v540 = vpop.f32.mrb[0].mxu0
  %541 = vmatprep.mubr.bf16.mxu0 0
  %542 = vmatmul.mubr.bf16.gmra.mrb[0].mxu0 %v309
  %v543 = vpop.f32.mrb[0].mxu0
  %v544 = vadd.f32 0.0, %v543
  %v545 = vpop.f32.mrb[0].mxu0
  %v546 = vpop.f32.mrb[0].mxu0
  %v547 = vadd.f32 0.0, %v546
  %v548 = vpop.f32.mrb[0].mxu0
  %549 = vmatprep.mubr.bf16.mxu0 0
  %550 = vmatmul.mubr.bf16.gmra.mrb[0].mxu0 %v312
  %v551 = vpop.f32.mrb[0].mxu0
  %v552 = vadd.f32 0.0, %v551
  %v553 = vpop.f32.mrb[0].mxu0
  %v554 = vpop.f32.mrb[0].mxu0
  %v555 = vadd.f32 0.0, %v554
  %v556 = vpop.f32.mrb[0].mxu0
  %557 = vmatprep.mubr.bf16.mxu0 0
  %558 = vmatmul.mubr.bf16.gmra.mrb[0].mxu0 %v315
  %v559 = vpop.f32.mrb[0].mxu0
  %v560 = vadd.f32 0.0, %v559
  %v561 = vpop.f32.mrb[0].mxu0
  %v562 = vpop.f32.mrb[0].mxu0
  %v563 = vadd.f32 0.0, %v562
  %v564 = vpop.f32.mrb[0].mxu0
  %565 = vmatprep.mubr.bf16.mxu0 0
  %566 = vmatmul.mubr.bf16.gmra.mrb[0].mxu0 %v318
  %v567 = vpop.f32.mrb[0].mxu0
  %v568 = vadd.f32 0.0, %v567
  %v569 = vpop.f32.mrb[0].mxu0
  %v570 = vpop.f32.mrb[0].mxu0
  %v571 = vadd.f32 0.0, %v570
  %v572 = vpop.f32.mrb[0].mxu0
  %573 = vmatprep.mubr.bf16.mxu0 0
  %574 = vmatmul.mubr.bf16.gmra.mrb[0].mxu0 %v321
  %v575 = vpop.f32.mrb[0].mxu0
  %v576 = vadd.f32 0.0, %v575
  %v577 = vpop.f32.mrb[0].mxu0
  %v578 = vpop.f32.mrb[0].mxu0
  %v579 = vadd.f32 0.0, %v578
  %v580 = vpop.f32.mrb[0].mxu0
  %581 = vmatprep.mubr.bf16.mxu0 0
  %582 = vmatmul.mubr.bf16.gmra.mrb[0].mxu0 %v324
  %v583 = vpop.f32.mrb[0].mxu0
  %v584 = vadd.f32 0.0, %v583
  %v585 = vpop.f32.mrb[0].mxu0
  %v586 = vpop.f32.mrb[0].mxu0
  %v587 = vadd.f32 0.0, %v586
  %v588 = vpop.f32.mrb[0].mxu0
  %589 = vmatprep.mubr.bf16.mxu0 0
  %590 = vmatmul.mubr.bf16.gmra.mrb[0].mxu0 %v327
  %v591 = vpop.f32.mrb[0].mxu0
  %v592 = vadd.f32 0.0, %v591
  %v593 = vpop.f32.mrb[0].mxu0
  %v594 = vpop.f32.mrb[0].mxu0
  %v595 = vadd.f32 0.0, %v594
  %v596 = vpop.f32.mrb[0].mxu0
  %597 = vmatprep.mubr.bf16.mxu0 0
  %598 = vmatmul.mubr.bf16.gmra.mrb[0].mxu0 %v330
  %v599 = vpop.f32.mrb[0].mxu0
  %v600 = vadd.f32 0.0, %v599
  %v601 = vpop.f32.mrb[0].mxu0
  %v602 = vpop.f32.mrb[0].mxu0
  %v603 = vadd.f32 0.0, %v602
  %v604 = vpop.f32.mrb[0].mxu0
  %605 = vmatprep.mubr.bf16.mxu0 0
  %606 = vmatmul.mubr.bf16.gmra.mrb[0].mxu0 %v333
  %v607 = vpop.f32.mrb[0].mxu0
  %v608 = vadd.f32 0.0, %v607
  %v609 = vpop.f32.mrb[0].mxu0
  %v610 = vpop.f32.mrb[0].mxu0
  %v611 = vadd.f32 0.0, %v610
  %v612 = vpop.f32.mrb[0].mxu0
  %613 = vmatprep.mubr.bf16.mxu0 0
  %614 = vmatmul.mubr.bf16.gmra.mrb[0].mxu0 %v336
  %v615 = vpop.f32.mrb[0].mxu0
  %v616 = vadd.f32 0.0, %v615
  %v617 = vpop.f32.mrb[0].mxu0
  %v618 = vpop.f32.mrb[0].mxu0
  %v619 = vadd.f32 0.0, %v618
  %v620 = vpop.f32.mrb[0].mxu0
  %621 = vmatprep.mubr.bf16.mxu0 0
  %622 = vmatmul.mubr.bf16.gmra.mrb[0].mxu0 %v339
  %v623 = vpop.f32.mrb[0].mxu0
  %v624 = vadd.f32 0.0, %v623
  %v625 = vpop.f32.mrb[0].mxu0
  %v626 = vpop.f32.mrb[0].mxu0
  %v627 = vadd.f32 0.0, %v626
  %v628 = vpop.f32.mrb[0].mxu0
  %629 = vdwg.mxu0
  %vm630 = vcmp.ge.f32.partialorder %v376, 0.0
  %vm631 = vcmp.ge.f32.partialorder %v379, 0.0
  %vm632 = vcmp.ge.f32.partialorder %v384, 0.0
  %vm633 = vcmp.ge.f32.partialorder %v387, 0.0
  %vm634 = vcmp.ge.f32.partialorder %v392, 0.0
  %vm635 = vcmp.ge.f32.partialorder %v395, 0.0
  %vm636 = vcmp.ge.f32.partialorder %v400, 0.0
  %vm637 = vcmp.ge.f32.partialorder %v403, 0.0
  %vm638 = vcmp.ge.f32.partialorder %v408, 0.0
  %vm639 = vcmp.ge.f32.partialorder %v411, 0.0
  %vm640 = vcmp.ge.f32.partialorder %v416, 0.0
  %vm641 = vcmp.ge.f32.partialorder %v419, 0.0
  %vm642 = vcmp.ge.f32.partialorder %v424, 0.0
  %vm643 = vcmp.ge.f32.partialorder %v427, 0.0
  %vm644 = vcmp.ge.f32.partialorder %v432, 0.0
  %vm645 = vcmp.ge.f32.partialorder %v435, 0.0
  %vm646 = vcmp.ge.f32.partialorder %v440, 0.0
  %vm647 = vcmp.ge.f32.partialorder %v443, 0.0
  %vm648 = vcmp.ge.f32.partialorder %v448, 0.0
  %vm649 = vcmp.ge.f32.partialorder %v451, 0.0
  %vm650 = vcmp.ge.f32.partialorder %v456, 0.0
  %vm651 = vcmp.ge.f32.partialorder %v459, 0.0
  %vm652 = vcmp.ge.f32.partialorder %v464, 0.0
  %vm653 = vcmp.ge.f32.partialorder %v467, 0.0
  %vm654 = vcmp.ge.f32.partialorder %v472, 0.0
  %vm655 = vcmp.ge.f32.partialorder %v475, 0.0
  %vm656 = vcmp.ge.f32.partialorder %v480, 0.0
  %vm657 = vcmp.ge.f32.partialorder %v483, 0.0
  %vm658 = vcmp.ge.f32.partialorder %v488, 0.0
  %vm659 = vcmp.ge.f32.partialorder %v491, 0.0
  %vm660 = vcmp.ge.f32.partialorder %v496, 0.0
  %vm661 = vcmp.ge.f32.partialorder %v499, 0.0
  %vm662 = vcmp.ge.f32.partialorder %v504, 0.0
  %vm663 = vcmp.ge.f32.partialorder %v507, 0.0
  %vm664 = vcmp.ge.f32.partialorder %v512, 0.0
  %vm665 = vcmp.ge.f32.partialorder %v515, 0.0
  %vm666 = vcmp.ge.f32.partialorder %v520, 0.0
  %vm667 = vcmp.ge.f32.partialorder %v523, 0.0
  %vm668 = vcmp.ge.f32.partialorder %v528, 0.0
  %vm669 = vcmp.ge.f32.partialorder %v531, 0.0
  %vm670 = vcmp.ge.f32.partialorder %v536, 0.0
  %vm671 = vcmp.ge.f32.partialorder %v539, 0.0
  %vm672 = vcmp.ge.f32.partialorder %v544, 0.0
  %vm673 = vcmp.ge.f32.partialorder %v547, 0.0
  %vm674 = vcmp.ge.f32.partialorder %v552, 0.0
  %vm675 = vcmp.ge.f32.partialorder %v555, 0.0
  %vm676 = vcmp.ge.f32.partialorder %v560, 0.0
  %vm677 = vcmp.ge.f32.partialorder %v563, 0.0
  %vm678 = vcmp.ge.f32.partialorder %v568, 0.0
  %vm679 = vcmp.ge.f32.partialorder %v571, 0.0
  %vm680 = vcmp.ge.f32.partialorder %v576, 0.0
  %vm681 = vcmp.ge.f32.partialorder %v579, 0.0
  %vm682 = vcmp.ge.f32.partialorder %v584, 0.0
  %vm683 = vcmp.ge.f32.partialorder %v587, 0.0
  %vm684 = vcmp.ge.f32.partialorder %v592, 0.0
  %vm685 = vcmp.ge.f32.partialorder %v595, 0.0
  %vm686 = vcmp.ge.f32.partialorder %v600, 0.0
  %vm687 = vcmp.ge.f32.partialorder %v603, 0.0
  %vm688 = vcmp.ge.f32.partialorder %v608, 0.0
  %vm689 = vcmp.ge.f32.partialorder %v611, 0.0
  %vm690 = vcmp.ge.f32.partialorder %v616, 0.0
  %vm691 = vcmp.ge.f32.partialorder %v619, 0.0
  %vm692 = vcmp.ge.f32.partialorder %v624, 0.0
  %vm693 = vcmp.ge.f32.partialorder %v627, 0.0
  %v694 = vmul.f32 %v376, 0.2
  %v695 = vmul.f32 %v379, 0.2
  %v696 = vmul.f32 %v384, 0.2
  %v697 = vmul.f32 %v387, 0.2
  %v698 = vmul.f32 %v392, 0.2
  %v699 = vmul.f32 %v395, 0.2
  %v700 = vmul.f32 %v400, 0.2
  %v701 = vmul.f32 %v403, 0.2
  %v702 = vmul.f32 %v408, 0.2
  %v703 = vmul.f32 %v411, 0.2
  %v704 = vmul.f32 %v416, 0.2
  %v705 = vmul.f32 %v419, 0.2
  %v706 = vmul.f32 %v424, 0.2
  %v707 = vmul.f32 %v427, 0.2
  %v708 = vmul.f32 %v432, 0.2
  %v709 = vmul.f32 %v435, 0.2
  %v710 = vmul.f32 %v440, 0.2
  %v711 = vmul.f32 %v443, 0.2
  %v712 = vmul.f32 %v448, 0.2
  %v713 = vmul.f32 %v451, 0.2
  %v714 = vmul.f32 %v456, 0.2
  %v715 = vmul.f32 %v459, 0.2
  %v716 = vmul.f32 %v464, 0.2
  %v717 = vmul.f32 %v467, 0.2
  %v718 = vmul.f32 %v472, 0.2
  %v719 = vmul.f32 %v475, 0.2
  %v720 = vmul.f32 %v480, 0.2
  %v721 = vmul.f32 %v483, 0.2
  %v722 = vmul.f32 %v488, 0.2
  %v723 = vmul.f32 %v491, 0.2
  %v724 = vmul.f32 %v496, 0.2
  %v725 = vmul.f32 %v499, 0.2
  %v726 = vmul.f32 %v504, 0.2
  %v727 = vmul.f32 %v507, 0.2
  %v728 = vmul.f32 %v512, 0.2
  %v729 = vmul.f32 %v515, 0.2
  %v730 = vmul.f32 %v520, 0.2
  %v731 = vmul.f32 %v523, 0.2
  %v732 = vmul.f32 %v528, 0.2
  %v733 = vmul.f32 %v531, 0.2
  %v734 = vmul.f32 %v536, 0.2
  %v735 = vmul.f32 %v539, 0.2
  %v736 = vmul.f32 %v544, 0.2
  %v737 = vmul.f32 %v547, 0.2
  %v738 = vmul.f32 %v552, 0.2
  %v739 = vmul.f32 %v555, 0.2
  %v740 = vmul.f32 %v560, 0.2
  %v741 = vmul.f32 %v563, 0.2
  %v742 = vmul.f32 %v568, 0.2
  %v743 = vmul.f32 %v571, 0.2
  %v744 = vmul.f32 %v576, 0.2
  %v745 = vmul.f32 %v579, 0.2
  %v746 = vmul.f32 %v584, 0.2
  %v747 = vmul.f32 %v587, 0.2
  %v748 = vmul.f32 %v592, 0.2
  %v749 = vmul.f32 %v595, 0.2
  %v750 = vmul.f32 %v600, 0.2
  %v751 = vmul.f32 %v603, 0.2
  %v752 = vmul.f32 %v608, 0.2
  %v753 = vmul.f32 %v611, 0.2
  %v754 = vmul.f32 %v616, 0.2
  %v755 = vmul.f32 %v619, 0.2
  %v756 = vmul.f32 %v624, 0.2
  %v757 = vmul.f32 %v627, 0.2
  %v758 = vsel %vm630, %v376, %v694
  %v759 = vsel %vm631, %v379, %v695
  %v760 = vsel %vm632, %v384, %v696
  %v761 = vsel %vm633, %v387, %v697
  %v762 = vsel %vm634, %v392, %v698
  %v763 = vsel %vm635, %v395, %v699
  %v764 = vsel %vm636, %v400, %v700
  %v765 = vsel %vm637, %v403, %v701
  %v766 = vsel %vm638, %v408, %v702
  %v767 = vsel %vm639, %v411, %v703
  %v768 = vsel %vm640, %v416, %v704
  %v769 = vsel %vm641, %v419, %v705
  %v770 = vsel %vm642, %v424, %v706
  %v771 = vsel %vm643, %v427, %v707
  %v772 = vsel %vm644, %v432, %v708
  %v773 = vsel %vm645, %v435, %v709
  %v774 = vsel %vm646, %v440, %v710
  %v775 = vsel %vm647, %v443, %v711
  %v776 = vsel %vm648, %v448, %v712
  %v777 = vsel %vm649, %v451, %v713
  %v778 = vsel %vm650, %v456, %v714
  %v779 = vsel %vm651, %v459, %v715
  %v780 = vsel %vm652, %v464, %v716
  %v781 = vsel %vm653, %v467, %v717
  %v782 = vsel %vm654, %v472, %v718
  %v783 = vsel %vm655, %v475, %v719
  %v784 = vsel %vm656, %v480, %v720
  %v785 = vsel %vm657, %v483, %v721
  %v786 = vsel %vm658, %v488, %v722
  %v787 = vsel %vm659, %v491, %v723
  %v788 = vsel %vm660, %v496, %v724
  %v789 = vsel %vm661, %v499, %v725
  %v790 = vsel %vm662, %v504, %v726
  %v791 = vsel %vm663, %v507, %v727
  %v792 = vsel %vm664, %v512, %v728
  %v793 = vsel %vm665, %v515, %v729
  %v794 = vsel %vm666, %v520, %v730
  %v795 = vsel %vm667, %v523, %v731
  %v796 = vsel %vm668, %v528, %v732
  %v797 = vsel %vm669, %v531, %v733
  %v798 = vsel %vm670, %v536, %v734
  %v799 = vsel %vm671, %v539, %v735
  %v800 = vsel %vm672, %v544, %v736
  %v801 = vsel %vm673, %v547, %v737
  %v802 = vsel %vm674, %v552, %v738
  %v803 = vsel %vm675, %v555, %v739
  %v804 = vsel %vm676, %v560, %v740
  %v805 = vsel %vm677, %v563, %v741
  %v806 = vsel %vm678, %v568, %v742
  %v807 = vsel %vm679, %v571, %v743
  %v808 = vsel %vm680, %v576, %v744
  %v809 = vsel %vm681, %v579, %v745
  %v810 = vsel %vm682, %v584, %v746
  %v811 = vsel %vm683, %v587, %v747
  %v812 = vsel %vm684, %v592, %v748
  %v813 = vsel %vm685, %v595, %v749
  %v814 = vsel %vm686, %v600, %v750
  %v815 = vsel %vm687, %v603, %v751
  %v816 = vsel %vm688, %v608, %v752
  %v817 = vsel %vm689, %v611, %v753
  %v818 = vsel %vm690, %v616, %v754
  %v819 = vsel %vm691, %v619, %v755
  %v820 = vsel %vm692, %v624, %v756
  %v821 = vsel %vm693, %v627, %v757
  %v822 = vpack.c.bf16 %v759, %v758
  %v823 = vpack.c.bf16 %v761, %v760
  %v824 = vpack.c.bf16 %v763, %v762
  %v825 = vpack.c.bf16 %v765, %v764
  %v826 = vpack.c.bf16 %v767, %v766
  %v827 = vpack.c.bf16 %v769, %v768
  %v828 = vpack.c.bf16 %v771, %v770
  %v829 = vpack.c.bf16 %v773, %v772
  %v830 = vpack.c.bf16 %v775, %v774
  %v831 = vpack.c.bf16 %v777, %v776
  %v832 = vpack.c.bf16 %v779, %v778
  %v833 = vpack.c.bf16 %v781, %v780
  %v834 = vpack.c.bf16 %v783, %v782
  %v835 = vpack.c.bf16 %v785, %v784
  %v836 = vpack.c.bf16 %v787, %v786
  %v837 = vpack.c.bf16 %v789, %v788
  %v838 = vpack.c.bf16 %v791, %v790
  %v839 = vpack.c.bf16 %v793, %v792
  %v840 = vpack.c.bf16 %v795, %v794
  %v841 = vpack.c.bf16 %v797, %v796
  %v842 = vpack.c.bf16 %v799, %v798
  %v843 = vpack.c.bf16 %v801, %v800
  %v844 = vpack.c.bf16 %v803, %v802
  %v845 = vpack.c.bf16 %v805, %v804
  %v846 = vpack.c.bf16 %v807, %v806
  %v847 = vpack.c.bf16 %v809, %v808
  %v848 = vpack.c.bf16 %v811, %v810
  %v849 = vpack.c.bf16 %v813, %v812
  %v850 = vpack.c.bf16 %v815, %v814
  %v851 = vpack.c.bf16 %v817, %v816
  %v852 = vpack.c.bf16 %v819, %v818
  %v853 = vpack.c.bf16 %v821, %v820
  %v886 = vunpack.c.l.b16 %v822
  %v887 = vunpack.c.h.b16 %v822
  %v888 = vunpack.c.l.b16 %v823
  %v889 = vunpack.c.h.b16 %v823
  %v890 = vunpack.c.l.b16 %v824
  %v891 = vunpack.c.h.b16 %v824
  %v892 = vunpack.c.l.b16 %v825
  %v893 = vunpack.c.h.b16 %v825
  %v894 = vunpack.c.l.b16 %v826
  %v895 = vunpack.c.h.b16 %v826
  %v896 = vunpack.c.l.b16 %v827
  %v897 = vunpack.c.h.b16 %v827
  %v898 = vunpack.c.l.b16 %v828
  %v899 = vunpack.c.h.b16 %v828
  %v900 = vunpack.c.l.b16 %v829
  %v901 = vunpack.c.h.b16 %v829
  %v902 = vunpack.c.l.b16 %v830
  %v903 = vunpack.c.h.b16 %v830
  %v904 = vunpack.c.l.b16 %v831
  %v905 = vunpack.c.h.b16 %v831
  %v906 = vunpack.c.l.b16 %v832
  %v907 = vunpack.c.h.b16 %v832
  %v908 = vunpack.c.l.b16 %v833
  %v909 = vunpack.c.h.b16 %v833
  %v910 = vunpack.c.l.b16 %v834
  %v911 = vunpack.c.h.b16 %v834
  %v912 = vunpack.c.l.b16 %v835
  %v913 = vunpack.c.h.b16 %v835
  %v914 = vunpack.c.l.b16 %v836
  %v915 = vunpack.c.h.b16 %v836
  %v916 = vunpack.c.l.b16 %v837
  %v917 = vunpack.c.h.b16 %v837
  %v918 = vunpack.c.l.b16 %v838
  %v919 = vunpack.c.h.b16 %v838
  %v920 = vunpack.c.l.b16 %v839
  %v921 = vunpack.c.h.b16 %v839
  %v922 = vunpack.c.l.b16 %v840
  %v923 = vunpack.c.h.b16 %v840
  %v924 = vunpack.c.l.b16 %v841
  %v925 = vunpack.c.h.b16 %v841
  %v926 = vunpack.c.l.b16 %v842
  %v927 = vunpack.c.h.b16 %v842
  %v928 = vunpack.c.l.b16 %v843
  %v929 = vunpack.c.h.b16 %v843
  %v930 = vunpack.c.l.b16 %v844
  %v931 = vunpack.c.h.b16 %v844
  %v932 = vunpack.c.l.b16 %v845
  %v933 = vunpack.c.h.b16 %v845
  %v934 = vunpack.c.l.b16 %v846
  %v935 = vunpack.c.h.b16 %v846
  %v936 = vunpack.c.l.b16 %v847
  %v937 = vunpack.c.h.b16 %v847
  %v938 = vunpack.c.l.b16 %v848
  %v939 = vunpack.c.h.b16 %v848
  %v940 = vunpack.c.l.b16 %v849
  %v941 = vunpack.c.h.b16 %v849
  %v942 = vunpack.c.l.b16 %v850
  %v943 = vunpack.c.h.b16 %v850
  %v944 = vunpack.c.l.b16 %v851
  %v945 = vunpack.c.h.b16 %v851
  %v946 = vunpack.c.l.b16 %v852
  %v947 = vunpack.c.h.b16 %v852
  %v948 = vunpack.c.l.b16 %v853
  %v949 = vunpack.c.h.b16 %v853
  %v950 = vpack.c.b16 %v886, %v886
  %v951 = vpack.c.b16 %v887, %v887
  %v952 = vpack.c.b16 %v888, %v888
  %v953 = vpack.c.b16 %v889, %v889
  %v954 = vpack.c.b16 %v890, %v890
  %v955 = vpack.c.b16 %v891, %v891
  %v956 = vpack.c.b16 %v892, %v892
  %v957 = vpack.c.b16 %v893, %v893
  %v958 = vpack.c.b16 %v894, %v894
  %v959 = vpack.c.b16 %v895, %v895
  %v960 = vpack.c.b16 %v896, %v896
  %v961 = vpack.c.b16 %v897, %v897
  %v962 = vpack.c.b16 %v898, %v898
  %v963 = vpack.c.b16 %v899, %v899
  %v964 = vpack.c.b16 %v900, %v900
  %v965 = vpack.c.b16 %v901, %v901
  %v966 = vpack.c.b16 %v902, %v902
  %v967 = vpack.c.b16 %v903, %v903
  %v968 = vpack.c.b16 %v904, %v904
  %v969 = vpack.c.b16 %v905, %v905
  %v970 = vpack.c.b16 %v906, %v906
  %v971 = vpack.c.b16 %v907, %v907
  %v972 = vpack.c.b16 %v908, %v908
  %v973 = vpack.c.b16 %v909, %v909
  %v974 = vpack.c.b16 %v910, %v910
  %v975 = vpack.c.b16 %v911, %v911
  %v976 = vpack.c.b16 %v912, %v912
  %v977 = vpack.c.b16 %v913, %v913
  %v978 = vpack.c.b16 %v914, %v914
  %v979 = vpack.c.b16 %v915, %v915
  %v980 = vpack.c.b16 %v916, %v916
  %v981 = vpack.c.b16 %v917, %v917
  %v982 = vpack.c.b16 %v918, %v918
  %v983 = vpack.c.b16 %v919, %v919
  %v984 = vpack.c.b16 %v920, %v920
  %v985 = vpack.c.b16 %v921, %v921
  %v986 = vpack.c.b16 %v922, %v922
  %v987 = vpack.c.b16 %v923, %v923
  %v988 = vpack.c.b16 %v924, %v924
  %v989 = vpack.c.b16 %v925, %v925
  %v990 = vpack.c.b16 %v926, %v926
  %v991 = vpack.c.b16 %v927, %v927
  %v992 = vpack.c.b16 %v928, %v928
  %v993 = vpack.c.b16 %v929, %v929
  %v994 = vpack.c.b16 %v930, %v930
  %v995 = vpack.c.b16 %v931, %v931
  %v996 = vpack.c.b16 %v932, %v932
  %v997 = vpack.c.b16 %v933, %v933
  %v998 = vpack.c.b16 %v934, %v934
  %v999 = vpack.c.b16 %v935, %v935
  %v1000 = vpack.c.b16 %v936, %v936
  %v1001 = vpack.c.b16 %v937, %v937
  %v1002 = vpack.c.b16 %v938, %v938
  %v1003 = vpack.c.b16 %v939, %v939
  %v1004 = vpack.c.b16 %v940, %v940
  %v1005 = vpack.c.b16 %v941, %v941
  %v1006 = vpack.c.b16 %v942, %v942
  %v1007 = vpack.c.b16 %v943, %v943
  %v1008 = vpack.c.b16 %v944, %v944
  %v1009 = vpack.c.b16 %v945, %v945
  %v1010 = vpack.c.b16 %v946, %v946
  %v1011 = vpack.c.b16 %v947, %v947
  %v1012 = vpack.c.b16 %v948, %v948
  %v1013 = vpack.c.b16 %v949, %v949
  %vm1078 = vcmask 519168
  %1079 = vst.msk [vmem:[%s2] sm:$0xf] %vm1078, %v950
  %1080 = vst.msk [vmem:[%s2 + $0x4] sm:$0xf] %vm1078, %v951
  %1081 = vst.msk [vmem:[%s2 + $0x8] sm:$0xf] %vm1078, %v952
  %1082 = vst.msk [vmem:[%s2 + $0xc] sm:$0xf] %vm1078, %v953
  %1083 = vst.msk [vmem:[%s2 + $0x10] sm:$0xf] %vm1078, %v954
  %1084 = vst.msk [vmem:[%s2 + $0x14] sm:$0xf] %vm1078, %v955
  %1085 = vst.msk [vmem:[%s2 + $0x18] sm:$0xf] %vm1078, %v956
  %1086 = vst.msk [vmem:[%s2 + $0x1c] sm:$0xf] %vm1078, %v957
  %1087 = vst.msk [vmem:[%s2 + $0x20] sm:$0xf] %vm1078, %v958
  %1088 = vst.msk [vmem:[%s2 + $0x24] sm:$0xf] %vm1078, %v959
  %1089 = vst.msk [vmem:[%s2 + $0x28] sm:$0xf] %vm1078, %v960
  %1090 = vst.msk [vmem:[%s2 + $0x2c] sm:$0xf] %vm1078, %v961
  %1091 = vst.msk [vmem:[%s2 + $0x30] sm:$0xf] %vm1078, %v962
  %1092 = vst.msk [vmem:[%s2 + $0x34] sm:$0xf] %vm1078, %v963
  %1093 = vst.msk [vmem:[%s2 + $0x38] sm:$0xf] %vm1078, %v964
  %1094 = vst.msk [vmem:[%s2 + $0x3c] sm:$0xf] %vm1078, %v965
  %1095 = vst.msk [vmem:[%s2 + $0x40] sm:$0xf] %vm1078, %v966
  %1096 = vst.msk [vmem:[%s2 + $0x44] sm:$0xf] %vm1078, %v967
  %1097 = vst.msk [vmem:[%s2 + $0x48] sm:$0xf] %vm1078, %v968
  %1098 = vst.msk [vmem:[%s2 + $0x4c] sm:$0xf] %vm1078, %v969
  %1099 = vst.msk [vmem:[%s2 + $0x50] sm:$0xf] %vm1078, %v970
  %1100 = vst.msk [vmem:[%s2 + $0x54] sm:$0xf] %vm1078, %v971
  %1101 = vst.msk [vmem:[%s2 + $0x58] sm:$0xf] %vm1078, %v972
  %1102 = vst.msk [vmem:[%s2 + $0x5c] sm:$0xf] %vm1078, %v973
  %1103 = vst.msk [vmem:[%s2 + $0x60] sm:$0xf] %vm1078, %v974
  %1104 = vst.msk [vmem:[%s2 + $0x64] sm:$0xf] %vm1078, %v975
  %1105 = vst.msk [vmem:[%s2 + $0x68] sm:$0xf] %vm1078, %v976
  %1106 = vst.msk [vmem:[%s2 + $0x6c] sm:$0xf] %vm1078, %v977
  %1107 = vst.msk [vmem:[%s2 + $0x70] sm:$0xf] %vm1078, %v978
  %1108 = vst.msk [vmem:[%s2 + $0x74] sm:$0xf] %vm1078, %v979
  %1109 = vst.msk [vmem:[%s2 + $0x78] sm:$0xf] %vm1078, %v980
  %1110 = vst.msk [vmem:[%s2 + $0x7c] sm:$0xf] %vm1078, %v981
  %1111 = vst.msk [vmem:[%s2 + $0x80] sm:$0xf] %vm1078, %v982
  %1112 = vst.msk [vmem:[%s2 + $0x84] sm:$0xf] %vm1078, %v983
  %1113 = vst.msk [vmem:[%s2 + $0x88] sm:$0xf] %vm1078, %v984
  %1114 = vst.msk [vmem:[%s2 + $0x8c] sm:$0xf] %vm1078, %v985
  %1115 = vst.msk [vmem:[%s2 + $0x90] sm:$0xf] %vm1078, %v986
  %1116 = vst.msk [vmem:[%s2 + $0x94] sm:$0xf] %vm1078, %v987
  %1117 = vst.msk [vmem:[%s2 + $0x98] sm:$0xf] %vm1078, %v988
  %1118 = vst.msk [vmem:[%s2 + $0x9c] sm:$0xf] %vm1078, %v989
  %1119 = vst.msk [vmem:[%s2 + $0xa0] sm:$0xf] %vm1078, %v990
  %1120 = vst.msk [vmem:[%s2 + $0xa4] sm:$0xf] %vm1078, %v991
  %1121 = vst.msk [vmem:[%s2 + $0xa8] sm:$0xf] %vm1078, %v992
  %1122 = vst.msk [vmem:[%s2 + $0xac] sm:$0xf] %vm1078, %v993
  %1123 = vst.msk [vmem:[%s2 + $0xb0] sm:$0xf] %vm1078, %v994
  %1124 = vst.msk [vmem:[%s2 + $0xb4] sm:$0xf] %vm1078, %v995
  %1125 = vst.msk [vmem:[%s2 + $0xb8] sm:$0xf] %vm1078, %v996
  %1126 = vst.msk [vmem:[%s2 + $0xbc] sm:$0xf] %vm1078, %v997
  %1127 = vst.msk [vmem:[%s2 + $0xc0] sm:$0xf] %vm1078, %v998
  %1128 = vst.msk [vmem:[%s2 + $0xc4] sm:$0xf] %vm1078, %v999
  %1129 = vst.msk [vmem:[%s2 + $0xc8] sm:$0xf] %vm1078, %v1000
  %1130 = vst.msk [vmem:[%s2 + $0xcc] sm:$0xf] %vm1078, %v1001
  %1131 = vst.msk [vmem:[%s2 + $0xd0] sm:$0xf] %vm1078, %v1002
  %1132 = vst.msk [vmem:[%s2 + $0xd4] sm:$0xf] %vm1078, %v1003
  %1133 = vst.msk [vmem:[%s2 + $0xd8] sm:$0xf] %vm1078, %v1004
  %1134 = vst.msk [vmem:[%s2 + $0xdc] sm:$0xf] %vm1078, %v1005
  %1135 = vst.msk [vmem:[%s2 + $0xe0] sm:$0xf] %vm1078, %v1006
  %1136 = vst.msk [vmem:[%s2 + $0xe4] sm:$0xf] %vm1078, %v1007
  %1137 = vst.msk [vmem:[%s2 + $0xe8] sm:$0xf] %vm1078, %v1008
  %1138 = vst.msk [vmem:[%s2 + $0xec] sm:$0xf] %vm1078, %v1009
  %1139 = vst.msk [vmem:[%s2 + $0xf0] sm:$0xf] %vm1078, %v1010
  %1140 = vst.msk [vmem:[%s2 + $0xf4] sm:$0xf] %vm1078, %v1011
  %1141 = vst.msk [vmem:[%s2 + $0xf8] sm:$0xf] %vm1078, %v1012
  %1142 = vst.msk [vmem:[%s2 + $0xfc] sm:$0xf] %vm1078, %v1013
  // Predicated region
  $region10: #{discriminator_forward.6} parent=0 // pred_check
    _
  $region11: #{discriminator_forward.6} parent=0 // pred_check_branch
    %1144 = sbr.rel (0) target = $region13
  $region12: #{discriminator_forward.6} parent=0 // pred_region
    _
  $region13: #{discriminator_forward.6} parent=0 // pred_fallthru
    _
  // Predicated region
  $region14: #{discriminator_forward.6} parent=0 // pred_check
    _
  $region15: #{discriminator_forward.6} parent=0 // pred_check_branch
    %1146 = sbr.rel (0) target = $region17
  $region16: #{discriminator_forward.6} parent=0 // pred_region
    _
  $region17: #{discriminator_forward.6} parent=0 // pred_fallthru
    _

// kernel: discriminator_forward.7
$region0: #{discriminator_forward.7}
  #allocation0 [shape = 'u32[]', space=smem, size = 0x4, offset = 0x4, fixed_abs, tag = 'smem constant byte address 0x4 - core index']
  #allocation1 [shape = 'u32[144,128]{1,0:T(1,128)}', space=vmem, size = 0x12000, scoped, tag = 'internal scratch']
  %s0 = inlined_call_operand.vmem [shape: bf16[128,1024], index: 0, kind: input, shape index: {}]
  %s1 = inlined_call_operand.vmem [shape: bf16[1024,128], index: 1, kind: input, shape index: {}]
  %s2 = inlined_call_operand.vmem [shape: bf16[128,128], index: 2, kind: output, shape index: {0}]
  %s3 = inlined_call_operand.vmem [shape: f32[1,2,128], index: 3, kind: output, shape index: {1}]
  %4 = xla_tuple %s2, %s3
  %s5 = sld [smem:[#allocation0]]
  $region26: #{discriminator_forward.7} parent=0
    _
  %s7 = ssub.s32 1, %s5
  %s8 = scalar_select 0, %s7, %s5
  // Predicated region
  $region2: #{discriminator_forward.7} parent=0 // pred_check
    _
  $region3: #{discriminator_forward.7} parent=0 // pred_check_branch
    %10 = sbr.rel (0) target = $region5
  $region4: #{discriminator_forward.7} parent=0 // pred_region
    _
  $region5: #{discriminator_forward.7} parent=0 // pred_fallthru
    _
  // Predicated region
  $region6: #{discriminator_forward.7} parent=0 // pred_check
    _
  $region7: #{discriminator_forward.7} parent=0 // pred_check_branch
    %12 = sbr.rel (0) target = $region9
  $region8: #{discriminator_forward.7} parent=0 // pred_region
    _
  $region9: #{discriminator_forward.7} parent=0 // pred_fallthru
    _
  %v14 = vld [vmem:[%s0] sm:$0xff]
  %v15 = vld [vmem:[%s0 + $0x8] sm:$0xff]
  %v16 = vld [vmem:[%s0 + $0x10] sm:$0xff]
  %v17 = vld [vmem:[%s0 + $0x18] sm:$0xff]
  %v18 = vld [vmem:[%s0 + $0x20] sm:$0xff]
  %v19 = vld [vmem:[%s0 + $0x28] sm:$0xff]
  %v20 = vld [vmem:[%s0 + $0x30] sm:$0xff]
  %v21 = vld [vmem:[%s0 + $0x38] sm:$0xff]
  %v22 = vld [vmem:[%s0 + $0x40] sm:$0xff]
  %v23 = vld [vmem:[%s0 + $0x48] sm:$0xff]
  %v24 = vld [vmem:[%s0 + $0x50] sm:$0xff]
  %v25 = vld [vmem:[%s0 + $0x58] sm:$0xff]
  %v26 = vld [vmem:[%s0 + $0x60] sm:$0xff]
  %v27 = vld [vmem:[%s0 + $0x68] sm:$0xff]
  %v28 = vld [vmem:[%s0 + $0x70] sm:$0xff]
  %v29 = vld [vmem:[%s0 + $0x78] sm:$0xff]
  %v30 = vld [vmem:[%s0 + $0x80] sm:$0xff]
  %v31 = vld [vmem:[%s0 + $0x88] sm:$0xff]
  %v32 = vld [vmem:[%s0 + $0x90] sm:$0xff]
  %v33 = vld [vmem:[%s0 + $0x98] sm:$0xff]
  %v34 = vld [vmem:[%s0 + $0xa0] sm:$0xff]
  %v35 = vld [vmem:[%s0 + $0xa8] sm:$0xff]
  %v36 = vld [vmem:[%s0 + $0xb0] sm:$0xff]
  %v37 = vld [vmem:[%s0 + $0xb8] sm:$0xff]
  %v38 = vld [vmem:[%s0 + $0xc0] sm:$0xff]
  %v39 = vld [vmem:[%s0 + $0xc8] sm:$0xff]
  %v40 = vld [vmem:[%s0 + $0xd0] sm:$0xff]
  %v41 = vld [vmem:[%s0 + $0xd8] sm:$0xff]
  %v42 = vld [vmem:[%s0 + $0xe0] sm:$0xff]
  %v43 = vld [vmem:[%s0 + $0xe8] sm:$0xff]
  %v44 = vld [vmem:[%s0 + $0xf0] sm:$0xff]
  %v45 = vld [vmem:[%s0 + $0xf8] sm:$0xff]
  %v46 = vld [vmem:[%s0 + $0x100] sm:$0xff]
  %v47 = vld [vmem:[%s0 + $0x108] sm:$0xff]
  %v48 = vld [vmem:[%s0 + $0x110] sm:$0xff]
  %v49 = vld [vmem:[%s0 + $0x118] sm:$0xff]
  %v50 = vld [vmem:[%s0 + $0x120] sm:$0xff]
  %v51 = vld [vmem:[%s0 + $0x128] sm:$0xff]
  %v52 = vld [vmem:[%s0 + $0x130] sm:$0xff]
  %v53 = vld [vmem:[%s0 + $0x138] sm:$0xff]
  %v54 = vld [vmem:[%s0 + $0x140] sm:$0xff]
  %v55 = vld [vmem:[%s0 + $0x148] sm:$0xff]
  %v56 = vld [vmem:[%s0 + $0x150] sm:$0xff]
  %v57 = vld [vmem:[%s0 + $0x158] sm:$0xff]
  %v58 = vld [vmem:[%s0 + $0x160] sm:$0xff]
  %v59 = vld [vmem:[%s0 + $0x168] sm:$0xff]
  %v60 = vld [vmem:[%s0 + $0x170] sm:$0xff]
  %v61 = vld [vmem:[%s0 + $0x178] sm:$0xff]
  %v62 = vld [vmem:[%s0 + $0x180] sm:$0xff]
  %v63 = vld [vmem:[%s0 + $0x188] sm:$0xff]
  %v64 = vld [vmem:[%s0 + $0x190] sm:$0xff]
  %v65 = vld [vmem:[%s0 + $0x198] sm:$0xff]
  %v66 = vld [vmem:[%s0 + $0x1a0] sm:$0xff]
  %v67 = vld [vmem:[%s0 + $0x1a8] sm:$0xff]
  %v68 = vld [vmem:[%s0 + $0x1b0] sm:$0xff]
  %v69 = vld [vmem:[%s0 + $0x1b8] sm:$0xff]
  %v70 = vld [vmem:[%s0 + $0x1c0] sm:$0xff]
  %v71 = vld [vmem:[%s0 + $0x1c8] sm:$0xff]
  %v72 = vld [vmem:[%s0 + $0x1d0] sm:$0xff]
  %v73 = vld [vmem:[%s0 + $0x1d8] sm:$0xff]
  %v74 = vld [vmem:[%s0 + $0x1e0] sm:$0xff]
  %v75 = vld [vmem:[%s0 + $0x1e8] sm:$0xff]
  %v76 = vld [vmem:[%s0 + $0x1f0] sm:$0xff]
  %v77 = vld [vmem:[%s0 + $0x1f8] sm:$0xff]
  %v78 = vld [vmem:[%s1] sm:$0xf]
  %v79 = vld [vmem:[%s1 + $0x4] sm:$0xf]
  %v80 = vld [vmem:[%s1 + $0x8] sm:$0xf]
  %v81 = vld [vmem:[%s1 + $0xc] sm:$0xf]
  %v82 = vld [vmem:[%s1 + $0x10] sm:$0xf]
  %v83 = vld [vmem:[%s1 + $0x14] sm:$0xf]
  %v84 = vld [vmem:[%s1 + $0x18] sm:$0xf]
  %v85 = vld [vmem:[%s1 + $0x1c] sm:$0xf]
  %v86 = vld [vmem:[%s1 + $0x20] sm:$0xf]
  %v87 = vld [vmem:[%s1 + $0x24] sm:$0xf]
  %v88 = vld [vmem:[%s1 + $0x28] sm:$0xf]
  %v89 = vld [vmem:[%s1 + $0x2c] sm:$0xf]
  %v90 = vld [vmem:[%s1 + $0x30] sm:$0xf]
  %v91 = vld [vmem:[%s1 + $0x34] sm:$0xf]
  %v92 = vld [vmem:[%s1 + $0x38] sm:$0xf]
  %v93 = vld [vmem:[%s1 + $0x3c] sm:$0xf]
  %v94 = vld [vmem:[%s1 + $0x40] sm:$0xf]
  %v95 = vld [vmem:[%s1 + $0x44] sm:$0xf]
  %v96 = vld [vmem:[%s1 + $0x48] sm:$0xf]
  %v97 = vld [vmem:[%s1 + $0x4c] sm:$0xf]
  %v98 = vld [vmem:[%s1 + $0x50] sm:$0xf]
  %v99 = vld [vmem:[%s1 + $0x54] sm:$0xf]
  %v100 = vld [vmem:[%s1 + $0x58] sm:$0xf]
  %v101 = vld [vmem:[%s1 + $0x5c] sm:$0xf]
  %v102 = vld [vmem:[%s1 + $0x60] sm:$0xf]
  %v103 = vld [vmem:[%s1 + $0x64] sm:$0xf]
  %v104 = vld [vmem:[%s1 + $0x68] sm:$0xf]
  %v105 = vld [vmem:[%s1 + $0x6c] sm:$0xf]
  %v106 = vld [vmem:[%s1 + $0x70] sm:$0xf]
  %v107 = vld [vmem:[%s1 + $0x74] sm:$0xf]
  %v108 = vld [vmem:[%s1 + $0x78] sm:$0xf]
  %v109 = vld [vmem:[%s1 + $0x7c] sm:$0xf]
  %v110 = vld [vmem:[%s1 + $0x80] sm:$0xf]
  %v111 = vld [vmem:[%s1 + $0x84] sm:$0xf]
  %v112 = vld [vmem:[%s1 + $0x88] sm:$0xf]
  %v113 = vld [vmem:[%s1 + $0x8c] sm:$0xf]
  %v114 = vld [vmem:[%s1 + $0x90] sm:$0xf]
  %v115 = vld [vmem:[%s1 + $0x94] sm:$0xf]
  %v116 = vld [vmem:[%s1 + $0x98] sm:$0xf]
  %v117 = vld [vmem:[%s1 + $0x9c] sm:$0xf]
  %v118 = vld [vmem:[%s1 + $0xa0] sm:$0xf]
  %v119 = vld [vmem:[%s1 + $0xa4] sm:$0xf]
  %v120 = vld [vmem:[%s1 + $0xa8] sm:$0xf]
  %v121 = vld [vmem:[%s1 + $0xac] sm:$0xf]
  %v122 = vld [vmem:[%s1 + $0xb0] sm:$0xf]
  %v123 = vld [vmem:[%s1 + $0xb4] sm:$0xf]
  %v124 = vld [vmem:[%s1 + $0xb8] sm:$0xf]
  %v125 = vld [vmem:[%s1 + $0xbc] sm:$0xf]
  %v126 = vld [vmem:[%s1 + $0xc0] sm:$0xf]
  %v127 = vld [vmem:[%s1 + $0xc4] sm:$0xf]
  %v128 = vld [vmem:[%s1 + $0xc8] sm:$0xf]
  %v129 = vld [vmem:[%s1 + $0xcc] sm:$0xf]
  %v130 = vld [vmem:[%s1 + $0xd0] sm:$0xf]
  %v131 = vld [vmem:[%s1 + $0xd4] sm:$0xf]
  %v132 = vld [vmem:[%s1 + $0xd8] sm:$0xf]
  %v133 = vld [vmem:[%s1 + $0xdc] sm:$0xf]
  %v134 = vld [vmem:[%s1 + $0xe0] sm:$0xf]
  %v135 = vld [vmem:[%s1 + $0xe4] sm:$0xf]
  %v136 = vld [vmem:[%s1 + $0xe8] sm:$0xf]
  %v137 = vld [vmem:[%s1 + $0xec] sm:$0xf]
  %v138 = vld [vmem:[%s1 + $0xf0] sm:$0xf]
  %v139 = vld [vmem:[%s1 + $0xf4] sm:$0xf]
  %v140 = vld [vmem:[%s1 + $0xf8] sm:$0xf]
  %v141 = vld [vmem:[%s1 + $0xfc] sm:$0xf]
  %v142 = vld [vmem:[%s1 + $0x100] sm:$0xf]
  %v143 = vld [vmem:[%s1 + $0x104] sm:$0xf]
  %v144 = vld [vmem:[%s1 + $0x108] sm:$0xf]
  %v145 = vld [vmem:[%s1 + $0x10c] sm:$0xf]
  %v146 = vld [vmem:[%s1 + $0x110] sm:$0xf]
  %v147 = vld [vmem:[%s1 + $0x114] sm:$0xf]
  %v148 = vld [vmem:[%s1 + $0x118] sm:$0xf]
  %v149 = vld [vmem:[%s1 + $0x11c] sm:$0xf]
  %v150 = vld [vmem:[%s1 + $0x120] sm:$0xf]
  %v151 = vld [vmem:[%s1 + $0x124] sm:$0xf]
  %v152 = vld [vmem:[%s1 + $0x128] sm:$0xf]
  %v153 = vld [vmem:[%s1 + $0x12c] sm:$0xf]
  %v154 = vld [vmem:[%s1 + $0x130] sm:$0xf]
  %v155 = vld [vmem:[%s1 + $0x134] sm:$0xf]
  %v156 = vld [vmem:[%s1 + $0x138] sm:$0xf]
  %v157 = vld [vmem:[%s1 + $0x13c] sm:$0xf]
  %v158 = vld [vmem:[%s1 + $0x140] sm:$0xf]
  %v159 = vld [vmem:[%s1 + $0x144] sm:$0xf]
  %v160 = vld [vmem:[%s1 + $0x148] sm:$0xf]
  %v161 = vld [vmem:[%s1 + $0x14c] sm:$0xf]
  %v162 = vld [vmem:[%s1 + $0x150] sm:$0xf]
  %v163 = vld [vmem:[%s1 + $0x154] sm:$0xf]
  %v164 = vld [vmem:[%s1 + $0x158] sm:$0xf]
  %v165 = vld [vmem:[%s1 + $0x15c] sm:$0xf]
  %v166 = vld [vmem:[%s1 + $0x160] sm:$0xf]
  %v167 = vld [vmem:[%s1 + $0x164] sm:$0xf]
  %v168 = vld [vmem:[%s1 + $0x168] sm:$0xf]
  %v169 = vld [vmem:[%s1 + $0x16c] sm:$0xf]
  %v170 = vld [vmem:[%s1 + $0x170] sm:$0xf]
  %v171 = vld [vmem:[%s1 + $0x174] sm:$0xf]
  %v172 = vld [vmem:[%s1 + $0x178] sm:$0xf]
  %v173 = vld [vmem:[%s1 + $0x17c] sm:$0xf]
  %v174 = vld [vmem:[%s1 + $0x180] sm:$0xf]
  %v175 = vld [vmem:[%s1 + $0x184] sm:$0xf]
  %v176 = vld [vmem:[%s1 + $0x188] sm:$0xf]
  %v177 = vld [vmem:[%s1 + $0x18c] sm:$0xf]
  %v178 = vld [vmem:[%s1 + $0x190] sm:$0xf]
  %v179 = vld [vmem:[%s1 + $0x194] sm:$0xf]
  %v180 = vld [vmem:[%s1 + $0x198] sm:$0xf]
  %v181 = vld [vmem:[%s1 + $0x19c] sm:$0xf]
  %v182 = vld [vmem:[%s1 + $0x1a0] sm:$0xf]
  %v183 = vld [vmem:[%s1 + $0x1a4] sm:$0xf]
  %v184 = vld [vmem:[%s1 + $0x1a8] sm:$0xf]
  %v185 = vld [vmem:[%s1 + $0x1ac] sm:$0xf]
  %v186 = vld [vmem:[%s1 + $0x1b0] sm:$0xf]
  %v187 = vld [vmem:[%s1 + $0x1b4] sm:$0xf]
  %v188 = vld [vmem:[%s1 + $0x1b8] sm:$0xf]
  %v189 = vld [vmem:[%s1 + $0x1bc] sm:$0xf]
  %v190 = vld [vmem:[%s1 + $0x1c0] sm:$0xf]
  %v191 = vld [vmem:[%s1 + $0x1c4] sm:$0xf]
  %v192 = vld [vmem:[%s1 + $0x1c8] sm:$0xf]
  %v193 = vld [vmem:[%s1 + $0x1cc] sm:$0xf]
  %v194 = vld [vmem:[%s1 + $0x1d0] sm:$0xf]
  %v195 = vld [vmem:[%s1 + $0x1d4] sm:$0xf]
  %v196 = vld [vmem:[%s1 + $0x1d8] sm:$0xf]
  %v197 = vld [vmem:[%s1 + $0x1dc] sm:$0xf]
  %v198 = vld [vmem:[%s1 + $0x1e0] sm:$0xf]
  %v199 = vld [vmem:[%s1 + $0x1e4] sm:$0xf]
  %v200 = vld [vmem:[%s1 + $0x1e8] sm:$0xf]
  %v201 = vld [vmem:[%s1 + $0x1ec] sm:$0xf]
  %v202 = vld [vmem:[%s1 + $0x1f0] sm:$0xf]
  %v203 = vld [vmem:[%s1 + $0x1f4] sm:$0xf]
  %v204 = vld [vmem:[%s1 + $0x1f8] sm:$0xf]
  %v205 = vld [vmem:[%s1 + $0x1fc] sm:$0xf]
  %v270 = vunpack.c.l.b16 %v14
  %v271 = vunpack.c.h.b16 %v14
  %v272 = vunpack.c.l.b16 %v15
  %v273 = vunpack.c.h.b16 %v15
  %v274 = vunpack.c.l.b16 %v16
  %v275 = vunpack.c.h.b16 %v16
  %v276 = vunpack.c.l.b16 %v17
  %v277 = vunpack.c.h.b16 %v17
  %v278 = vunpack.c.l.b16 %v18
  %v279 = vunpack.c.h.b16 %v18
  %v280 = vunpack.c.l.b16 %v19
  %v281 = vunpack.c.h.b16 %v19
  %v282 = vunpack.c.l.b16 %v20
  %v283 = vunpack.c.h.b16 %v20
  %v284 = vunpack.c.l.b16 %v21
  %v285 = vunpack.c.h.b16 %v21
  %v286 = vunpack.c.l.b16 %v22
  %v287 = vunpack.c.h.b16 %v22
  %v288 = vunpack.c.l.b16 %v23
  %v289 = vunpack.c.h.b16 %v23
  %v290 = vunpack.c.l.b16 %v24
  %v291 = vunpack.c.h.b16 %v24
  %v292 = vunpack.c.l.b16 %v25
  %v293 = vunpack.c.h.b16 %v25
  %v294 = vunpack.c.l.b16 %v26
  %v295 = vunpack.c.h.b16 %v26
  %v296 = vunpack.c.l.b16 %v27
  %v297 = vunpack.c.h.b16 %v27
  %v298 = vunpack.c.l.b16 %v28
  %v299 = vunpack.c.h.b16 %v28
  %v300 = vunpack.c.l.b16 %v29
  %v301 = vunpack.c.h.b16 %v29
  %v302 = vunpack.c.l.b16 %v30
  %v303 = vunpack.c.h.b16 %v30
  %v304 = vunpack.c.l.b16 %v31
  %v305 = vunpack.c.h.b16 %v31
  %v306 = vunpack.c.l.b16 %v32
  %v307 = vunpack.c.h.b16 %v32
  %v308 = vunpack.c.l.b16 %v33
  %v309 = vunpack.c.h.b16 %v33
  %v310 = vunpack.c.l.b16 %v34
  %v311 = vunpack.c.h.b16 %v34
  %v312 = vunpack.c.l.b16 %v35
  %v313 = vunpack.c.h.b16 %v35
  %v314 = vunpack.c.l.b16 %v36
  %v315 = vunpack.c.h.b16 %v36
  %v316 = vunpack.c.l.b16 %v37
  %v317 = vunpack.c.h.b16 %v37
  %v318 = vunpack.c.l.b16 %v38
  %v319 = vunpack.c.h.b16 %v38
  %v320 = vunpack.c.l.b16 %v39
  %v321 = vunpack.c.h.b16 %v39
  %v322 = vunpack.c.l.b16 %v40
  %v323 = vunpack.c.h.b16 %v40
  %v324 = vunpack.c.l.b16 %v41
  %v325 = vunpack.c.h.b16 %v41
  %v326 = vunpack.c.l.b16 %v42
  %v327 = vunpack.c.h.b16 %v42
  %v328 = vunpack.c.l.b16 %v43
  %v329 = vunpack.c.h.b16 %v43
  %v330 = vunpack.c.l.b16 %v44
  %v331 = vunpack.c.h.b16 %v44
  %v332 = vunpack.c.l.b16 %v45
  %v333 = vunpack.c.h.b16 %v45
  %v334 = vunpack.c.l.b16 %v46
  %v335 = vunpack.c.h.b16 %v46
  %v336 = vunpack.c.l.b16 %v47
  %v337 = vunpack.c.h.b16 %v47
  %v338 = vunpack.c.l.b16 %v48
  %v339 = vunpack.c.h.b16 %v48
  %v340 = vunpack.c.l.b16 %v49
  %v341 = vunpack.c.h.b16 %v49
  %v342 = vunpack.c.l.b16 %v50
  %v343 = vunpack.c.h.b16 %v50
  %v344 = vunpack.c.l.b16 %v51
  %v345 = vunpack.c.h.b16 %v51
  %v346 = vunpack.c.l.b16 %v52
  %v347 = vunpack.c.h.b16 %v52
  %v348 = vunpack.c.l.b16 %v53
  %v349 = vunpack.c.h.b16 %v53
  %v350 = vunpack.c.l.b16 %v54
  %v351 = vunpack.c.h.b16 %v54
  %v352 = vunpack.c.l.b16 %v55
  %v353 = vunpack.c.h.b16 %v55
  %v354 = vunpack.c.l.b16 %v56
  %v355 = vunpack.c.h.b16 %v56
  %v356 = vunpack.c.l.b16 %v57
  %v357 = vunpack.c.h.b16 %v57
  %v358 = vunpack.c.l.b16 %v58
  %v359 = vunpack.c.h.b16 %v58
  %v360 = vunpack.c.l.b16 %v59
  %v361 = vunpack.c.h.b16 %v59
  %v362 = vunpack.c.l.b16 %v60
  %v363 = vunpack.c.h.b16 %v60
  %v364 = vunpack.c.l.b16 %v61
  %v365 = vunpack.c.h.b16 %v61
  %v366 = vunpack.c.l.b16 %v62
  %v367 = vunpack.c.h.b16 %v62
  %v368 = vunpack.c.l.b16 %v63
  %v369 = vunpack.c.h.b16 %v63
  %v370 = vunpack.c.l.b16 %v64
  %v371 = vunpack.c.h.b16 %v64
  %v372 = vunpack.c.l.b16 %v65
  %v373 = vunpack.c.h.b16 %v65
  %v374 = vunpack.c.l.b16 %v66
  %v375 = vunpack.c.h.b16 %v66
  %v376 = vunpack.c.l.b16 %v67
  %v377 = vunpack.c.h.b16 %v67
  %v378 = vunpack.c.l.b16 %v68
  %v379 = vunpack.c.h.b16 %v68
  %v380 = vunpack.c.l.b16 %v69
  %v381 = vunpack.c.h.b16 %v69
  %v382 = vunpack.c.l.b16 %v70
  %v383 = vunpack.c.h.b16 %v70
  %v384 = vunpack.c.l.b16 %v71
  %v385 = vunpack.c.h.b16 %v71
  %v386 = vunpack.c.l.b16 %v72
  %v387 = vunpack.c.h.b16 %v72
  %v388 = vunpack.c.l.b16 %v73
  %v389 = vunpack.c.h.b16 %v73
  %v390 = vunpack.c.l.b16 %v74
  %v391 = vunpack.c.h.b16 %v74
  %v392 = vunpack.c.l.b16 %v75
  %v393 = vunpack.c.h.b16 %v75
  %v394 = vunpack.c.l.b16 %v76
  %v395 = vunpack.c.h.b16 %v76
  %v396 = vunpack.c.l.b16 %v77
  %v397 = vunpack.c.h.b16 %v77
  %v398 = vpack.c.b16 %v278, %v270
  %v399 = vpack.c.b16 %v279, %v271
  %v400 = vpack.c.b16 %v280, %v272
  %v401 = vpack.c.b16 %v281, %v273
  %v402 = vpack.c.b16 %v282, %v274
  %v403 = vpack.c.b16 %v283, %v275
  %v404 = vpack.c.b16 %v284, %v276
  %v405 = vpack.c.b16 %v285, %v277
  %v406 = vpack.c.b16 %v294, %v286
  %v407 = vpack.c.b16 %v295, %v287
  %v408 = vpack.c.b16 %v296, %v288
  %v409 = vpack.c.b16 %v297, %v289
  %v410 = vpack.c.b16 %v298, %v290
  %v411 = vpack.c.b16 %v299, %v291
  %v412 = vpack.c.b16 %v300, %v292
  %v413 = vpack.c.b16 %v301, %v293
  %v414 = vpack.c.b16 %v310, %v302
  %v415 = vpack.c.b16 %v311, %v303
  %v416 = vpack.c.b16 %v312, %v304
  %v417 = vpack.c.b16 %v313, %v305
  %v418 = vpack.c.b16 %v314, %v306
  %v419 = vpack.c.b16 %v315, %v307
  %v420 = vpack.c.b16 %v316, %v308
  %v421 = vpack.c.b16 %v317, %v309
  %v422 = vpack.c.b16 %v326, %v318
  %v423 = vpack.c.b16 %v327, %v319
  %v424 = vpack.c.b16 %v328, %v320
  %v425 = vpack.c.b16 %v329, %v321
  %v426 = vpack.c.b16 %v330, %v322
  %v427 = vpack.c.b16 %v331, %v323
  %v428 = vpack.c.b16 %v332, %v324
  %v429 = vpack.c.b16 %v333, %v325
  %v430 = vpack.c.b16 %v342, %v334
  %v431 = vpack.c.b16 %v343, %v335
  %v432 = vpack.c.b16 %v344, %v336
  %v433 = vpack.c.b16 %v345, %v337
  %v434 = vpack.c.b16 %v346, %v338
  %v435 = vpack.c.b16 %v347, %v339
  %v436 = vpack.c.b16 %v348, %v340
  %v437 = vpack.c.b16 %v349, %v341
  %v438 = vpack.c.b16 %v358, %v350
  %v439 = vpack.c.b16 %v359, %v351
  %v440 = vpack.c.b16 %v360, %v352
  %v441 = vpack.c.b16 %v361, %v353
  %v442 = vpack.c.b16 %v362, %v354
  %v443 = vpack.c.b16 %v363, %v355
  %v444 = vpack.c.b16 %v364, %v356
  %v445 = vpack.c.b16 %v365, %v357
  %v446 = vpack.c.b16 %v374, %v366
  %v447 = vpack.c.b16 %v375, %v367
  %v448 = vpack.c.b16 %v376, %v368
  %v449 = vpack.c.b16 %v377, %v369
  %v450 = vpack.c.b16 %v378, %v370
  %v451 = vpack.c.b16 %v379, %v371
  %v452 = vpack.c.b16 %v380, %v372
  %v453 = vpack.c.b16 %v381, %v373
  %v454 = vpack.c.b16 %v390, %v382
  %v455 = vpack.c.b16 %v391, %v383
  %v456 = vpack.c.b16 %v392, %v384
  %v457 = vpack.c.b16 %v393, %v385
  %v458 = vpack.c.b16 %v394, %v386
  %v459 = vpack.c.b16 %v395, %v387
  %v460 = vpack.c.b16 %v396, %v388
  %v461 = vpack.c.b16 %v397, %v389
  %v654 = vunpack.c.l.b16 %v78
  %v655 = vunpack.c.l.b16 %v79
  %v656 = vunpack.c.l.b16 %v80
  %v657 = vunpack.c.l.b16 %v81
  %v658 = vunpack.c.l.b16 %v82
  %v659 = vunpack.c.l.b16 %v83
  %v660 = vunpack.c.l.b16 %v84
  %v661 = vunpack.c.l.b16 %v85
  %v662 = vunpack.c.l.b16 %v86
  %v663 = vunpack.c.l.b16 %v87
  %v664 = vunpack.c.l.b16 %v88
  %v665 = vunpack.c.l.b16 %v89
  %v666 = vunpack.c.l.b16 %v90
  %v667 = vunpack.c.l.b16 %v91
  %v668 = vunpack.c.l.b16 %v92
  %v669 = vunpack.c.l.b16 %v93
  %v670 = vunpack.c.l.b16 %v94
  %v671 = vunpack.c.l.b16 %v95
  %v672 = vunpack.c.l.b16 %v96
  %v673 = vunpack.c.l.b16 %v97
  %v674 = vunpack.c.l.b16 %v98
  %v675 = vunpack.c.l.b16 %v99
  %v676 = vunpack.c.l.b16 %v100
  %v677 = vunpack.c.l.b16 %v101
  %v678 = vunpack.c.l.b16 %v102
  %v679 = vunpack.c.l.b16 %v103
  %v680 = vunpack.c.l.b16 %v104
  %v681 = vunpack.c.l.b16 %v105
  %v682 = vunpack.c.l.b16 %v106
  %v683 = vunpack.c.l.b16 %v107
  %v684 = vunpack.c.l.b16 %v108
  %v685 = vunpack.c.l.b16 %v109
  %v686 = vunpack.c.l.b16 %v110
  %v687 = vunpack.c.l.b16 %v111
  %v688 = vunpack.c.l.b16 %v112
  %v689 = vunpack.c.l.b16 %v113
  %v690 = vunpack.c.l.b16 %v114
  %v691 = vunpack.c.l.b16 %v115
  %v692 = vunpack.c.l.b16 %v116
  %v693 = vunpack.c.l.b16 %v117
  %v694 = vunpack.c.l.b16 %v118
  %v695 = vunpack.c.l.b16 %v119
  %v696 = vunpack.c.l.b16 %v120
  %v697 = vunpack.c.l.b16 %v121
  %v698 = vunpack.c.l.b16 %v122
  %v699 = vunpack.c.l.b16 %v123
  %v700 = vunpack.c.l.b16 %v124
  %v701 = vunpack.c.l.b16 %v125
  %v702 = vunpack.c.l.b16 %v126
  %v703 = vunpack.c.l.b16 %v127
  %v704 = vunpack.c.l.b16 %v128
  %v705 = vunpack.c.l.b16 %v129
  %v706 = vunpack.c.l.b16 %v130
  %v707 = vunpack.c.l.b16 %v131
  %v708 = vunpack.c.l.b16 %v132
  %v709 = vunpack.c.l.b16 %v133
  %v710 = vunpack.c.l.b16 %v134
  %v711 = vunpack.c.l.b16 %v135
  %v712 = vunpack.c.l.b16 %v136
  %v713 = vunpack.c.l.b16 %v137
  %v714 = vunpack.c.l.b16 %v138
  %v715 = vunpack.c.l.b16 %v139
  %v716 = vunpack.c.l.b16 %v140
  %v717 = vunpack.c.l.b16 %v141
  %v718 = vunpack.c.l.b16 %v142
  %v719 = vunpack.c.l.b16 %v143
  %v720 = vunpack.c.l.b16 %v144
  %v721 = vunpack.c.l.b16 %v145
  %v722 = vunpack.c.l.b16 %v146
  %v723 = vunpack.c.l.b16 %v147
  %v724 = vunpack.c.l.b16 %v148
  %v725 = vunpack.c.l.b16 %v149
  %v726 = vunpack.c.l.b16 %v150
  %v727 = vunpack.c.l.b16 %v151
  %v728 = vunpack.c.l.b16 %v152
  %v729 = vunpack.c.l.b16 %v153
  %v730 = vunpack.c.l.b16 %v154
  %v731 = vunpack.c.l.b16 %v155
  %v732 = vunpack.c.l.b16 %v156
  %v733 = vunpack.c.l.b16 %v157
  %v734 = vunpack.c.l.b16 %v158
  %v735 = vunpack.c.l.b16 %v159
  %v736 = vunpack.c.l.b16 %v160
  %v737 = vunpack.c.l.b16 %v161
  %v738 = vunpack.c.l.b16 %v162
  %v739 = vunpack.c.l.b16 %v163
  %v740 = vunpack.c.l.b16 %v164
  %v741 = vunpack.c.l.b16 %v165
  %v742 = vunpack.c.l.b16 %v166
  %v743 = vunpack.c.l.b16 %v167
  %v744 = vunpack.c.l.b16 %v168
  %v745 = vunpack.c.l.b16 %v169
  %v746 = vunpack.c.l.b16 %v170
  %v747 = vunpack.c.l.b16 %v171
  %v748 = vunpack.c.l.b16 %v172
  %v749 = vunpack.c.l.b16 %v173
  %v750 = vunpack.c.l.b16 %v174
  %v751 = vunpack.c.l.b16 %v175
  %v752 = vunpack.c.l.b16 %v176
  %v753 = vunpack.c.l.b16 %v177
  %v754 = vunpack.c.l.b16 %v178
  %v755 = vunpack.c.l.b16 %v179
  %v756 = vunpack.c.l.b16 %v180
  %v757 = vunpack.c.l.b16 %v181
  %v758 = vunpack.c.l.b16 %v182
  %v759 = vunpack.c.l.b16 %v183
  %v760 = vunpack.c.l.b16 %v184
  %v761 = vunpack.c.l.b16 %v185
  %v762 = vunpack.c.l.b16 %v186
  %v763 = vunpack.c.l.b16 %v187
  %v764 = vunpack.c.l.b16 %v188
  %v765 = vunpack.c.l.b16 %v189
  %v766 = vunpack.c.l.b16 %v190
  %v767 = vunpack.c.l.b16 %v191
  %v768 = vunpack.c.l.b16 %v192
  %v769 = vunpack.c.l.b16 %v193
  %v770 = vunpack.c.l.b16 %v194
  %v771 = vunpack.c.l.b16 %v195
  %v772 = vunpack.c.l.b16 %v196
  %v773 = vunpack.c.l.b16 %v197
  %v774 = vunpack.c.l.b16 %v198
  %v775 = vunpack.c.l.b16 %v199
  %v776 = vunpack.c.l.b16 %v200
  %v777 = vunpack.c.l.b16 %v201
  %v778 = vunpack.c.l.b16 %v202
  %v779 = vunpack.c.l.b16 %v203
  %v780 = vunpack.c.l.b16 %v204
  %v781 = vunpack.c.l.b16 %v205
  %v782 = vpack.c.b16 %v655, %v654
  %v783 = vpack.c.b16 %v657, %v656
  %v784 = vpack.c.b16 %v659, %v658
  %v785 = vpack.c.b16 %v661, %v660
  %v786 = vpack.c.b16 %v663, %v662
  %v787 = vpack.c.b16 %v665, %v664
  %v788 = vpack.c.b16 %v667, %v666
  %v789 = vpack.c.b16 %v669, %v668
  %v790 = vpack.c.b16 %v671, %v670
  %v791 = vpack.c.b16 %v673, %v672
  %v792 = vpack.c.b16 %v675, %v674
  %v793 = vpack.c.b16 %v677, %v676
  %v794 = vpack.c.b16 %v679, %v678
  %v795 = vpack.c.b16 %v681, %v680
  %v796 = vpack.c.b16 %v683, %v682
  %v797 = vpack.c.b16 %v685, %v684
  %v798 = vpack.c.b16 %v687, %v686
  %v799 = vpack.c.b16 %v689, %v688
  %v800 = vpack.c.b16 %v691, %v690
  %v801 = vpack.c.b16 %v693, %v692
  %v802 = vpack.c.b16 %v695, %v694
  %v803 = vpack.c.b16 %v697, %v696
  %v804 = vpack.c.b16 %v699, %v698
  %v805 = vpack.c.b16 %v701, %v700
  %v806 = vpack.c.b16 %v703, %v702
  %v807 = vpack.c.b16 %v705, %v704
  %v808 = vpack.c.b16 %v707, %v706
  %v809 = vpack.c.b16 %v709, %v708
  %v810 = vpack.c.b16 %v711, %v710
  %v811 = vpack.c.b16 %v713, %v712
  %v812 = vpack.c.b16 %v715, %v714
  %v813 = vpack.c.b16 %v717, %v716
  %v814 = vpack.c.b16 %v719, %v718
  %v815 = vpack.c.b16 %v721, %v720
  %v816 = vpack.c.b16 %v723, %v722
  %v817 = vpack.c.b16 %v725, %v724
  %v818 = vpack.c.b16 %v727, %v726
  %v819 = vpack.c.b16 %v729, %v728
  %v820 = vpack.c.b16 %v731, %v730
  %v821 = vpack.c.b16 %v733, %v732
  %v822 = vpack.c.b16 %v735, %v734
  %v823 = vpack.c.b16 %v737, %v736
  %v824 = vpack.c.b16 %v739, %v738
  %v825 = vpack.c.b16 %v741, %v740
  %v826 = vpack.c.b16 %v743, %v742
  %v827 = vpack.c.b16 %v745, %v744
  %v828 = vpack.c.b16 %v747, %v746
  %v829 = vpack.c.b16 %v749, %v748
  %v830 = vpack.c.b16 %v751, %v750
  %v831 = vpack.c.b16 %v753, %v752
  %v832 = vpack.c.b16 %v755, %v754
  %v833 = vpack.c.b16 %v757, %v756
  %v834 = vpack.c.b16 %v759, %v758
  %v835 = vpack.c.b16 %v761, %v760
  %v836 = vpack.c.b16 %v763, %v762
  %v837 = vpack.c.b16 %v765, %v764
  %v838 = vpack.c.b16 %v767, %v766
  %v839 = vpack.c.b16 %v769, %v768
  %v840 = vpack.c.b16 %v771, %v770
  %v841 = vpack.c.b16 %v773, %v772
  %v842 = vpack.c.b16 %v775, %v774
  %v843 = vpack.c.b16 %v777, %v776
  %v844 = vpack.c.b16 %v779, %v778
  %v845 = vpack.c.b16 %v781, %v780
  %910 = vmatprep.subr.bf16.mxu0 0
  %911 = vmatpush1.bf16.msra.mxu0 %v782
  %912 = vmatprep.subr.bf16.mxu0 0
  %913 = vmatpush1.bf16.msra.mxu0 %v783
  %914 = vmatprep.subr.bf16.mxu0 0
  %915 = vmatpush1.bf16.msra.mxu0 %v784
  %916 = vmatprep.subr.bf16.mxu0 0
  %917 = vmatpush1.bf16.msra.mxu0 %v785
  %918 = vmatprep.subr.bf16.mxu0 0
  %919 = vmatpush1.bf16.msra.mxu0 %v786
  %920 = vmatprep.subr.bf16.mxu0 0
  %921 = vmatpush1.bf16.msra.mxu0 %v787
  %922 = vmatprep.subr.bf16.mxu0 0
  %923 = vmatpush1.bf16.msra.mxu0 %v788
  %924 = vmatprep.subr.bf16.mxu0 0
  %925 = vmatpush1.bf16.msra.mxu0 %v789
  %926 = vmatprep.subr.bf16.mxu0 0
  %927 = vmatpush1.bf16.msra.mxu0 %v790
  %928 = vmatprep.subr.bf16.mxu0 0
  %929 = vmatpush1.bf16.msra.mxu0 %v791
  %930 = vmatprep.subr.bf16.mxu0 0
  %931 = vmatpush1.bf16.msra.mxu0 %v792
  %932 = vmatprep.subr.bf16.mxu0 0
  %933 = vmatpush1.bf16.msra.mxu0 %v793
  %934 = vmatprep.subr.bf16.mxu0 0
  %935 = vmatpush1.bf16.msra.mxu0 %v794
  %936 = vmatprep.subr.bf16.mxu0 0
  %937 = vmatpush1.bf16.msra.mxu0 %v795
  %938 = vmatprep.subr.bf16.mxu0 0
  %939 = vmatpush1.bf16.msra.mxu0 %v796
  %940 = vmatprep.subr.bf16.mxu0 0
  %941 = vmatpush1.bf16.msra.mxu0 %v797
  %942 = vmatprep.mubr.bf16.mxu0 %v399
  %943 = vmatmul.mubr.bf16.gmra.mrb[0].mxu0 %v398
  %v944 = vpop.f32.mrb[0].mxu0
  %v945 = vadd.f32 0.0, %v944
  %v946 = vpop.f32.mrb[0].mxu0
  %v947 = vpop.f32.mrb[0].mxu0
  %v948 = vadd.f32 0.0, %v947
  %v949 = vpop.f32.mrb[0].mxu0
  %950 = vmatprep.mubr.bf16.mxu0 %v407
  %951 = vmatmul.mubr.bf16.gmra.mrb[0].mxu0 %v406
  %v952 = vpop.f32.mrb[0].mxu0
  %v953 = vadd.f32 0.0, %v952
  %v954 = vpop.f32.mrb[0].mxu0
  %v955 = vpop.f32.mrb[0].mxu0
  %v956 = vadd.f32 0.0, %v955
  %v957 = vpop.f32.mrb[0].mxu0
  %958 = vmatprep.mubr.bf16.mxu0 %v415
  %959 = vmatmul.mubr.bf16.gmra.mrb[0].mxu0 %v414
  %v960 = vpop.f32.mrb[0].mxu0
  %v961 = vadd.f32 0.0, %v960
  %v962 = vpop.f32.mrb[0].mxu0
  %v963 = vpop.f32.mrb[0].mxu0
  %v964 = vadd.f32 0.0, %v963
  %v965 = vpop.f32.mrb[0].mxu0
  %966 = vmatprep.mubr.bf16.mxu0 %v423
  %967 = vmatmul.mubr.bf16.gmra.mrb[0].mxu0 %v422
  %v968 = vpop.f32.mrb[0].mxu0
  %v969 = vadd.f32 0.0, %v968
  %v970 = vpop.f32.mrb[0].mxu0
  %v971 = vpop.f32.mrb[0].mxu0
  %v972 = vadd.f32 0.0, %v971
  %v973 = vpop.f32.mrb[0].mxu0
  %974 = vmatprep.mubr.bf16.mxu0 %v431
  %975 = vmatmul.mubr.bf16.gmra.mrb[0].mxu0 %v430
  %v976 = vpop.f32.mrb[0].mxu0
  %v977 = vadd.f32 0.0, %v976
  %v978 = vpop.f32.mrb[0].mxu0
  %v979 = vpop.f32.mrb[0].mxu0
  %v980 = vadd.f32 0.0, %v979
  %v981 = vpop.f32.mrb[0].mxu0
  %982 = vmatprep.mubr.bf16.mxu0 %v439
  %983 = vmatmul.mubr.bf16.gmra.mrb[0].mxu0 %v438
  %v984 = vpop.f32.mrb[0].mxu0
  %v985 = vadd.f32 0.0, %v984
  %v986 = vpop.f32.mrb[0].mxu0
  %v987 = vpop.f32.mrb[0].mxu0
  %v988 = vadd.f32 0.0, %v987
  %v989 = vpop.f32.mrb[0].mxu0
  %990 = vmatprep.mubr.bf16.mxu0 %v447
  %991 = vmatmul.mubr.bf16.gmra.mrb[0].mxu0 %v446
  %v992 = vpop.f32.mrb[0].mxu0
  %v993 = vadd.f32 0.0, %v992
  %v994 = vpop.f32.mrb[0].mxu0
  %v995 = vpop.f32.mrb[0].mxu0
  %v996 = vadd.f32 0.0, %v995
  %v997 = vpop.f32.mrb[0].mxu0
  %998 = vmatprep.mubr.bf16.mxu0 %v455
  %999 = vmatmul.mubr.bf16.gmra.mrb[0].mxu0 %v454
  %v1000 = vpop.f32.mrb[0].mxu0
  %v1001 = vadd.f32 0.0, %v1000
  %v1002 = vpop.f32.mrb[0].mxu0
  %v1003 = vpop.f32.mrb[0].mxu0
  %v1004 = vadd.f32 0.0, %v1003
  %v1005 = vpop.f32.mrb[0].mxu0
  %1006 = vdwg.mxu0
  %1007 = vmatprep.subr.bf16.mxu0 0
  %1008 = vmatpush1.bf16.msra.mxu0 %v798
  %1009 = vmatprep.subr.bf16.mxu0 0
  %1010 = vmatpush1.bf16.msra.mxu0 %v799
  %1011 = vmatprep.subr.bf16.mxu0 0
  %1012 = vmatpush1.bf16.msra.mxu0 %v800
  %1013 = vmatprep.subr.bf16.mxu0 0
  %1014 = vmatpush1.bf16.msra.mxu0 %v801
  %1015 = vmatprep.subr.bf16.mxu0 0
  %1016 = vmatpush1.bf16.msra.mxu0 %v802
  %1017 = vmatprep.subr.bf16.mxu0 0
  %1018 = vmatpush1.bf16.msra.mxu0 %v803
  %1019 = vmatprep.subr.bf16.mxu0 0
  %1020 = vmatpush1.bf16.msra.mxu0 %v804
  %1021 = vmatprep.subr.bf16.mxu0 0
  %1022 = vmatpush1.bf16.msra.mxu0 %v805
  %1023 = vmatprep.subr.bf16.mxu0 0
  %1024 = vmatpush1.bf16.msra.mxu0 %v806
  %1025 = vmatprep.subr.bf16.mxu0 0
  %1026 = vmatpush1.bf16.msra.mxu0 %v807
  %1027 = vmatprep.subr.bf16.mxu0 0
  %1028 = vmatpush1.bf16.msra.mxu0 %v808
  %1029 = vmatprep.subr.bf16.mxu0 0
  %1030 = vmatpush1.bf16.msra.mxu0 %v809
  %1031 = vmatprep.subr.bf16.mxu0 0
  %1032 = vmatpush1.bf16.msra.mxu0 %v810
  %1033 = vmatprep.subr.bf16.mxu0 0
  %1034 = vmatpush1.bf16.msra.mxu0 %v811
  %1035 = vmatprep.subr.bf16.mxu0 0
  %1036 = vmatpush1.bf16.msra.mxu0 %v812
  %1037 = vmatprep.subr.bf16.mxu0 0
  %1038 = vmatpush1.bf16.msra.mxu0 %v813
  %1039 = vmatprep.mubr.bf16.mxu0 %v401
  %1040 = vmatmul.mubr.bf16.gmra.mrb[0].mxu0 %v400
  %v1041 = vpop.f32.mrb[0].mxu0
  %v1042 = vadd.f32 %v945, %v1041
  %v1043 = vpop.f32.mrb[0].mxu0
  %v1044 = vpop.f32.mrb[0].mxu0
  %v1045 = vadd.f32 %v948, %v1044
  %v1046 = vpop.f32.mrb[0].mxu0
  %1047 = vmatprep.mubr.bf16.mxu0 %v409
  %1048 = vmatmul.mubr.bf16.gmra.mrb[0].mxu0 %v408
  %v1049 = vpop.f32.mrb[0].mxu0
  %v1050 = vadd.f32 %v953, %v1049
  %v1051 = vpop.f32.mrb[0].mxu0
  %v1052 = vpop.f32.mrb[0].mxu0
  %v1053 = vadd.f32 %v956, %v1052
  %v1054 = vpop.f32.mrb[0].mxu0
  %1055 = vmatprep.mubr.bf16.mxu0 %v417
  %1056 = vmatmul.mubr.bf16.gmra.mrb[0].mxu0 %v416
  %v1057 = vpop.f32.mrb[0].mxu0
  %v1058 = vadd.f32 %v961, %v1057
  %v1059 = vpop.f32.mrb[0].mxu0
  %v1060 = vpop.f32.mrb[0].mxu0
  %v1061 = vadd.f32 %v964, %v1060
  %v1062 = vpop.f32.mrb[0].mxu0
  %1063 = vmatprep.mubr.bf16.mxu0 %v425
  %1064 = vmatmul.mubr.bf16.gmra.mrb[0].mxu0 %v424
  %v1065 = vpop.f32.mrb[0].mxu0
  %v1066 = vadd.f32 %v969, %v1065
  %v1067 = vpop.f32.mrb[0].mxu0
  %v1068 = vpop.f32.mrb[0].mxu0
  %v1069 = vadd.f32 %v972, %v1068
  %v1070 = vpop.f32.mrb[0].mxu0
  %1071 = vmatprep.mubr.bf16.mxu0 %v433
  %1072 = vmatmul.mubr.bf16.gmra.mrb[0].mxu0 %v432
  %v1073 = vpop.f32.mrb[0].mxu0
  %v1074 = vadd.f32 %v977, %v1073
  %v1075 = vpop.f32.mrb[0].mxu0
  %v1076 = vpop.f32.mrb[0].mxu0
  %v1077 = vadd.f32 %v980, %v1076
  %v1078 = vpop.f32.mrb[0].mxu0
  %1079 = vmatprep.mubr.bf16.mxu0 %v441
  %1080 = vmatmul.mubr.bf16.gmra.mrb[0].mxu0 %v440
  %v1081 = vpop.f32.mrb[0].mxu0
  %v1082 = vadd.f32 %v985, %v1081
  %v1083 = vpop.f32.mrb[0].mxu0
  %v1084 = vpop.f32.mrb[0].mxu0
  %v1085 = vadd.f32 %v988, %v1084
  %v1086 = vpop.f32.mrb[0].mxu0
  %1087 = vmatprep.mubr.bf16.mxu0 %v449
  %1088 = vmatmul.mubr.bf16.gmra.mrb[0].mxu0 %v448
  %v1089 = vpop.f32.mrb[0].mxu0
  %v1090 = vadd.f32 %v993, %v1089
  %v1091 = vpop.f32.mrb[0].mxu0
  %v1092 = vpop.f32.mrb[0].mxu0
  %v1093 = vadd.f32 %v996, %v1092
  %v1094 = vpop.f32.mrb[0].mxu0
  %1095 = vmatprep.mubr.bf16.mxu0 %v457
  %1096 = vmatmul.mubr.bf16.gmra.mrb[0].mxu0 %v456
  %v1097 = vpop.f32.mrb[0].mxu0
  %v1098 = vadd.f32 %v1001, %v1097
  %v1099 = vpop.f32.mrb[0].mxu0
  %v1100 = vpop.f32.mrb[0].mxu0
  %v1101 = vadd.f32 %v1004, %v1100
  %v1102 = vpop.f32.mrb[0].mxu0
  %1103 = vdwg.mxu0
  %1104 = vmatprep.subr.bf16.mxu0 0
  %1105 = vmatpush1.bf16.msra.mxu0 %v814
  %1106 = vmatprep.subr.bf16.mxu0 0
  %1107 = vmatpush1.bf16.msra.mxu0 %v815
  %1108 = vmatprep.subr.bf16.mxu0 0
  %1109 = vmatpush1.bf16.msra.mxu0 %v816
  %1110 = vmatprep.subr.bf16.mxu0 0
  %1111 = vmatpush1.bf16.msra.mxu0 %v817
  %1112 = vmatprep.subr.bf16.mxu0 0
  %1113 = vmatpush1.bf16.msra.mxu0 %v818
  %1114 = vmatprep.subr.bf16.mxu0 0
  %1115 = vmatpush1.bf16.msra.mxu0 %v819
  %1116 = vmatprep.subr.bf16.mxu0 0
  %1117 = vmatpush1.bf16.msra.mxu0 %v820
  %1118 = vmatprep.subr.bf16.mxu0 0
  %1119 = vmatpush1.bf16.msra.mxu0 %v821
  %1120 = vmatprep.subr.bf16.mxu0 0
  %1121 = vmatpush1.bf16.msra.mxu0 %v822
  %1122 = vmatprep.subr.bf16.mxu0 0
  %1123 = vmatpush1.bf16.msra.mxu0 %v823
  %1124 = vmatprep.subr.bf16.mxu0 0
  %1125 = vmatpush1.bf16.msra.mxu0 %v824
  %1126 = vmatprep.subr.bf16.mxu0 0
  %1127 = vmatpush1.bf16.msra.mxu0 %v825
  %1128 = vmatprep.subr.bf16.mxu0 0
  %1129 = vmatpush1.bf16.msra.mxu0 %v826
  %1130 = vmatprep.subr.bf16.mxu0 0
  %1131 = vmatpush1.bf16.msra.mxu0 %v827
  %1132 = vmatprep.subr.bf16.mxu0 0
  %1133 = vmatpush1.bf16.msra.mxu0 %v828
  %1134 = vmatprep.subr.bf16.mxu0 0
  %1135 = vmatpush1.bf16.msra.mxu0 %v829
  %1136 = vmatprep.mubr.bf16.mxu0 %v403
  %1137 = vmatmul.mubr.bf16.gmra.mrb[0].mxu0 %v402
  %v1138 = vpop.f32.mrb[0].mxu0
  %v1139 = vadd.f32 %v1042, %v1138
  %v1140 = vpop.f32.mrb[0].mxu0
  %v1141 = vpop.f32.mrb[0].mxu0
  %v1142 = vadd.f32 %v1045, %v1141
  %v1143 = vpop.f32.mrb[0].mxu0
  %1144 = vmatprep.mubr.bf16.mxu0 %v411
  %1145 = vmatmul.mubr.bf16.gmra.mrb[0].mxu0 %v410
  %v1146 = vpop.f32.mrb[0].mxu0
  %v1147 = vadd.f32 %v1050, %v1146
  %v1148 = vpop.f32.mrb[0].mxu0
  %v1149 = vpop.f32.mrb[0].mxu0
  %v1150 = vadd.f32 %v1053, %v1149
  %v1151 = vpop.f32.mrb[0].mxu0
  %1152 = vmatprep.mubr.bf16.mxu0 %v419
  %1153 = vmatmul.mubr.bf16.gmra.mrb[0].mxu0 %v418
  %v1154 = vpop.f32.mrb[0].mxu0
  %v1155 = vadd.f32 %v1058, %v1154
  %v1156 = vpop.f32.mrb[0].mxu0
  %v1157 = vpop.f32.mrb[0].mxu0
  %v1158 = vadd.f32 %v1061, %v1157
  %v1159 = vpop.f32.mrb[0].mxu0
  %1160 = vmatprep.mubr.bf16.mxu0 %v427
  %1161 = vmatmul.mubr.bf16.gmra.mrb[0].mxu0 %v426
  %v1162 = vpop.f32.mrb[0].mxu0
  %v1163 = vadd.f32 %v1066, %v1162
  %v1164 = vpop.f32.mrb[0].mxu0
  %v1165 = vpop.f32.mrb[0].mxu0
  %v1166 = vadd.f32 %v1069, %v1165
  %v1167 = vpop.f32.mrb[0].mxu0
  %1168 = vmatprep.mubr.bf16.mxu0 %v435
  %1169 = vmatmul.mubr.bf16.gmra.mrb[0].mxu0 %v434
  %v1170 = vpop.f32.mrb[0].mxu0
  %v1171 = vadd.f32 %v1074, %v1170
  %v1172 = vpop.f32.mrb[0].mxu0
  %v1173 = vpop.f32.mrb[0].mxu0
  %v1174 = vadd.f32 %v1077, %v1173
  %v1175 = vpop.f32.mrb[0].mxu0
  %1176 = vmatprep.mubr.bf16.mxu0 %v443
  %1177 = vmatmul.mubr.bf16.gmra.mrb[0].mxu0 %v442
  %v1178 = vpop.f32.mrb[0].mxu0
  %v1179 = vadd.f32 %v1082, %v1178
  %v1180 = vpop.f32.mrb[0].mxu0
  %v1181 = vpop.f32.mrb[0].mxu0
  %v1182 = vadd.f32 %v1085, %v1181
  %v1183 = vpop.f32.mrb[0].mxu0
  %1184 = vmatprep.mubr.bf16.mxu0 %v451
  %1185 = vmatmul.mubr.bf16.gmra.mrb[0].mxu0 %v450
  %v1186 = vpop.f32.mrb[0].mxu0
  %v1187 = vadd.f32 %v1090, %v1186
  %v1188 = vpop.f32.mrb[0].mxu0
  %v1189 = vpop.f32.mrb[0].mxu0
  %v1190 = vadd.f32 %v1093, %v1189
  %v1191 = vpop.f32.mrb[0].mxu0
  %1192 = vmatprep.mubr.bf16.mxu0 %v459
  %1193 = vmatmul.mubr.bf16.gmra.mrb[0].mxu0 %v458
  %v1194 = vpop.f32.mrb[0].mxu0
  %v1195 = vadd.f32 %v1098, %v1194
  %v1196 = vpop.f32.mrb[0].mxu0
  %v1197 = vpop.f32.mrb[0].mxu0
  %v1198 = vadd.f32 %v1101, %v1197
  %v1199 = vpop.f32.mrb[0].mxu0
  %1200 = vdwg.mxu0
  %1201 = vmatprep.subr.bf16.mxu0 0
  %1202 = vmatpush1.bf16.msra.mxu0 %v830
  %1203 = vmatprep.subr.bf16.mxu0 0
  %1204 = vmatpush1.bf16.msra.mxu0 %v831
  %1205 = vmatprep.subr.bf16.mxu0 0
  %1206 = vmatpush1.bf16.msra.mxu0 %v832
  %1207 = vmatprep.subr.bf16.mxu0 0
  %1208 = vmatpush1.bf16.msra.mxu0 %v833
  %1209 = vmatprep.subr.bf16.mxu0 0
  %1210 = vmatpush1.bf16.msra.mxu0 %v834
  %1211 = vmatprep.subr.bf16.mxu0 0
  %1212 = vmatpush1.bf16.msra.mxu0 %v835
  %1213 = vmatprep.subr.bf16.mxu0 0
  %1214 = vmatpush1.bf16.msra.mxu0 %v836
  %1215 = vmatprep.subr.bf16.mxu0 0
  %1216 = vmatpush1.bf16.msra.mxu0 %v837
  %1217 = vmatprep.subr.bf16.mxu0 0
  %1218 = vmatpush1.bf16.msra.mxu0 %v838
  %1219 = vmatprep.subr.bf16.mxu0 0
  %1220 = vmatpush1.bf16.msra.mxu0 %v839
  %1221 = vmatprep.subr.bf16.mxu0 0
  %1222 = vmatpush1.bf16.msra.mxu0 %v840
  %1223 = vmatprep.subr.bf16.mxu0 0
  %1224 = vmatpush1.bf16.msra.mxu0 %v841
  %1225 = vmatprep.subr.bf16.mxu0 0
  %1226 = vmatpush1.bf16.msra.mxu0 %v842
  %1227 = vmatprep.subr.bf16.mxu0 0
  %1228 = vmatpush1.bf16.msra.mxu0 %v843
  %1229 = vmatprep.subr.bf16.mxu0 0
  %1230 = vmatpush1.bf16.msra.mxu0 %v844
  %1231 = vmatprep.subr.bf16.mxu0 0
  %1232 = vmatpush1.bf16.msra.mxu0 %v845
  %1233 = vmatprep.mubr.bf16.mxu0 %v405
  %1234 = vmatmul.mubr.bf16.gmra.mrb[0].mxu0 %v404
  %v1235 = vpop.f32.mrb[0].mxu0
  %v1236 = vadd.f32 %v1139, %v1235
  %v1237 = vpop.f32.mrb[0].mxu0
  %v1238 = vpop.f32.mrb[0].mxu0
  %v1239 = vadd.f32 %v1142, %v1238
  %v1240 = vpop.f32.mrb[0].mxu0
  %1241 = vmatprep.mubr.bf16.mxu0 %v413
  %1242 = vmatmul.mubr.bf16.gmra.mrb[0].mxu0 %v412
  %v1243 = vpop.f32.mrb[0].mxu0
  %v1244 = vadd.f32 %v1147, %v1243
  %v1245 = vpop.f32.mrb[0].mxu0
  %v1246 = vpop.f32.mrb[0].mxu0
  %v1247 = vadd.f32 %v1150, %v1246
  %v1248 = vpop.f32.mrb[0].mxu0
  %1249 = vmatprep.mubr.bf16.mxu0 %v421
  %1250 = vmatmul.mubr.bf16.gmra.mrb[0].mxu0 %v420
  %v1251 = vpop.f32.mrb[0].mxu0
  %v1252 = vadd.f32 %v1155, %v1251
  %v1253 = vpop.f32.mrb[0].mxu0
  %v1254 = vpop.f32.mrb[0].mxu0
  %v1255 = vadd.f32 %v1158, %v1254
  %v1256 = vpop.f32.mrb[0].mxu0
  %1257 = vmatprep.mubr.bf16.mxu0 %v429
  %1258 = vmatmul.mubr.bf16.gmra.mrb[0].mxu0 %v428
  %v1259 = vpop.f32.mrb[0].mxu0
  %v1260 = vadd.f32 %v1163, %v1259
  %v1261 = vpop.f32.mrb[0].mxu0
  %v1262 = vpop.f32.mrb[0].mxu0
  %v1263 = vadd.f32 %v1166, %v1262
  %v1264 = vpop.f32.mrb[0].mxu0
  %1265 = vmatprep.mubr.bf16.mxu0 %v437
  %1266 = vmatmul.mubr.bf16.gmra.mrb[0].mxu0 %v436
  %v1267 = vpop.f32.mrb[0].mxu0
  %v1268 = vadd.f32 %v1171, %v1267
  %v1269 = vpop.f32.mrb[0].mxu0
  %v1270 = vpop.f32.mrb[0].mxu0
  %v1271 = vadd.f32 %v1174, %v1270
  %v1272 = vpop.f32.mrb[0].mxu0
  %1273 = vmatprep.mubr.bf16.mxu0 %v445
  %1274 = vmatmul.mubr.bf16.gmra.mrb[0].mxu0 %v444
  %v1275 = vpop.f32.mrb[0].mxu0
  %v1276 = vadd.f32 %v1179, %v1275
  %v1277 = vpop.f32.mrb[0].mxu0
  %v1278 = vpop.f32.mrb[0].mxu0
  %v1279 = vadd.f32 %v1182, %v1278
  %v1280 = vpop.f32.mrb[0].mxu0
  %1281 = vmatprep.mubr.bf16.mxu0 %v453
  %1282 = vmatmul.mubr.bf16.gmra.mrb[0].mxu0 %v452
  %v1283 = vpop.f32.mrb[0].mxu0
  %v1284 = vadd.f32 %v1187, %v1283
  %v1285 = vpop.f32.mrb[0].mxu0
  %v1286 = vpop.f32.mrb[0].mxu0
  %v1287 = vadd.f32 %v1190, %v1286
  %v1288 = vpop.f32.mrb[0].mxu0
  %1289 = vmatprep.mubr.bf16.mxu0 %v461
  %1290 = vmatmul.mubr.bf16.gmra.mrb[0].mxu0 %v460
  %v1291 = vpop.f32.mrb[0].mxu0
  %v1292 = vadd.f32 %v1195, %v1291
  %v1293 = vpop.f32.mrb[0].mxu0
  %v1294 = vpop.f32.mrb[0].mxu0
  %v1295 = vadd.f32 %v1198, %v1294
  %v1296 = vpop.f32.mrb[0].mxu0
  %1297 = vdwg.mxu0
  %v1298 = vpack.c.bf16 %v1239, %v1236
  %v1299 = vpack.c.bf16 %v1247, %v1244
  %v1300 = vpack.c.bf16 %v1255, %v1252
  %v1301 = vpack.c.bf16 %v1263, %v1260
  %v1302 = vpack.c.bf16 %v1271, %v1268
  %v1303 = vpack.c.bf16 %v1279, %v1276
  %v1304 = vpack.c.bf16 %v1287, %v1284
  %v1305 = vpack.c.bf16 %v1295, %v1292
  %v1314 = vunpack.c.l.b16 %v1298
  %v1315 = vunpack.c.h.b16 %v1298
  %v1316 = vunpack.c.l.b16 %v1299
  %v1317 = vunpack.c.h.b16 %v1299
  %v1318 = vunpack.c.l.b16 %v1300
  %v1319 = vunpack.c.h.b16 %v1300
  %v1320 = vunpack.c.l.b16 %v1301
  %v1321 = vunpack.c.h.b16 %v1301
  %v1322 = vunpack.c.l.b16 %v1302
  %v1323 = vunpack.c.h.b16 %v1302
  %v1324 = vunpack.c.l.b16 %v1303
  %v1325 = vunpack.c.h.b16 %v1303
  %v1326 = vunpack.c.l.b16 %v1304
  %v1327 = vunpack.c.h.b16 %v1304
  %v1328 = vunpack.c.l.b16 %v1305
  %v1329 = vunpack.c.h.b16 %v1305
  %v1330 = vpack.c.b16 %v1314, %v1314
  %v1331 = vpack.c.b16 %v1315, %v1315
  %v1332 = vpack.c.b16 %v1316, %v1316
  %v1333 = vpack.c.b16 %v1317, %v1317
  %v1334 = vpack.c.b16 %v1318, %v1318
  %v1335 = vpack.c.b16 %v1319, %v1319
  %v1336 = vpack.c.b16 %v1320, %v1320
  %v1337 = vpack.c.b16 %v1321, %v1321
  %v1338 = vpack.c.b16 %v1322, %v1322
  %v1339 = vpack.c.b16 %v1323, %v1323
  %v1340 = vpack.c.b16 %v1324, %v1324
  %v1341 = vpack.c.b16 %v1325, %v1325
  %v1342 = vpack.c.b16 %v1326, %v1326
  %v1343 = vpack.c.b16 %v1327, %v1327
  %v1344 = vpack.c.b16 %v1328, %v1328
  %v1345 = vpack.c.b16 %v1329, %v1329
  %1362 = vst [vmem:[%s2] sm:$0xf] %v1330
  %1363 = vst [vmem:[%s2 + $0x4] sm:$0xf] %v1331
  %1364 = vst [vmem:[%s2 + $0x8] sm:$0xf] %v1332
  %1365 = vst [vmem:[%s2 + $0xc] sm:$0xf] %v1333
  %1366 = vst [vmem:[%s2 + $0x10] sm:$0xf] %v1334
  %1367 = vst [vmem:[%s2 + $0x14] sm:$0xf] %v1335
  %1368 = vst [vmem:[%s2 + $0x18] sm:$0xf] %v1336
  %1369 = vst [vmem:[%s2 + $0x1c] sm:$0xf] %v1337
  %1370 = vst [vmem:[%s2 + $0x20] sm:$0xf] %v1338
  %1371 = vst [vmem:[%s2 + $0x24] sm:$0xf] %v1339
  %1372 = vst [vmem:[%s2 + $0x28] sm:$0xf] %v1340
  %1373 = vst [vmem:[%s2 + $0x2c] sm:$0xf] %v1341
  %1374 = vst [vmem:[%s2 + $0x30] sm:$0xf] %v1342
  %1375 = vst [vmem:[%s2 + $0x34] sm:$0xf] %v1343
  %1376 = vst [vmem:[%s2 + $0x38] sm:$0xf] %v1344
  %1377 = vst [vmem:[%s2 + $0x3c] sm:$0xf] %v1345
  %v1378 = vunpack.c.l.bf16 %v1298
  %v1379 = vunpack.c.h.bf16 %v1298
  %v1380 = vunpack.c.l.bf16 %v1299
  %v1381 = vunpack.c.h.bf16 %v1299
  %v1382 = vunpack.c.l.bf16 %v1300
  %v1383 = vunpack.c.h.bf16 %v1300
  %v1384 = vunpack.c.l.bf16 %v1301
  %v1385 = vunpack.c.h.bf16 %v1301
  %v1386 = vunpack.c.l.bf16 %v1302
  %v1387 = vunpack.c.h.bf16 %v1302
  %v1388 = vunpack.c.l.bf16 %v1303
  %v1389 = vunpack.c.h.bf16 %v1303
  %v1390 = vunpack.c.l.bf16 %v1304
  %v1391 = vunpack.c.h.bf16 %v1304
  %v1392 = vunpack.c.l.bf16 %v1305
  %v1393 = vunpack.c.h.bf16 %v1305
  %v1394 = vadd.f32 %v1378, %v1379
  %v1395 = vadd.f32 %v1394, %v1380
  %v1396 = vadd.f32 %v1395, %v1381
  %v1397 = vadd.f32 %v1396, %v1382
  %v1398 = vadd.f32 %v1397, %v1383
  %v1399 = vadd.f32 %v1398, %v1384
  %v1400 = vadd.f32 %v1399, %v1385
  %v1401 = vadd.f32 %v1400, %v1386
  %v1402 = vadd.f32 %v1401, %v1387
  %v1403 = vadd.f32 %v1402, %v1388
  %v1404 = vadd.f32 %v1403, %v1389
  %v1405 = vadd.f32 %v1404, %v1390
  %v1406 = vadd.f32 %v1405, %v1391
  %v1407 = vadd.f32 %v1406, %v1392
  %v1408 = vadd.f32 %v1407, %v1393
  %v1409 = vrot.slane %v1408, 4
  %v1410 = vadd.f32 %v1408, %v1409
  %v1411 = vrot.slane %v1410, 2
  %v1412 = vadd.f32 %v1410, %v1411
  %v1413 = vrot.slane %v1412, 1
  %v1414 = vadd.f32 %v1412, %v1413
  %1415 = vst [vmem:[%s3] sm:$0x1] %v1414
  %v1416 = vmul.f32 %v1378, %v1378
  %v1417 = vmul.f32 %v1379, %v1379
  %v1418 = vmul.f32 %v1380, %v1380
  %v1419 = vmul.f32 %v1381, %v1381
  %v1420 = vmul.f32 %v1382, %v1382
  %v1421 = vmul.f32 %v1383, %v1383
  %v1422 = vmul.f32 %v1384, %v1384
  %v1423 = vmul.f32 %v1385, %v1385
  %v1424 = vmul.f32 %v1386, %v1386
  %v1425 = vmul.f32 %v1387, %v1387
  %v1426 = vmul.f32 %v1388, %v1388
  %v1427 = vmul.f32 %v1389, %v1389
  %v1428 = vmul.f32 %v1390, %v1390
  %v1429 = vmul.f32 %v1391, %v1391
  %v1430 = vmul.f32 %v1392, %v1392
  %v1431 = vmul.f32 %v1393, %v1393
  %v1432 = vadd.f32 %v1416, %v1417
  %v1433 = vadd.f32 %v1432, %v1418
  %v1434 = vadd.f32 %v1433, %v1419
  %v1435 = vadd.f32 %v1434, %v1420
  %v1436 = vadd.f32 %v1435, %v1421
  %v1437 = vadd.f32 %v1436, %v1422
  %v1438 = vadd.f32 %v1437, %v1423
  %v1439 = vadd.f32 %v1438, %v1424
  %v1440 = vadd.f32 %v1439, %v1425
  %v1441 = vadd.f32 %v1440, %v1426
  %v1442 = vadd.f32 %v1441, %v1427
  %v1443 = vadd.f32 %v1442, %v1428
  %v1444 = vadd.f32 %v1443, %v1429
  %v1445 = vadd.f32 %v1444, %v1430
  %v1446 = vadd.f32 %v1445, %v1431
  %v1447 = vrot.slane %v1446, 4
  %v1448 = vadd.f32 %v1446, %v1447
  %v1449 = vrot.slane %v1448, 2
  %v1450 = vadd.f32 %v1448, %v1449
  %v1451 = vrot.slane %v1450, 1
  %v1452 = vadd.f32 %v1450, %v1451
  %1453 = vst [vmem:[%s3 + $0x1] sm:$0x1] %v1452
  // Predicated region
  $region10: #{discriminator_forward.7} parent=0 // pred_check
    _
  $region11: #{discriminator_forward.7} parent=0 // pred_check_branch
    %1455 = sbr.rel (0) target = $region13
  $region12: #{discriminator_forward.7} parent=0 // pred_region
    _
  $region13: #{discriminator_forward.7} parent=0 // pred_fallthru
    _
  // Predicated region
  $region14: #{discriminator_forward.7} parent=0 // pred_check
    _
  $region15: #{discriminator_forward.7} parent=0 // pred_check_branch
    %1457 = sbr.rel (0) target = $region17
  $region16: #{discriminator_forward.7} parent=0 // pred_region
    _
  $region17: #{discriminator_forward.7} parent=0 // pred_fallthru
    _
  // Predicated region
  $region18: #{discriminator_forward.7} parent=0 // pred_check
    _
  $region19: #{discriminator_forward.7} parent=0 // pred_check_branch
    %1459 = sbr.rel (0) target = $region21
  $region20: #{discriminator_forward.7} parent=0 // pred_region
    _
  $region21: #{discriminator_forward.7} parent=0 // pred_fallthru
    _
  // Predicated region
  $region22: #{discriminator_forward.7} parent=0 // pred_check
    _
  $region23: #{discriminator_forward.7} parent=0 // pred_check_branch
    %1461 = sbr.rel (0) target = $region25
  $region24: #{discriminator_forward.7} parent=0 // pred_region
    _
  $region25: #{discriminator_forward.7} parent=0 // pred_fallthru
    _

// kernel: discriminator_forward.8
$region0: #{discriminator_forward.8}
  #allocation0 [shape = 'u32[]', space=smem, size = 0x4, offset = 0x4, fixed_abs, tag = 'smem constant byte address 0x4 - core index']
  #allocation1 [shape = 'u32[144,128]{1,0:T(1,128)}', space=vmem, size = 0x12000, scoped, tag = 'internal scratch']
  %s0 = inlined_call_operand.vmem [shape: bf16[128,128], index: 0, kind: input, shape index: {}]
  %s1 = inlined_call_operand.vmem [shape: f32[1,128], index: 1, kind: input, shape index: {}]
  %s2 = inlined_call_operand.vmem [shape: f32[1,128], index: 2, kind: input, shape index: {}]
  %s3 = inlined_call_operand.vmem [shape: bf16[128,128], index: 3, kind: output, shape index: {}]
  %s4 = sld [smem:[#allocation0]]
  $region22: #{discriminator_forward.8} parent=0
    _
  %s6 = ssub.s32 1, %s4
  %s7 = scalar_select 0, %s6, %s4
  // Predicated region
  $region2: #{discriminator_forward.8} parent=0 // pred_check
    _
  $region3: #{discriminator_forward.8} parent=0 // pred_check_branch
    %9 = sbr.rel (0) target = $region5
  $region4: #{discriminator_forward.8} parent=0 // pred_region
    _
  $region5: #{discriminator_forward.8} parent=0 // pred_fallthru
    _
  // Predicated region
  $region6: #{discriminator_forward.8} parent=0 // pred_check
    _
  $region7: #{discriminator_forward.8} parent=0 // pred_check_branch
    %11 = sbr.rel (0) target = $region9
  $region8: #{discriminator_forward.8} parent=0 // pred_region
    _
  $region9: #{discriminator_forward.8} parent=0 // pred_fallthru
    _
  // Predicated region
  $region10: #{discriminator_forward.8} parent=0 // pred_check
    _
  $region11: #{discriminator_forward.8} parent=0 // pred_check_branch
    %13 = sbr.rel (0) target = $region13
  $region12: #{discriminator_forward.8} parent=0 // pred_region
    _
  $region13: #{discriminator_forward.8} parent=0 // pred_fallthru
    _
  %v14 = vld [vmem:[%s0] sm:$0xf]
  %v15 = vld [vmem:[%s0 + $0x4] sm:$0xf]
  %v16 = vld [vmem:[%s0 + $0x8] sm:$0xf]
  %v17 = vld [vmem:[%s0 + $0xc] sm:$0xf]
  %v18 = vld [vmem:[%s0 + $0x10] sm:$0xf]
  %v19 = vld [vmem:[%s0 + $0x14] sm:$0xf]
  %v20 = vld [vmem:[%s0 + $0x18] sm:$0xf]
  %v21 = vld [vmem:[%s0 + $0x1c] sm:$0xf]
  %v22 = vld [vmem:[%s0 + $0x20] sm:$0xf]
  %v23 = vld [vmem:[%s0 + $0x24] sm:$0xf]
  %v24 = vld [vmem:[%s0 + $0x28] sm:$0xf]
  %v25 = vld [vmem:[%s0 + $0x2c] sm:$0xf]
  %v26 = vld [vmem:[%s0 + $0x30] sm:$0xf]
  %v27 = vld [vmem:[%s0 + $0x34] sm:$0xf]
  %v28 = vld [vmem:[%s0 + $0x38] sm:$0xf]
  %v29 = vld [vmem:[%s0 + $0x3c] sm:$0xf]
  %v30 = vunpack.c.l.bf16 %v14
  %v31 = vunpack.c.l.bf16 %v15
  %v32 = vunpack.c.l.bf16 %v16
  %v33 = vunpack.c.l.bf16 %v17
  %v34 = vunpack.c.l.bf16 %v18
  %v35 = vunpack.c.l.bf16 %v19
  %v36 = vunpack.c.l.bf16 %v20
  %v37 = vunpack.c.l.bf16 %v21
  %v38 = vunpack.c.l.bf16 %v22
  %v39 = vunpack.c.l.bf16 %v23
  %v40 = vunpack.c.l.bf16 %v24
  %v41 = vunpack.c.l.bf16 %v25
  %v42 = vunpack.c.l.bf16 %v26
  %v43 = vunpack.c.l.bf16 %v27
  %v44 = vunpack.c.l.bf16 %v28
  %v45 = vunpack.c.l.bf16 %v29
  %v46 = vld [vmem:[%s1] sm:$0x1]
  %v48 = vlaneseq
  %v49 = vshrl.u32 %v48, 7
  %v50 = vsub.s32 0, %v49
  %v51 = vrot.slane %v46, %v50
  %v53 = vmul.f32 %v30, %v51
  %v54 = vmul.f32 %v31, %v51
  %v55 = vmul.f32 %v32, %v51
  %v56 = vmul.f32 %v33, %v51
  %v57 = vmul.f32 %v34, %v51
  %v58 = vmul.f32 %v35, %v51
  %v59 = vmul.f32 %v36, %v51
  %v60 = vmul.f32 %v37, %v51
  %v61 = vmul.f32 %v38, %v51
  %v62 = vmul.f32 %v39, %v51
  %v63 = vmul.f32 %v40, %v51
  %v64 = vmul.f32 %v41, %v51
  %v65 = vmul.f32 %v42, %v51
  %v66 = vmul.f32 %v43, %v51
  %v67 = vmul.f32 %v44, %v51
  %v68 = vmul.f32 %v45, %v51
  %v69 = vld [vmem:[%s2] sm:$0x1]
  %v71 = vlaneseq
  %v72 = vshrl.u32 %v71, 7
  %v73 = vsub.s32 0, %v72
  %v74 = vrot.slane %v69, %v73
  %v76 = vadd.f32 %v53, %v74
  %v77 = vadd.f32 %v54, %v74
  %v78 = vadd.f32 %v55, %v74
  %v79 = vadd.f32 %v56, %v74
  %v80 = vadd.f32 %v57, %v74
  %v81 = vadd.f32 %v58, %v74
  %v82 = vadd.f32 %v59, %v74
  %v83 = vadd.f32 %v60, %v74
  %v84 = vadd.f32 %v61, %v74
  %v85 = vadd.f32 %v62, %v74
  %v86 = vadd.f32 %v63, %v74
  %v87 = vadd.f32 %v64, %v74
  %v88 = vadd.f32 %v65, %v74
  %v89 = vadd.f32 %v66, %v74
  %v90 = vadd.f32 %v67, %v74
  %v91 = vadd.f32 %v68, %v74
  %vm92 = vcmp.ge.f32.partialorder %v76, 0.0
  %vm93 = vcmp.ge.f32.partialorder %v77, 0.0
  %vm94 = vcmp.ge.f32.partialorder %v78, 0.0
  %vm95 = vcmp.ge.f32.partialorder %v79, 0.0
  %vm96 = vcmp.ge.f32.partialorder %v80, 0.0
  %vm97 = vcmp.ge.f32.partialorder %v81, 0.0
  %vm98 = vcmp.ge.f32.partialorder %v82, 0.0
  %vm99 = vcmp.ge.f32.partialorder %v83, 0.0
  %vm100 = vcmp.ge.f32.partialorder %v84, 0.0
  %vm101 = vcmp.ge.f32.partialorder %v85, 0.0
  %vm102 = vcmp.ge.f32.partialorder %v86, 0.0
  %vm103 = vcmp.ge.f32.partialorder %v87, 0.0
  %vm104 = vcmp.ge.f32.partialorder %v88, 0.0
  %vm105 = vcmp.ge.f32.partialorder %v89, 0.0
  %vm106 = vcmp.ge.f32.partialorder %v90, 0.0
  %vm107 = vcmp.ge.f32.partialorder %v91, 0.0
  %v108 = vmul.f32 %v76, 0.2
  %v109 = vmul.f32 %v77, 0.2
  %v110 = vmul.f32 %v78, 0.2
  %v111 = vmul.f32 %v79, 0.2
  %v112 = vmul.f32 %v80, 0.2
  %v113 = vmul.f32 %v81, 0.2
  %v114 = vmul.f32 %v82, 0.2
  %v115 = vmul.f32 %v83, 0.2
  %v116 = vmul.f32 %v84, 0.2
  %v117 = vmul.f32 %v85, 0.2
  %v118 = vmul.f32 %v86, 0.2
  %v119 = vmul.f32 %v87, 0.2
  %v120 = vmul.f32 %v88, 0.2
  %v121 = vmul.f32 %v89, 0.2
  %v122 = vmul.f32 %v90, 0.2
  %v123 = vmul.f32 %v91, 0.2
  %v124 = vsel %vm92, %v76, %v108
  %v125 = vsel %vm93, %v77, %v109
  %v126 = vsel %vm94, %v78, %v110
  %v127 = vsel %vm95, %v79, %v111
  %v128 = vsel %vm96, %v80, %v112
  %v129 = vsel %vm97, %v81, %v113
  %v130 = vsel %vm98, %v82, %v114
  %v131 = vsel %vm99, %v83, %v115
  %v132 = vsel %vm100, %v84, %v116
  %v133 = vsel %vm101, %v85, %v117
  %v134 = vsel %vm102, %v86, %v118
  %v135 = vsel %vm103, %v87, %v119
  %v136 = vsel %vm104, %v88, %v120
  %v137 = vsel %vm105, %v89, %v121
  %v138 = vsel %vm106, %v90, %v122
  %v139 = vsel %vm107, %v91, %v123
  %v140 = vpack.c.bf16 %v125, %v124
  %v141 = vpack.c.bf16 %v127, %v126
  %v142 = vpack.c.bf16 %v129, %v128
  %v143 = vpack.c.bf16 %v131, %v130
  %v144 = vpack.c.bf16 %v133, %v132
  %v145 = vpack.c.bf16 %v135, %v134
  %v146 = vpack.c.bf16 %v137, %v136
  %v147 = vpack.c.bf16 %v139, %v138
  %v156 = vunpack.c.l.b16 %v140
  %v157 = vunpack.c.h.b16 %v140
  %v158 = vunpack.c.l.b16 %v141
  %v159 = vunpack.c.h.b16 %v141
  %v160 = vunpack.c.l.b16 %v142
  %v161 = vunpack.c.h.b16 %v142
  %v162 = vunpack.c.l.b16 %v143
  %v163 = vunpack.c.h.b16 %v143
  %v164 = vunpack.c.l.b16 %v144
  %v165 = vunpack.c.h.b16 %v144
  %v166 = vunpack.c.l.b16 %v145
  %v167 = vunpack.c.h.b16 %v145
  %v168 = vunpack.c.l.b16 %v146
  %v169 = vunpack.c.h.b16 %v146
  %v170 = vunpack.c.l.b16 %v147
  %v171 = vunpack.c.h.b16 %v147
  %v172 = vpack.c.b16 %v156, %v156
  %v173 = vpack.c.b16 %v157, %v157
  %v174 = vpack.c.b16 %v158, %v158
  %v175 = vpack.c.b16 %v159, %v159
  %v176 = vpack.c.b16 %v160, %v160
  %v177 = vpack.c.b16 %v161, %v161
  %v178 = vpack.c.b16 %v162, %v162
  %v179 = vpack.c.b16 %v163, %v163
  %v180 = vpack.c.b16 %v164, %v164
  %v181 = vpack.c.b16 %v165, %v165
  %v182 = vpack.c.b16 %v166, %v166
  %v183 = vpack.c.b16 %v167, %v167
  %v184 = vpack.c.b16 %v168, %v168
  %v185 = vpack.c.b16 %v169, %v169
  %v186 = vpack.c.b16 %v170, %v170
  %v187 = vpack.c.b16 %v171, %v171
  %204 = vst [vmem:[%s3] sm:$0xf] %v172
  %205 = vst [vmem:[%s3 + $0x4] sm:$0xf] %v173
  %206 = vst [vmem:[%s3 + $0x8] sm:$0xf] %v174
  %207 = vst [vmem:[%s3 + $0xc] sm:$0xf] %v175
  %208 = vst [vmem:[%s3 + $0x10] sm:$0xf] %v176
  %209 = vst [vmem:[%s3 + $0x14] sm:$0xf] %v177
  %210 = vst [vmem:[%s3 + $0x18] sm:$0xf] %v178
  %211 = vst [vmem:[%s3 + $0x1c] sm:$0xf] %v179
  %212 = vst [vmem:[%s3 + $0x20] sm:$0xf] %v180
  %213 = vst [vmem:[%s3 + $0x24] sm:$0xf] %v181
  %214 = vst [vmem:[%s3 + $0x28] sm:$0xf] %v182
  %215 = vst [vmem:[%s3 + $0x2c] sm:$0xf] %v183
  %216 = vst [vmem:[%s3 + $0x30] sm:$0xf] %v184
  %217 = vst [vmem:[%s3 + $0x34] sm:$0xf] %v185
  %218 = vst [vmem:[%s3 + $0x38] sm:$0xf] %v186
  %219 = vst [vmem:[%s3 + $0x3c] sm:$0xf] %v187
  // Predicated region
  $region14: #{discriminator_forward.8} parent=0 // pred_check
    _
  $region15: #{discriminator_forward.8} parent=0 // pred_check_branch
    %221 = sbr.rel (0) target = $region17
  $region16: #{discriminator_forward.8} parent=0 // pred_region
    _
  $region17: #{discriminator_forward.8} parent=0 // pred_fallthru
    _
  // Predicated region
  $region18: #{discriminator_forward.8} parent=0 // pred_check
    _
  $region19: #{discriminator_forward.8} parent=0 // pred_check_branch
    %223 = sbr.rel (0) target = $region21
  $region20: #{discriminator_forward.8} parent=0 // pred_region
    _
  $region21: #{discriminator_forward.8} parent=0 // pred_fallthru
    _

// kernel: discriminator_forward.9
$region0: #{discriminator_forward.9}
  #allocation0 [shape = 'u32[]', space=smem, size = 0x4, offset = 0x4, fixed_abs, tag = 'smem constant byte address 0x4 - core index']
  #allocation1 [shape = 'u32[144,128]{1,0:T(1,128)}', space=vmem, size = 0x12000, scoped, tag = 'internal scratch']
  %s0 = inlined_call_operand.vmem [shape: bf16[32,2048], index: 0, kind: input, shape index: {}]
  %s1 = inlined_call_operand.vmem [shape: bf16[2048,256], index: 1, kind: input, shape index: {}]
  %s2 = inlined_call_operand.vmem [shape: bf16[32,256], index: 2, kind: output, shape index: {0}]
  %s3 = inlined_call_operand.vmem [shape: f32[1,2,256], index: 3, kind: output, shape index: {1}]
  %4 = xla_tuple %s2, %s3
  %s5 = sld [smem:[#allocation0]]
  $region26: #{discriminator_forward.9} parent=0
    _
  %s7 = ssub.s32 1, %s5
  %s8 = scalar_select 0, %s7, %s5
  // Predicated region
  $region2: #{discriminator_forward.9} parent=0 // pred_check
    _
  $region3: #{discriminator_forward.9} parent=0 // pred_check_branch
    %10 = sbr.rel (0) target = $region5
  $region4: #{discriminator_forward.9} parent=0 // pred_region
    _
  $region5: #{discriminator_forward.9} parent=0 // pred_fallthru
    _
  // Predicated region
  $region6: #{discriminator_forward.9} parent=0 // pred_check
    _
  $region7: #{discriminator_forward.9} parent=0 // pred_check_branch
    %12 = sbr.rel (0) target = $region9
  $region8: #{discriminator_forward.9} parent=0 // pred_region
    _
  $region9: #{discriminator_forward.9} parent=0 // pred_fallthru
    _
  %v13 = vld [vmem:[%s0] sm:$0xff]
  %v14 = vld [vmem:[%s0 + $0x8] sm:$0xff]
  %v15 = vld [vmem:[%s0 + $0x10] sm:$0xff]
  %v16 = vld [vmem:[%s0 + $0x18] sm:$0xff]
  %v17 = vld [vmem:[%s0 + $0x20] sm:$0xff]
  %v18 = vld [vmem:[%s0 + $0x28] sm:$0xff]
  %v19 = vld [vmem:[%s0 + $0x30] sm:$0xff]
  %v20 = vld [vmem:[%s0 + $0x38] sm:$0xff]
  %v21 = vld [vmem:[%s0 + $0x40] sm:$0xff]
  %v22 = vld [vmem:[%s0 + $0x48] sm:$0xff]
  %v23 = vld [vmem:[%s0 + $0x50] sm:$0xff]
  %v24 = vld [vmem:[%s0 + $0x58] sm:$0xff]
  %v25 = vld [vmem:[%s0 + $0x60] sm:$0xff]
  %v26 = vld [vmem:[%s0 + $0x68] sm:$0xff]
  %v27 = vld [vmem:[%s0 + $0x70] sm:$0xff]
  %v28 = vld [vmem:[%s0 + $0x78] sm:$0xff]
  %v29 = vld [vmem:[%s0 + $0x80] sm:$0xff]
  %v30 = vld [vmem:[%s0 + $0x88] sm:$0xff]
  %v31 = vld [vmem:[%s0 + $0x90] sm:$0xff]
  %v32 = vld [vmem:[%s0 + $0x98] sm:$0xff]
  %v33 = vld [vmem:[%s0 + $0xa0] sm:$0xff]
  %v34 = vld [vmem:[%s0 + $0xa8] sm:$0xff]
  %v35 = vld [vmem:[%s0 + $0xb0] sm:$0xff]
  %v36 = vld [vmem:[%s0 + $0xb8] sm:$0xff]
  %v37 = vld [vmem:[%s0 + $0xc0] sm:$0xff]
  %v38 = vld [vmem:[%s0 + $0xc8] sm:$0xff]
  %v39 = vld [vmem:[%s0 + $0xd0] sm:$0xff]
  %v40 = vld [vmem:[%s0 + $0xd8] sm:$0xff]
  %v41 = vld [vmem:[%s0 + $0xe0] sm:$0xff]
  %v42 = vld [vmem:[%s0 + $0xe8] sm:$0xff]
  %v43 = vld [vmem:[%s0 + $0xf0] sm:$0xff]
  %v44 = vld [vmem:[%s0 + $0xf8] sm:$0xff]
  %v45 = vld [vmem:[%s1] sm:$0xff]
  %v46 = vld [vmem:[%s1 + $0x8] sm:$0xff]
  %v47 = vld [vmem:[%s1 + $0x10] sm:$0xff]
  %v48 = vld [vmem:[%s1 + $0x18] sm:$0xff]
  %v49 = vld [vmem:[%s1 + $0x20] sm:$0xff]
  %v50 = vld [vmem:[%s1 + $0x28] sm:$0xff]
  %v51 = vld [vmem:[%s1 + $0x30] sm:$0xff]
  %v52 = vld [vmem:[%s1 + $0x38] sm:$0xff]
  %v53 = vld [vmem:[%s1 + $0x40] sm:$0xff]
  %v54 = vld [vmem:[%s1 + $0x48] sm:$0xff]
  %v55 = vld [vmem:[%s1 + $0x50] sm:$0xff]
  %v56 = vld [vmem:[%s1 + $0x58] sm:$0xff]
  %v57 = vld [vmem:[%s1 + $0x60] sm:$0xff]
  %v58 = vld [vmem:[%s1 + $0x68] sm:$0xff]
  %v59 = vld [vmem:[%s1 + $0x70] sm:$0xff]
  %v60 = vld [vmem:[%s1 + $0x78] sm:$0xff]
  %v61 = vld [vmem:[%s1 + $0x80] sm:$0xff]
  %v62 = vld [vmem:[%s1 + $0x88] sm:$0xff]
  %v63 = vld [vmem:[%s1 + $0x90] sm:$0xff]
  %v64 = vld [vmem:[%s1 + $0x98] sm:$0xff]
  %v65 = vld [vmem:[%s1 + $0xa0] sm:$0xff]
  %v66 = vld [vmem:[%s1 + $0xa8] sm:$0xff]
  %v67 = vld [vmem:[%s1 + $0xb0] sm:$0xff]
  %v68 = vld [vmem:[%s1 + $0xb8] sm:$0xff]
  %v69 = vld [vmem:[%s1 + $0xc0] sm:$0xff]
  %v70 = vld [vmem:[%s1 + $0xc8] sm:$0xff]
  %v71 = vld [vmem:[%s1 + $0xd0] sm:$0xff]
  %v72 = vld [vmem:[%s1 + $0xd8] sm:$0xff]
  %v73 = vld [vmem:[%s1 + $0xe0] sm:$0xff]
  %v74 = vld [vmem:[%s1 + $0xe8] sm:$0xff]
  %v75 = vld [vmem:[%s1 + $0xf0] sm:$0xff]
  %v76 = vld [vmem:[%s1 + $0xf8] sm:$0xff]
  %v77 = vld [vmem:[%s1 + $0x100] sm:$0xff]
  %v78 = vld [vmem:[%s1 + $0x108] sm:$0xff]
  %v79 = vld [vmem:[%s1 + $0x110] sm:$0xff]
  %v80 = vld [vmem:[%s1 + $0x118] sm:$0xff]
  %v81 = vld [vmem:[%s1 + $0x120] sm:$0xff]
  %v82 = vld [vmem:[%s1 + $0x128] sm:$0xff]
  %v83 = vld [vmem:[%s1 + $0x130] sm:$0xff]
  %v84 = vld [vmem:[%s1 + $0x138] sm:$0xff]
  %v85 = vld [vmem:[%s1 + $0x140] sm:$0xff]
  %v86 = vld [vmem:[%s1 + $0x148] sm:$0xff]
  %v87 = vld [vmem:[%s1 + $0x150] sm:$0xff]
  %v88 = vld [vmem:[%s1 + $0x158] sm:$0xff]
  %v89 = vld [vmem:[%s1 + $0x160] sm:$0xff]
  %v90 = vld [vmem:[%s1 + $0x168] sm:$0xff]
  %v91 = vld [vmem:[%s1 + $0x170] sm:$0xff]
  %v92 = vld [vmem:[%s1 + $0x178] sm:$0xff]
  %v93 = vld [vmem:[%s1 + $0x180] sm:$0xff]
  %v94 = vld [vmem:[%s1 + $0x188] sm:$0xff]
  %v95 = vld [vmem:[%s1 + $0x190] sm:$0xff]
  %v96 = vld [vmem:[%s1 + $0x198] sm:$0xff]
  %v97 = vld [vmem:[%s1 + $0x1a0] sm:$0xff]
  %v98 = vld [vmem:[%s1 + $0x1a8] sm:$0xff]
  %v99 = vld [vmem:[%s1 + $0x1b0] sm:$0xff]
  %v100 = vld [vmem:[%s1 + $0x1b8] sm:$0xff]
  %v101 = vld [vmem:[%s1 + $0x1c0] sm:$0xff]
  %v102 = vld [vmem:[%s1 + $0x1c8] sm:$0xff]
  %v103 = vld [vmem:[%s1 + $0x1d0] sm:$0xff]
  %v104 = vld [vmem:[%s1 + $0x1d8] sm:$0xff]
  %v105 = vld [vmem:[%s1 + $0x1e0] sm:$0xff]
  %v106 = vld [vmem:[%s1 + $0x1e8] sm:$0xff]
  %v107 = vld [vmem:[%s1 + $0x1f0] sm:$0xff]
  %v108 = vld [vmem:[%s1 + $0x1f8] sm:$0xff]
  %v109 = vld [vmem:[%s1 + $0x200] sm:$0xff]
  %v110 = vld [vmem:[%s1 + $0x208] sm:$0xff]
  %v111 = vld [vmem:[%s1 + $0x210] sm:$0xff]
  %v112 = vld [vmem:[%s1 + $0x218] sm:$0xff]
  %v113 = vld [vmem:[%s1 + $0x220] sm:$0xff]
  %v114 = vld [vmem:[%s1 + $0x228] sm:$0xff]
  %v115 = vld [vmem:[%s1 + $0x230] sm:$0xff]
  %v116 = vld [vmem:[%s1 + $0x238] sm:$0xff]
  %v117 = vld [vmem:[%s1 + $0x240] sm:$0xff]
  %v118 = vld [vmem:[%s1 + $0x248] sm:$0xff]
  %v119 = vld [vmem:[%s1 + $0x250] sm:$0xff]
  %v120 = vld [vmem:[%s1 + $0x258] sm:$0xff]
  %v121 = vld [vmem:[%s1 + $0x260] sm:$0xff]
  %v122 = vld [vmem:[%s1 + $0x268] sm:$0xff]
  %v123 = vld [vmem:[%s1 + $0x270] sm:$0xff]
  %v124 = vld [vmem:[%s1 + $0x278] sm:$0xff]
  %v125 = vld [vmem:[%s1 + $0x280] sm:$0xff]
  %v126 = vld [vmem:[%s1 + $0x288] sm:$0xff]
  %v127 = vld [vmem:[%s1 + $0x290] sm:$0xff]
  %v128 = vld [vmem:[%s1 + $0x298] sm:$0xff]
  %v129 = vld [vmem:[%s1 + $0x2a0] sm:$0xff]
  %v130 = vld [vmem:[%s1 + $0x2a8] sm:$0xff]
  %v131 = vld [vmem:[%s1 + $0x2b0] sm:$0xff]
  %v132 = vld [vmem:[%s1 + $0x2b8] sm:$0xff]
  %v133 = vld [vmem:[%s1 + $0x2c0] sm:$0xff]
  %v134 = vld [vmem:[%s1 + $0x2c8] sm:$0xff]
  %v135 = vld [vmem:[%s1 + $0x2d0] sm:$0xff]
  %v136 = vld [vmem:[%s1 + $0x2d8] sm:$0xff]
  %v137 = vld [vmem:[%s1 + $0x2e0] sm:$0xff]
  %v138 = vld [vmem:[%s1 + $0x2e8] sm:$0xff]
  %v139 = vld [vmem:[%s1 + $0x2f0] sm:$0xff]
  %v140 = vld [vmem:[%s1 + $0x2f8] sm:$0xff]
  %v141 = vld [vmem:[%s1 + $0x300] sm:$0xff]
  %v142 = vld [vmem:[%s1 + $0x308] sm:$0xff]
  %v143 = vld [vmem:[%s1 + $0x310] sm:$0xff]
  %v144 = vld [vmem:[%s1 + $0x318] sm:$0xff]
  %v145 = vld [vmem:[%s1 + $0x320] sm:$0xff]
  %v146 = vld [vmem:[%s1 + $0x328] sm:$0xff]
  %v147 = vld [vmem:[%s1 + $0x330] sm:$0xff]
  %v148 = vld [vmem:[%s1 + $0x338] sm:$0xff]
  %v149 = vld [vmem:[%s1 + $0x340] sm:$0xff]
  %v150 = vld [vmem:[%s1 + $0x348] sm:$0xff]
  %v151 = vld [vmem:[%s1 + $0x350] sm:$0xff]
  %v152 = vld [vmem:[%s1 + $0x358] sm:$0xff]
  %v153 = vld [vmem:[%s1 + $0x360] sm:$0xff]
  %v154 = vld [vmem:[%s1 + $0x368] sm:$0xff]
  %v155 = vld [vmem:[%s1 + $0x370] sm:$0xff]
  %v156 = vld [vmem:[%s1 + $0x378] sm:$0xff]
  %v157 = vld [vmem:[%s1 + $0x380] sm:$0xff]
  %v158 = vld [vmem:[%s1 + $0x388] sm:$0xff]
  %v159 = vld [vmem:[%s1 + $0x390] sm:$0xff]
  %v160 = vld [vmem:[%s1 + $0x398] sm:$0xff]
  %v161 = vld [vmem:[%s1 + $0x3a0] sm:$0xff]
  %v162 = vld [vmem:[%s1 + $0x3a8] sm:$0xff]
  %v163 = vld [vmem:[%s1 + $0x3b0] sm:$0xff]
  %v164 = vld [vmem:[%s1 + $0x3b8] sm:$0xff]
  %v165 = vld [vmem:[%s1 + $0x3c0] sm:$0xff]
  %v166 = vld [vmem:[%s1 + $0x3c8] sm:$0xff]
  %v167 = vld [vmem:[%s1 + $0x3d0] sm:$0xff]
  %v168 = vld [vmem:[%s1 + $0x3d8] sm:$0xff]
  %v169 = vld [vmem:[%s1 + $0x3e0] sm:$0xff]
  %v170 = vld [vmem:[%s1 + $0x3e8] sm:$0xff]
  %v171 = vld [vmem:[%s1 + $0x3f0] sm:$0xff]
  %v172 = vld [vmem:[%s1 + $0x3f8] sm:$0xff]
  %v173 = vld [vmem:[%s1 + $0x400] sm:$0xff]
  %v174 = vld [vmem:[%s1 + $0x408] sm:$0xff]
  %v175 = vld [vmem:[%s1 + $0x410] sm:$0xff]
  %v176 = vld [vmem:[%s1 + $0x418] sm:$0xff]
  %v177 = vld [vmem:[%s1 + $0x420] sm:$0xff]
  %v178 = vld [vmem:[%s1 + $0x428] sm:$0xff]
  %v179 = vld [vmem:[%s1 + $0x430] sm:$0xff]
  %v180 = vld [vmem:[%s1 + $0x438] sm:$0xff]
  %v181 = vld [vmem:[%s1 + $0x440] sm:$0xff]
  %v182 = vld [vmem:[%s1 + $0x448] sm:$0xff]
  %v183 = vld [vmem:[%s1 + $0x450] sm:$0xff]
  %v184 = vld [vmem:[%s1 + $0x458] sm:$0xff]
  %v185 = vld [vmem:[%s1 + $0x460] sm:$0xff]
  %v186 = vld [vmem:[%s1 + $0x468] sm:$0xff]
  %v187 = vld [vmem:[%s1 + $0x470] sm:$0xff]
  %v188 = vld [vmem:[%s1 + $0x478] sm:$0xff]
  %v189 = vld [vmem:[%s1 + $0x480] sm:$0xff]
  %v190 = vld [vmem:[%s1 + $0x488] sm:$0xff]
  %v191 = vld [vmem:[%s1 + $0x490] sm:$0xff]
  %v192 = vld [vmem:[%s1 + $0x498] sm:$0xff]
  %v193 = vld [vmem:[%s1 + $0x4a0] sm:$0xff]
  %v194 = vld [vmem:[%s1 + $0x4a8] sm:$0xff]
  %v195 = vld [vmem:[%s1 + $0x4b0] sm:$0xff]
  %v196 = vld [vmem:[%s1 + $0x4b8] sm:$0xff]
  %v197 = vld [vmem:[%s1 + $0x4c0] sm:$0xff]
  %v198 = vld [vmem:[%s1 + $0x4c8] sm:$0xff]
  %v199 = vld [vmem:[%s1 + $0x4d0] sm:$0xff]
  %v200 = vld [vmem:[%s1 + $0x4d8] sm:$0xff]
  %v201 = vld [vmem:[%s1 + $0x4e0] sm:$0xff]
  %v202 = vld [vmem:[%s1 + $0x4e8] sm:$0xff]
  %v203 = vld [vmem:[%s1 + $0x4f0] sm:$0xff]
  %v204 = vld [vmem:[%s1 + $0x4f8] sm:$0xff]
  %v205 = vld [vmem:[%s1 + $0x500] sm:$0xff]
  %v206 = vld [vmem:[%s1 + $0x508] sm:$0xff]
  %v207 = vld [vmem:[%s1 + $0x510] sm:$0xff]
  %v208 = vld [vmem:[%s1 + $0x518] sm:$0xff]
  %v209 = vld [vmem:[%s1 + $0x520] sm:$0xff]
  %v210 = vld [vmem:[%s1 + $0x528] sm:$0xff]
  %v211 = vld [vmem:[%s1 + $0x530] sm:$0xff]
  %v212 = vld [vmem:[%s1 + $0x538] sm:$0xff]
  %v213 = vld [vmem:[%s1 + $0x540] sm:$0xff]
  %v214 = vld [vmem:[%s1 + $0x548] sm:$0xff]
  %v215 = vld [vmem:[%s1 + $0x550] sm:$0xff]
  %v216 = vld [vmem:[%s1 + $0x558] sm:$0xff]
  %v217 = vld [vmem:[%s1 + $0x560] sm:$0xff]
  %v218 = vld [vmem:[%s1 + $0x568] sm:$0xff]
  %v219 = vld [vmem:[%s1 + $0x570] sm:$0xff]
  %v220 = vld [vmem:[%s1 + $0x578] sm:$0xff]
  %v221 = vld [vmem:[%s1 + $0x580] sm:$0xff]
  %v222 = vld [vmem:[%s1 + $0x588] sm:$0xff]
  %v223 = vld [vmem:[%s1 + $0x590] sm:$0xff]
  %v224 = vld [vmem:[%s1 + $0x598] sm:$0xff]
  %v225 = vld [vmem:[%s1 + $0x5a0] sm:$0xff]
  %v226 = vld [vmem:[%s1 + $0x5a8] sm:$0xff]
  %v227 = vld [vmem:[%s1 + $0x5b0] sm:$0xff]
  %v228 = vld [vmem:[%s1 + $0x5b8] sm:$0xff]
  %v229 = vld [vmem:[%s1 + $0x5c0] sm:$0xff]
  %v230 = vld [vmem:[%s1 + $0x5c8] sm:$0xff]
  %v231 = vld [vmem:[%s1 + $0x5d0] sm:$0xff]
  %v232 = vld [vmem:[%s1 + $0x5d8] sm:$0xff]
  %v233 = vld [vmem:[%s1 + $0x5e0] sm:$0xff]
  %v234 = vld [vmem:[%s1 + $0x5e8] sm:$0xff]
  %v235 = vld [vmem:[%s1 + $0x5f0] sm:$0xff]
  %v236 = vld [vmem:[%s1 + $0x5f8] sm:$0xff]
  %v237 = vld [vmem:[%s1 + $0x600] sm:$0xff]
  %v238 = vld [vmem:[%s1 + $0x608] sm:$0xff]
  %v239 = vld [vmem:[%s1 + $0x610] sm:$0xff]
  %v240 = vld [vmem:[%s1 + $0x618] sm:$0xff]
  %v241 = vld [vmem:[%s1 + $0x620] sm:$0xff]
  %v242 = vld [vmem:[%s1 + $0x628] sm:$0xff]
  %v243 = vld [vmem:[%s1 + $0x630] sm:$0xff]
  %v244 = vld [vmem:[%s1 + $0x638] sm:$0xff]
  %v245 = vld [vmem:[%s1 + $0x640] sm:$0xff]
  %v246 = vld [vmem:[%s1 + $0x648] sm:$0xff]
  %v247 = vld [vmem:[%s1 + $0x650] sm:$0xff]
  %v248 = vld [vmem:[%s1 + $0x658] sm:$0xff]
  %v249 = vld [vmem:[%s1 + $0x660] sm:$0xff]
  %v250 = vld [vmem:[%s1 + $0x668] sm:$0xff]
  %v251 = vld [vmem:[%s1 + $0x670] sm:$0xff]
  %v252 = vld [vmem:[%s1 + $0x678] sm:$0xff]
  %v253 = vld [vmem:[%s1 + $0x680] sm:$0xff]
  %v254 = vld [vmem:[%s1 + $0x688] sm:$0xff]
  %v255 = vld [vmem:[%s1 + $0x690] sm:$0xff]
  %v256 = vld [vmem:[%s1 + $0x698] sm:$0xff]
  %v257 = vld [vmem:[%s1 + $0x6a0] sm:$0xff]
  %v258 = vld [vmem:[%s1 + $0x6a8] sm:$0xff]
  %v259 = vld [vmem:[%s1 + $0x6b0] sm:$0xff]
  %v260 = vld [vmem:[%s1 + $0x6b8] sm:$0xff]
  %v261 = vld [vmem:[%s1 + $0x6c0] sm:$0xff]
  %v262 = vld [vmem:[%s1 + $0x6c8] sm:$0xff]
  %v263 = vld [vmem:[%s1 + $0x6d0] sm:$0xff]
  %v264 = vld [vmem:[%s1 + $0x6d8] sm:$0xff]
  %v265 = vld [vmem:[%s1 + $0x6e0] sm:$0xff]
  %v266 = vld [vmem:[%s1 + $0x6e8] sm:$0xff]
  %v267 = vld [vmem:[%s1 + $0x6f0] sm:$0xff]
  %v268 = vld [vmem:[%s1 + $0x6f8] sm:$0xff]
  %v269 = vld [vmem:[%s1 + $0x700] sm:$0xff]
  %v270 = vld [vmem:[%s1 + $0x708] sm:$0xff]
  %v271 = vld [vmem:[%s1 + $0x710] sm:$0xff]
  %v272 = vld [vmem:[%s1 + $0x718] sm:$0xff]
  %v273 = vld [vmem:[%s1 + $0x720] sm:$0xff]
  %v274 = vld [vmem:[%s1 + $0x728] sm:$0xff]
  %v275 = vld [vmem:[%s1 + $0x730] sm:$0xff]
  %v276 = vld [vmem:[%s1 + $0x738] sm:$0xff]
  %v277 = vld [vmem:[%s1 + $0x740] sm:$0xff]
  %v278 = vld [vmem:[%s1 + $0x748] sm:$0xff]
  %v279 = vld [vmem:[%s1 + $0x750] sm:$0xff]
  %v280 = vld [vmem:[%s1 + $0x758] sm:$0xff]
  %v281 = vld [vmem:[%s1 + $0x760] sm:$0xff]
  %v282 = vld [vmem:[%s1 + $0x768] sm:$0xff]
  %v283 = vld [vmem:[%s1 + $0x770] sm:$0xff]
  %v284 = vld [vmem:[%s1 + $0x778] sm:$0xff]
  %v285 = vld [vmem:[%s1 + $0x780] sm:$0xff]
  %v286 = vld [vmem:[%s1 + $0x788] sm:$0xff]
  %v287 = vld [vmem:[%s1 + $0x790] sm:$0xff]
  %v288 = vld [vmem:[%s1 + $0x798] sm:$0xff]
  %v289 = vld [vmem:[%s1 + $0x7a0] sm:$0xff]
  %v290 = vld [vmem:[%s1 + $0x7a8] sm:$0xff]
  %v291 = vld [vmem:[%s1 + $0x7b0] sm:$0xff]
  %v292 = vld [vmem:[%s1 + $0x7b8] sm:$0xff]
  %v293 = vld [vmem:[%s1 + $0x7c0] sm:$0xff]
  %v294 = vld [vmem:[%s1 + $0x7c8] sm:$0xff]
  %v295 = vld [vmem:[%s1 + $0x7d0] sm:$0xff]
  %v296 = vld [vmem:[%s1 + $0x7d8] sm:$0xff]
  %v297 = vld [vmem:[%s1 + $0x7e0] sm:$0xff]
  %v298 = vld [vmem:[%s1 + $0x7e8] sm:$0xff]
  %v299 = vld [vmem:[%s1 + $0x7f0] sm:$0xff]
  %v300 = vld [vmem:[%s1 + $0x7f8] sm:$0xff]
  %v333 = vunpack.c.l.b16 %v13
  %v334 = vunpack.c.h.b16 %v13
  %v335 = vunpack.c.l.b16 %v14
  %v336 = vunpack.c.h.b16 %v14
  %v337 = vunpack.c.l.b16 %v15
  %v338 = vunpack.c.h.b16 %v15
  %v339 = vunpack.c.l.b16 %v16
  %v340 = vunpack.c.h.b16 %v16
  %v341 = vunpack.c.l.b16 %v17
  %v342 = vunpack.c.h.b16 %v17
  %v343 = vunpack.c.l.b16 %v18
  %v344 = vunpack.c.h.b16 %v18
  %v345 = vunpack.c.l.b16 %v19
  %v346 = vunpack.c.h.b16 %v19
  %v347 = vunpack.c.l.b16 %v20
  %v348 = vunpack.c.h.b16 %v20
  %v349 = vunpack.c.l.b16 %v21
  %v350 = vunpack.c.h.b16 %v21
  %v351 = vunpack.c.l.b16 %v22
  %v352 = vunpack.c.h.b16 %v22
  %v353 = vunpack.c.l.b16 %v23
  %v354 = vunpack.c.h.b16 %v23
  %v355 = vunpack.c.l.b16 %v24
  %v356 = vunpack.c.h.b16 %v24
  %v357 = vunpack.c.l.b16 %v25
  %v358 = vunpack.c.h.b16 %v25
  %v359 = vunpack.c.l.b16 %v26
  %v360 = vunpack.c.h.b16 %v26
  %v361 = vunpack.c.l.b16 %v27
  %v362 = vunpack.c.h.b16 %v27
  %v363 = vunpack.c.l.b16 %v28
  %v364 = vunpack.c.h.b16 %v28
  %v365 = vunpack.c.l.b16 %v29
  %v366 = vunpack.c.h.b16 %v29
  %v367 = vunpack.c.l.b16 %v30
  %v368 = vunpack.c.h.b16 %v30
  %v369 = vunpack.c.l.b16 %v31
  %v370 = vunpack.c.h.b16 %v31
  %v371 = vunpack.c.l.b16 %v32
  %v372 = vunpack.c.h.b16 %v32
  %v373 = vunpack.c.l.b16 %v33
  %v374 = vunpack.c.h.b16 %v33
  %v375 = vunpack.c.l.b16 %v34
  %v376 = vunpack.c.h.b16 %v34
  %v377 = vunpack.c.l.b16 %v35
  %v378 = vunpack.c.h.b16 %v35
  %v379 = vunpack.c.l.b16 %v36
  %v380 = vunpack.c.h.b16 %v36
  %v381 = vunpack.c.l.b16 %v37
  %v382 = vunpack.c.h.b16 %v37
  %v383 = vunpack.c.l.b16 %v38
  %v384 = vunpack.c.h.b16 %v38
  %v385 = vunpack.c.l.b16 %v39
  %v386 = vunpack.c.h.b16 %v39
  %v387 = vunpack.c.l.b16 %v40
  %v388 = vunpack.c.h.b16 %v40
  %v389 = vunpack.c.l.b16 %v41
  %v390 = vunpack.c.h.b16 %v41
  %v391 = vunpack.c.l.b16 %v42
  %v392 = vunpack.c.h.b16 %v42
  %v393 = vunpack.c.l.b16 %v43
  %v394 = vunpack.c.h.b16 %v43
  %v395 = vunpack.c.l.b16 %v44
  %v396 = vunpack.c.h.b16 %v44
  %v397 = vpack.c.b16 %v349, %v333
  %v398 = vpack.c.b16 %v350, %v334
  %v399 = vpack.c.b16 %v351, %v335
  %v400 = vpack.c.b16 %v352, %v336
  %v401 = vpack.c.b16 %v353, %v337
  %v402 = vpack.c.b16 %v354, %v338
  %v403 = vpack.c.b16 %v355, %v339
  %v404 = vpack.c.b16 %v356, %v340
  %v405 = vpack.c.b16 %v357, %v341
  %v406 = vpack.c.b16 %v358, %v342
  %v407 = vpack.c.b16 %v359, %v343
  %v408 = vpack.c.b16 %v360, %v344
  %v409 = vpack.c.b16 %v361, %v345
  %v410 = vpack.c.b16 %v362, %v346
  %v411 = vpack.c.b16 %v363, %v347
  %v412 = vpack.c.b16 %v364, %v348
  %v413 = vpack.c.b16 %v381, %v365
  %v414 = vpack.c.b16 %v382, %v366
  %v415 = vpack.c.b16 %v383, %v367
  %v416 = vpack.c.b16 %v384, %v368
  %v417 = vpack.c.b16 %v385, %v369
  %v418 = vpack.c.b16 %v386, %v370
  %v419 = vpack.c.b16 %v387, %v371
  %v420 = vpack.c.b16 %v388, %v372
  %v421 = vpack.c.b16 %v389, %v373
  %v422 = vpack.c.b16 %v390, %v374
  %v423 = vpack.c.b16 %v391, %v375
  %v424 = vpack.c.b16 %v392, %v376
  %v425 = vpack.c.b16 %v393, %v377
  %v426 = vpack.c.b16 %v394, %v378
  %v427 = vpack.c.b16 %v395, %v379
  %v428 = vpack.c.b16 %v396, %v380
  %v717 = vunpack.c.l.b16 %v45
  %v718 = vunpack.c.h.b16 %v45
  %v719 = vunpack.c.l.b16 %v46
  %v720 = vunpack.c.h.b16 %v46
  %v721 = vunpack.c.l.b16 %v47
  %v722 = vunpack.c.h.b16 %v47
  %v723 = vunpack.c.l.b16 %v48
  %v724 = vunpack.c.h.b16 %v48
  %v725 = vunpack.c.l.b16 %v49
  %v726 = vunpack.c.h.b16 %v49
  %v727 = vunpack.c.l.b16 %v50
  %v728 = vunpack.c.h.b16 %v50
  %v729 = vunpack.c.l.b16 %v51
  %v730 = vunpack.c.h.b16 %v51
  %v731 = vunpack.c.l.b16 %v52
  %v732 = vunpack.c.h.b16 %v52
  %v733 = vunpack.c.l.b16 %v53
  %v734 = vunpack.c.h.b16 %v53
  %v735 = vunpack.c.l.b16 %v54
  %v736 = vunpack.c.h.b16 %v54
  %v737 = vunpack.c.l.b16 %v55
  %v738 = vunpack.c.h.b16 %v55
  %v739 = vunpack.c.l.b16 %v56
  %v740 = vunpack.c.h.b16 %v56
  %v741 = vunpack.c.l.b16 %v57
  %v742 = vunpack.c.h.b16 %v57
  %v743 = vunpack.c.l.b16 %v58
  %v744 = vunpack.c.h.b16 %v58
  %v745 = vunpack.c.l.b16 %v59
  %v746 = vunpack.c.h.b16 %v59
  %v747 = vunpack.c.l.b16 %v60
  %v748 = vunpack.c.h.b16 %v60
  %v749 = vunpack.c.l.b16 %v61
  %v750 = vunpack.c.h.b16 %v61
  %v751 = vunpack.c.l.b16 %v62
  %v752 = vunpack.c.h.b16 %v62
  %v753 = vunpack.c.l.b16 %v63
  %v754 = vunpack.c.h.b16 %v63
  %v755 = vunpack.c.l.b16 %v64
  %v756 = vunpack.c.h.b16 %v64
  %v757 = vunpack.c.l.b16 %v65
  %v758 = vunpack.c.h.b16 %v65
  %v759 = vunpack.c.l.b16 %v66
  %v760 = vunpack.c.h.b16 %v66
  %v761 = vunpack.c.l.b16 %v67
  %v762 = vunpack.c.h.b16 %v67
  %v763 = vunpack.c.l.b16 %v68
  %v764 = vunpack.c.h.b16 %v68
  %v765 = vunpack.c.l.b16 %v69
  %v766 = vunpack.c.h.b16 %v69
  %v767 = vunpack.c.l.b16 %v70
  %v768 = vunpack.c.h.b16 %v70
  %v769 = vunpack.c.l.b16 %v71
  %v770 = vunpack.c.h.b16 %v71
  %v771 = vunpack.c.l.b16 %v72
  %v772 = vunpack.c.h.b16 %v72
  %v773 = vunpack.c.l.b16 %v73
  %v774 = vunpack.c.h.b16 %v73
  %v775 = vunpack.c.l.b16 %v74
  %v776 = vunpack.c.h.b16 %v74
  %v777 = vunpack.c.l.b16 %v75
  %v778 = vunpack.c.h.b16 %v75
  %v779 = vunpack.c.l.b16 %v76
  %v780 = vunpack.c.h.b16 %v76
  %v781 = vunpack.c.l.b16 %v77
  %v782 = vunpack.c.h.b16 %v77
  %v783 = vunpack.c.l.b16 %v78
  %v784 = vunpack.c.h.b16 %v78
  %v785 = vunpack.c.l.b16 %v79
  %v786 = vunpack.c.h.b16 %v79
  %v787 = vunpack.c.l.b16 %v80
  %v788 = vunpack.c.h.b16 %v80
  %v789 = vunpack.c.l.b16 %v81
  %v790 = vunpack.c.h.b16 %v81
  %v791 = vunpack.c.l.b16 %v82
  %v792 = vunpack.c.h.b16 %v82
  %v793 = vunpack.c.l.b16 %v83
  %v794 = vunpack.c.h.b16 %v83
  %v795 = vunpack.c.l.b16 %v84
  %v796 = vunpack.c.h.b16 %v84
  %v797 = vunpack.c.l.b16 %v85
  %v798 = vunpack.c.h.b16 %v85
  %v799 = vunpack.c.l.b16 %v86
  %v800 = vunpack.c.h.b16 %v86
  %v801 = vunpack.c.l.b16 %v87
  %v802 = vunpack.c.h.b16 %v87
  %v803 = vunpack.c.l.b16 %v88
  %v804 = vunpack.c.h.b16 %v88
  %v805 = vunpack.c.l.b16 %v89
  %v806 = vunpack.c.h.b16 %v89
  %v807 = vunpack.c.l.b16 %v90
  %v808 = vunpack.c.h.b16 %v90
  %v809 = vunpack.c.l.b16 %v91
  %v810 = vunpack.c.h.b16 %v91
  %v811 = vunpack.c.l.b16 %v92
  %v812 = vunpack.c.h.b16 %v92
  %v813 = vunpack.c.l.b16 %v93
  %v814 = vunpack.c.h.b16 %v93
  %v815 = vunpack.c.l.b16 %v94
  %v816 = vunpack.c.h.b16 %v94
  %v817 = vunpack.c.l.b16 %v95
  %v818 = vunpack.c.h.b16 %v95
  %v819 = vunpack.c.l.b16 %v96
  %v820 = vunpack.c.h.b16 %v96
  %v821 = vunpack.c.l.b16 %v97
  %v822 = vunpack.c.h.b16 %v97
  %v823 = vunpack.c.l.b16 %v98
  %v824 = vunpack.c.h.b16 %v98
  %v825 = vunpack.c.l.b16 %v99
  %v826 = vunpack.c.h.b16 %v99
  %v827 = vunpack.c.l.b16 %v100
  %v828 = vunpack.c.h.b16 %v100
  %v829 = vunpack.c.l.b16 %v101
  %v830 = vunpack.c.h.b16 %v101
  %v831 = vunpack.c.l.b16 %v102
  %v832 = vunpack.c.h.b16 %v102
  %v833 = vunpack.c.l.b16 %v103
  %v834 = vunpack.c.h.b16 %v103
  %v835 = vunpack.c.l.b16 %v104
  %v836 = vunpack.c.h.b16 %v104
  %v837 = vunpack.c.l.b16 %v105
  %v838 = vunpack.c.h.b16 %v105
  %v839 = vunpack.c.l.b16 %v106
  %v840 = vunpack.c.h.b16 %v106
  %v841 = vunpack.c.l.b16 %v107
  %v842 = vunpack.c.h.b16 %v107
  %v843 = vunpack.c.l.b16 %v108
  %v844 = vunpack.c.h.b16 %v108
  %v845 = vunpack.c.l.b16 %v109
  %v846 = vunpack.c.h.b16 %v109
  %v847 = vunpack.c.l.b16 %v110
  %v848 = vunpack.c.h.b16 %v110
  %v849 = vunpack.c.l.b16 %v111
  %v850 = vunpack.c.h.b16 %v111
  %v851 = vunpack.c.l.b16 %v112
  %v852 = vunpack.c.h.b16 %v112
  %v853 = vunpack.c.l.b16 %v113
  %v854 = vunpack.c.h.b16 %v113
  %v855 = vunpack.c.l.b16 %v114
  %v856 = vunpack.c.h.b16 %v114
  %v857 = vunpack.c.l.b16 %v115
  %v858 = vunpack.c.h.b16 %v115
  %v859 = vunpack.c.l.b16 %v116
  %v860 = vunpack.c.h.b16 %v116
  %v861 = vunpack.c.l.b16 %v117
  %v862 = vunpack.c.h.b16 %v117
  %v863 = vunpack.c.l.b16 %v118
  %v864 = vunpack.c.h.b16 %v118
  %v865 = vunpack.c.l.b16 %v119
  %v866 = vunpack.c.h.b16 %v119
  %v867 = vunpack.c.l.b16 %v120
  %v868 = vunpack.c.h.b16 %v120
  %v869 = vunpack.c.l.b16 %v121
  %v870 = vunpack.c.h.b16 %v121
  %v871 = vunpack.c.l.b16 %v122
  %v872 = vunpack.c.h.b16 %v122
  %v873 = vunpack.c.l.b16 %v123
  %v874 = vunpack.c.h.b16 %v123
  %v875 = vunpack.c.l.b16 %v124
  %v876 = vunpack.c.h.b16 %v124
  %v877 = vunpack.c.l.b16 %v125
  %v878 = vunpack.c.h.b16 %v125
  %v879 = vunpack.c.l.b16 %v126
  %v880 = vunpack.c.h.b16 %v126
  %v881 = vunpack.c.l.b16 %v127
  %v882 = vunpack.c.h.b16 %v127
  %v883 = vunpack.c.l.b16 %v128
  %v884 = vunpack.c.h.b16 %v128
  %v885 = vunpack.c.l.b16 %v129
  %v886 = vunpack.c.h.b16 %v129
  %v887 = vunpack.c.l.b16 %v130
  %v888 = vunpack.c.h.b16 %v130
  %v889 = vunpack.c.l.b16 %v131
  %v890 = vunpack.c.h.b16 %v131
  %v891 = vunpack.c.l.b16 %v132
  %v892 = vunpack.c.h.b16 %v132
  %v893 = vunpack.c.l.b16 %v133
  %v894 = vunpack.c.h.b16 %v133
  %v895 = vunpack.c.l.b16 %v134
  %v896 = vunpack.c.h.b16 %v134
  %v897 = vunpack.c.l.b16 %v135
  %v898 = vunpack.c.h.b16 %v135
  %v899 = vunpack.c.l.b16 %v136
  %v900 = vunpack.c.h.b16 %v136
  %v901 = vunpack.c.l.b16 %v137
  %v902 = vunpack.c.h.b16 %v137
  %v903 = vunpack.c.l.b16 %v138
  %v904 = vunpack.c.h.b16 %v138
  %v905 = vunpack.c.l.b16 %v139
  %v906 = vunpack.c.h.b16 %v139
  %v907 = vunpack.c.l.b16 %v140
  %v908 = vunpack.c.h.b16 %v140
  %v909 = vunpack.c.l.b16 %v141
  %v910 = vunpack.c.h.b16 %v141
  %v911 = vunpack.c.l.b16 %v142
  %v912 = vunpack.c.h.b16 %v142
  %v913 = vunpack.c.l.b16 %v143
  %v914 = vunpack.c.h.b16 %v143
  %v915 = vunpack.c.l.b16 %v144
  %v916 = vunpack.c.h.b16 %v144
  %v917 = vunpack.c.l.b16 %v145
  %v918 = vunpack.c.h.b16 %v145
  %v919 = vunpack.c.l.b16 %v146
  %v920 = vunpack.c.h.b16 %v146
  %v921 = vunpack.c.l.b16 %v147
  %v922 = vunpack.c.h.b16 %v147
  %v923 = vunpack.c.l.b16 %v148
  %v924 = vunpack.c.h.b16 %v148
  %v925 = vunpack.c.l.b16 %v149
  %v926 = vunpack.c.h.b16 %v149
  %v927 = vunpack.c.l.b16 %v150
  %v928 = vunpack.c.h.b16 %v150
  %v929 = vunpack.c.l.b16 %v151
  %v930 = vunpack.c.h.b16 %v151
  %v931 = vunpack.c.l.b16 %v152
  %v932 = vunpack.c.h.b16 %v152
  %v933 = vunpack.c.l.b16 %v153
  %v934 = vunpack.c.h.b16 %v153
  %v935 = vunpack.c.l.b16 %v154
  %v936 = vunpack.c.h.b16 %v154
  %v937 = vunpack.c.l.b16 %v155
  %v938 = vunpack.c.h.b16 %v155
  %v939 = vunpack.c.l.b16 %v156
  %v940 = vunpack.c.h.b16 %v156
  %v941 = vunpack.c.l.b16 %v157
  %v942 = vunpack.c.h.b16 %v157
  %v943 = vunpack.c.l.b16 %v158
  %v944 = vunpack.c.h.b16 %v158
  %v945 = vunpack.c.l.b16 %v159
  %v946 = vunpack.c.h.b16 %v159
  %v947 = vunpack.c.l.b16 %v160
  %v948 = vunpack.c.h.b16 %v160
  %v949 = vunpack.c.l.b16 %v161
  %v950 = vunpack.c.h.b16 %v161
  %v951 = vunpack.c.l.b16 %v162
  %v952 = vunpack.c.h.b16 %v162
  %v953 = vunpack.c.l.b16 %v163
  %v954 = vunpack.c.h.b16 %v163
  %v955 = vunpack.c.l.b16 %v164
  %v956 = vunpack.c.h.b16 %v164
  %v957 = vunpack.c.l.b16 %v165
  %v958 = vunpack.c.h.b16 %v165
  %v959 = vunpack.c.l.b16 %v166
  %v960 = vunpack.c.h.b16 %v166
  %v961 = vunpack.c.l.b16 %v167
  %v962 = vunpack.c.h.b16 %v167
  %v963 = vunpack.c.l.b16 %v168
  %v964 = vunpack.c.h.b16 %v168
  %v965 = vunpack.c.l.b16 %v169
  %v966 = vunpack.c.h.b16 %v169
  %v967 = vunpack.c.l.b16 %v170
  %v968 = vunpack.c.h.b16 %v170
  %v969 = vunpack.c.l.b16 %v171
  %v970 = vunpack.c.h.b16 %v171
  %v971 = vunpack.c.l.b16 %v172
  %v972 = vunpack.c.h.b16 %v172
  %v973 = vunpack.c.l.b16 %v173
  %v974 = vunpack.c.h.b16 %v173
  %v975 = vunpack.c.l.b16 %v174
  %v976 = vunpack.c.h.b16 %v174
  %v977 = vunpack.c.l.b16 %v175
  %v978 = vunpack.c.h.b16 %v175
  %v979 = vunpack.c.l.b16 %v176
  %v980 = vunpack.c.h.b16 %v176
  %v981 = vunpack.c.l.b16 %v177
  %v982 = vunpack.c.h.b16 %v177
  %v983 = vunpack.c.l.b16 %v178
  %v984 = vunpack.c.h.b16 %v178
  %v985 = vunpack.c.l.b16 %v179
  %v986 = vunpack.c.h.b16 %v179
  %v987 = vunpack.c.l.b16 %v180
  %v988 = vunpack.c.h.b16 %v180
  %v989 = vunpack.c.l.b16 %v181
  %v990 = vunpack.c.h.b16 %v181
  %v991 = vunpack.c.l.b16 %v182
  %v992 = vunpack.c.h.b16 %v182
  %v993 = vunpack.c.l.b16 %v183
  %v994 = vunpack.c.h.b16 %v183
  %v995 = vunpack.c.l.b16 %v184
  %v996 = vunpack.c.h.b16 %v184
  %v997 = vunpack.c.l.b16 %v185
  %v998 = vunpack.c.h.b16 %v185
  %v999 = vunpack.c.l.b16 %v186
  %v1000 = vunpack.c.h.b16 %v186
  %v1001 = vunpack.c.l.b16 %v187
  %v1002 = vunpack.c.h.b16 %v187
  %v1003 = vunpack.c.l.b16 %v188
  %v1004 = vunpack.c.h.b16 %v188
  %v1005 = vunpack.c.l.b16 %v189
  %v1006 = vunpack.c.h.b16 %v189
  %v1007 = vunpack.c.l.b16 %v190
  %v1008 = vunpack.c.h.b16 %v190
  %v1009 = vunpack.c.l.b16 %v191
  %v1010 = vunpack.c.h.b16 %v191
  %v1011 = vunpack.c.l.b16 %v192
  %v1012 = vunpack.c.h.b16 %v192
  %v1013 = vunpack.c.l.b16 %v193
  %v1014 = vunpack.c.h.b16 %v193
  %v1015 = vunpack.c.l.b16 %v194
  %v1016 = vunpack.c.h.b16 %v194
  %v1017 = vunpack.c.l.b16 %v195
  %v1018 = vunpack.c.h.b16 %v195
  %v1019 = vunpack.c.l.b16 %v196
  %v1020 = vunpack.c.h.b16 %v196
  %v1021 = vunpack.c.l.b16 %v197
  %v1022 = vunpack.c.h.b16 %v197
  %v1023 = vunpack.c.l.b16 %v198
  %v1024 = vunpack.c.h.b16 %v198
  %v1025 = vunpack.c.l.b16 %v199
  %v1026 = vunpack.c.h.b16 %v199
  %v1027 = vunpack.c.l.b16 %v200
  %v1028 = vunpack.c.h.b16 %v200
  %v1029 = vunpack.c.l.b16 %v201
  %v1030 = vunpack.c.h.b16 %v201
  %v1031 = vunpack.c.l.b16 %v202
  %v1032 = vunpack.c.h.b16 %v202
  %v1033 = vunpack.c.l.b16 %v203
  %v1034 = vunpack.c.h.b16 %v203
  %v1035 = vunpack.c.l.b16 %v204
  %v1036 = vunpack.c.h.b16 %v204
  %v1037 = vunpack.c.l.b16 %v205
  %v1038 = vunpack.c.h.b16 %v205
  %v1039 = vunpack.c.l.b16 %v206
  %v1040 = vunpack.c.h.b16 %v206
  %v1041 = vunpack.c.l.b16 %v207
  %v1042 = vunpack.c.h.b16 %v207
  %v1043 = vunpack.c.l.b16 %v208
  %v1044 = vunpack.c.h.b16 %v208
  %v1045 = vunpack.c.l.b16 %v209
  %v1046 = vunpack.c.h.b16 %v209
  %v1047 = vunpack.c.l.b16 %v210
  %v1048 = vunpack.c.h.b16 %v210
  %v1049 = vunpack.c.l.b16 %v211
  %v1050 = vunpack.c.h.b16 %v211
  %v1051 = vunpack.c.l.b16 %v212
  %v1052 = vunpack.c.h.b16 %v212
  %v1053 = vunpack.c.l.b16 %v213
  %v1054 = vunpack.c.h.b16 %v213
  %v1055 = vunpack.c.l.b16 %v214
  %v1056 = vunpack.c.h.b16 %v214
  %v1057 = vunpack.c.l.b16 %v215
  %v1058 = vunpack.c.h.b16 %v215
  %v1059 = vunpack.c.l.b16 %v216
  %v1060 = vunpack.c.h.b16 %v216
  %v1061 = vunpack.c.l.b16 %v217
  %v1062 = vunpack.c.h.b16 %v217
  %v1063 = vunpack.c.l.b16 %v218
  %v1064 = vunpack.c.h.b16 %v218
  %v1065 = vunpack.c.l.b16 %v219
  %v1066 = vunpack.c.h.b16 %v219
  %v1067 = vunpack.c.l.b16 %v220
  %v1068 = vunpack.c.h.b16 %v220
  %v1069 = vunpack.c.l.b16 %v221
  %v1070 = vunpack.c.h.b16 %v221
  %v1071 = vunpack.c.l.b16 %v222
  %v1072 = vunpack.c.h.b16 %v222
  %v1073 = vunpack.c.l.b16 %v223
  %v1074 = vunpack.c.h.b16 %v223
  %v1075 = vunpack.c.l.b16 %v224
  %v1076 = vunpack.c.h.b16 %v224
  %v1077 = vunpack.c.l.b16 %v225
  %v1078 = vunpack.c.h.b16 %v225
  %v1079 = vunpack.c.l.b16 %v226
  %v1080 = vunpack.c.h.b16 %v226
  %v1081 = vunpack.c.l.b16 %v227
  %v1082 = vunpack.c.h.b16 %v227
  %v1083 = vunpack.c.l.b16 %v228
  %v1084 = vunpack.c.h.b16 %v228
  %v1085 = vunpack.c.l.b16 %v229
  %v1086 = vunpack.c.h.b16 %v229
  %v1087 = vunpack.c.l.b16 %v230
  %v1088 = vunpack.c.h.b16 %v230
  %v1089 = vunpack.c.l.b16 %v231
  %v1090 = vunpack.c.h.b16 %v231
  %v1091 = vunpack.c.l.b16 %v232
  %v1092 = vunpack.c.h.b16 %v232
  %v1093 = vunpack.c.l.b16 %v233
  %v1094 = vunpack.c.h.b16 %v233
  %v1095 = vunpack.c.l.b16 %v234
  %v1096 = vunpack.c.h.b16 %v234
  %v1097 = vunpack.c.l.b16 %v235
  %v1098 = vunpack.c.h.b16 %v235
  %v1099 = vunpack.c.l.b16 %v236
  %v1100 = vunpack.c.h.b16 %v236
  %v1101 = vunpack.c.l.b16 %v237
  %v1102 = vunpack.c.h.b16 %v237
  %v1103 = vunpack.c.l.b16 %v238
  %v1104 = vunpack.c.h.b16 %v238
  %v1105 = vunpack.c.l.b16 %v239
  %v1106 = vunpack.c.h.b16 %v239
  %v1107 = vunpack.c.l.b16 %v240
  %v1108 = vunpack.c.h.b16 %v240
  %v1109 = vunpack.c.l.b16 %v241
  %v1110 = vunpack.c.h.b16 %v241
  %v1111 = vunpack.c.l.b16 %v242
  %v1112 = vunpack.c.h.b16 %v242
  %v1113 = vunpack.c.l.b16 %v243
  %v1114 = vunpack.c.h.b16 %v243
  %v1115 = vunpack.c.l.b16 %v244
  %v1116 = vunpack.c.h.b16 %v244
  %v1117 = vunpack.c.l.b16 %v245
  %v1118 = vunpack.c.h.b16 %v245
  %v1119 = vunpack.c.l.b16 %v246
  %v1120 = vunpack.c.h.b16 %v246
  %v1121 = vunpack.c.l.b16 %v247
  %v1122 = vunpack.c.h.b16 %v247
  %v1123 = vunpack.c.l.b16 %v248
  %v1124 = vunpack.c.h.b16 %v248
  %v1125 = vunpack.c.l.b16 %v249
  %v1126 = vunpack.c.h.b16 %v249
  %v1127 = vunpack.c.l.b16 %v250
  %v1128 = vunpack.c.h.b16 %v250
  %v1129 = vunpack.c.l.b16 %v251
  %v1130 = vunpack.c.h.b16 %v251
  %v1131 = vunpack.c.l.b16 %v252
  %v1132 = vunpack.c.h.b16 %v252
  %v1133 = vunpack.c.l.b16 %v253
  %v1134 = vunpack.c.h.b16 %v253
  %v1135 = vunpack.c.l.b16 %v254
  %v1136 = vunpack.c.h.b16 %v254
  %v1137 = vunpack.c.l.b16 %v255
  %v1138 = vunpack.c.h.b16 %v255
  %v1139 = vunpack.c.l.b16 %v256
  %v1140 = vunpack.c.h.b16 %v256
  %v1141 = vunpack.c.l.b16 %v257
  %v1142 = vunpack.c.h.b16 %v257
  %v1143 = vunpack.c.l.b16 %v258
  %v1144 = vunpack.c.h.b16 %v258
  %v1145 = vunpack.c.l.b16 %v259
  %v1146 = vunpack.c.h.b16 %v259
  %v1147 = vunpack.c.l.b16 %v260
  %v1148 = vunpack.c.h.b16 %v260
  %v1149 = vunpack.c.l.b16 %v261
  %v1150 = vunpack.c.h.b16 %v261
  %v1151 = vunpack.c.l.b16 %v262
  %v1152 = vunpack.c.h.b16 %v262
  %v1153 = vunpack.c.l.b16 %v263
  %v1154 = vunpack.c.h.b16 %v263
  %v1155 = vunpack.c.l.b16 %v264
  %v1156 = vunpack.c.h.b16 %v264
  %v1157 = vunpack.c.l.b16 %v265
  %v1158 = vunpack.c.h.b16 %v265
  %v1159 = vunpack.c.l.b16 %v266
  %v1160 = vunpack.c.h.b16 %v266
  %v1161 = vunpack.c.l.b16 %v267
  %v1162 = vunpack.c.h.b16 %v267
  %v1163 = vunpack.c.l.b16 %v268
  %v1164 = vunpack.c.h.b16 %v268
  %v1165 = vunpack.c.l.b16 %v269
  %v1166 = vunpack.c.h.b16 %v269
  %v1167 = vunpack.c.l.b16 %v270
  %v1168 = vunpack.c.h.b16 %v270
  %v1169 = vunpack.c.l.b16 %v271
  %v1170 = vunpack.c.h.b16 %v271
  %v1171 = vunpack.c.l.b16 %v272
  %v1172 = vunpack.c.h.b16 %v272
  %v1173 = vunpack.c.l.b16 %v273
  %v1174 = vunpack.c.h.b16 %v273
  %v1175 = vunpack.c.l.b16 %v274
  %v1176 = vunpack.c.h.b16 %v274
  %v1177 = vunpack.c.l.b16 %v275
  %v1178 = vunpack.c.h.b16 %v275
  %v1179 = vunpack.c.l.b16 %v276
  %v1180 = vunpack.c.h.b16 %v276
  %v1181 = vunpack.c.l.b16 %v277
  %v1182 = vunpack.c.h.b16 %v277
  %v1183 = vunpack.c.l.b16 %v278
  %v1184 = vunpack.c.h.b16 %v278
  %v1185 = vunpack.c.l.b16 %v279
  %v1186 = vunpack.c.h.b16 %v279
  %v1187 = vunpack.c.l.b16 %v280
  %v1188 = vunpack.c.h.b16 %v280
  %v1189 = vunpack.c.l.b16 %v281
  %v1190 = vunpack.c.h.b16 %v281
  %v1191 = vunpack.c.l.b16 %v282
  %v1192 = vunpack.c.h.b16 %v282
  %v1193 = vunpack.c.l.b16 %v283
  %v1194 = vunpack.c.h.b16 %v283
  %v1195 = vunpack.c.l.b16 %v284
  %v1196 = vunpack.c.h.b16 %v284
  %v1197 = vunpack.c.l.b16 %v285
  %v1198 = vunpack.c.h.b16 %v285
  %v1199 = vunpack.c.l.b16 %v286
  %v1200 = vunpack.c.h.b16 %v286
  %v1201 = vunpack.c.l.b16 %v287
  %v1202 = vunpack.c.h.b16 %v287
  %v1203 = vunpack.c.l.b16 %v288
  %v1204 = vunpack.c.h.b16 %v288
  %v1205 = vunpack.c.l.b16 %v289
  %v1206 = vunpack.c.h.b16 %v289
  %v1207 = vunpack.c.l.b16 %v290
  %v1208 = vunpack.c.h.b16 %v290
  %v1209 = vunpack.c.l.b16 %v291
  %v1210 = vunpack.c.h.b16 %v291
  %v1211 = vunpack.c.l.b16 %v292
  %v1212 = vunpack.c.h.b16 %v292
  %v1213 = vunpack.c.l.b16 %v293
  %v1214 = vunpack.c.h.b16 %v293
  %v1215 = vunpack.c.l.b16 %v294
  %v1216 = vunpack.c.h.b16 %v294
  %v1217 = vunpack.c.l.b16 %v295
  %v1218 = vunpack.c.h.b16 %v295
  %v1219 = vunpack.c.l.b16 %v296
  %v1220 = vunpack.c.h.b16 %v296
  %v1221 = vunpack.c.l.b16 %v297
  %v1222 = vunpack.c.h.b16 %v297
  %v1223 = vunpack.c.l.b16 %v298
  %v1224 = vunpack.c.h.b16 %v298
  %v1225 = vunpack.c.l.b16 %v299
  %v1226 = vunpack.c.h.b16 %v299
  %v1227 = vunpack.c.l.b16 %v300
  %v1228 = vunpack.c.h.b16 %v300
  %v1229 = vpack.c.b16 %v719, %v717
  %v1230 = vpack.c.b16 %v720, %v718
  %v1231 = vpack.c.b16 %v723, %v721
  %v1232 = vpack.c.b16 %v724, %v722
  %v1233 = vpack.c.b16 %v727, %v725
  %v1234 = vpack.c.b16 %v728, %v726
  %v1235 = vpack.c.b16 %v731, %v729
  %v1236 = vpack.c.b16 %v732, %v730
  %v1237 = vpack.c.b16 %v735, %v733
  %v1238 = vpack.c.b16 %v736, %v734
  %v1239 = vpack.c.b16 %v739, %v737
  %v1240 = vpack.c.b16 %v740, %v738
  %v1241 = vpack.c.b16 %v743, %v741
  %v1242 = vpack.c.b16 %v744, %v742
  %v1243 = vpack.c.b16 %v747, %v745
  %v1244 = vpack.c.b16 %v748, %v746
  %v1245 = vpack.c.b16 %v751, %v749
  %v1246 = vpack.c.b16 %v752, %v750
  %v1247 = vpack.c.b16 %v755, %v753
  %v1248 = vpack.c.b16 %v756, %v754
  %v1249 = vpack.c.b16 %v759, %v757
  %v1250 = vpack.c.b16 %v760, %v758
  %v1251 = vpack.c.b16 %v763, %v761
  %v1252 = vpack.c.b16 %v764, %v762
  %v1253 = vpack.c.b16 %v767, %v765
  %v1254 = vpack.c.b16 %v768, %v766
  %v1255 = vpack.c.b16 %v771, %v769
  %v1256 = vpack.c.b16 %v772, %v770
  %v1257 = vpack.c.b16 %v775, %v773
  %v1258 = vpack.c.b16 %v776, %v774
  %v1259 = vpack.c.b16 %v779, %v777
  %v1260 = vpack.c.b16 %v780, %v778
  %v1261 = vpack.c.b16 %v783, %v781
  %v1262 = vpack.c.b16 %v784, %v782
  %v1263 = vpack.c.b16 %v787, %v785
  %v1264 = vpack.c.b16 %v788, %v786
  %v1265 = vpack.c.b16 %v791, %v789
  %v1266 = vpack.c.b16 %v792, %v790
  %v1267 = vpack.c.b16 %v795, %v793
  %v1268 = vpack.c.b16 %v796, %v794
  %v1269 = vpack.c.b16 %v799, %v797
  %v1270 = vpack.c.b16 %v800, %v798
  %v1271 = vpack.c.b16 %v803, %v801
  %v1272 = vpack.c.b16 %v804, %v802
  %v1273 = vpack.c.b16 %v807, %v805
  %v1274 = vpack.c.b16 %v808, %v806
  %v1275 = vpack.c.b16 %v811, %v809
  %v1276 = vpack.c.b16 %v812, %v810
  %v1277 = vpack.c.b16 %v815, %v813
  %v1278 = vpack.c.b16 %v816, %v814
  %v1279 = vpack.c.b16 %v819, %v817
  %v1280 = vpack.c.b16 %v820, %v818
  %v1281 = vpack.c.b16 %v823, %v821
  %v1282 = vpack.c.b16 %v824, %v822
  %v1283 = vpack.c.b16 %v827, %v825
  %v1284 = vpack.c.b16 %v828, %v826
  %v1285 = vpack.c.b16 %v831, %v829
  %v1286 = vpack.c.b16 %v832, %v830
  %v1287 = vpack.c.b16 %v835, %v833
  %v1288 = vpack.c.b16 %v836, %v834
  %v1289 = vpack.c.b16 %v839, %v837
  %v1290 = vpack.c.b16 %v840, %v838
  %v1291 = vpack.c.b16 %v843, %v841
  %v1292 = vpack.c.b16 %v844, %v842
  %v1293 = vpack.c.b16 %v847, %v845
  %v1294 = vpack.c.b16 %v848, %v846
  %v1295 = vpack.c.b16 %v851, %v849
  %v1296 = vpack.c.b16 %v852, %v850
  %v1297 = vpack.c.b16 %v855, %v853
  %v1298 = vpack.c.b16 %v856, %v854
  %v1299 = vpack.c.b16 %v859, %v857
  %v1300 = vpack.c.b16 %v860, %v858
  %v1301 = vpack.c.b16 %v863, %v861
  %v1302 = vpack.c.b16 %v864, %v862
  %v1303 = vpack.c.b16 %v867, %v865
  %v1304 = vpack.c.b16 %v868, %v866
  %v1305 = vpack.c.b16 %v871, %v869
  %v1306 = vpack.c.b16 %v872, %v870
  %v1307 = vpack.c.b16 %v875, %v873
  %v1308 = vpack.c.b16 %v876, %v874
  %v1309 = vpack.c.b16 %v879, %v877
  %v1310 = vpack.c.b16 %v880, %v878
  %v1311 = vpack.c.b16 %v883, %v881
  %v1312 = vpack.c.b16 %v884, %v882
  %v1313 = vpack.c.b16 %v887, %v885
  %v1314 = vpack.c.b16 %v888, %v886
  %v1315 = vpack.c.b16 %v891, %v889
  %v1316 = vpack.c.b16 %v892, %v890
  %v1317 = vpack.c.b16 %v895, %v893
  %v1318 = vpack.c.b16 %v896, %v894
  %v1319 = vpack.c.b16 %v899, %v897
  %v1320 = vpack.c.b16 %v900, %v898
  %v1321 = vpack.c.b16 %v903, %v901
  %v1322 = vpack.c.b16 %v904, %v902
  %v1323 = vpack.c.b16 %v907, %v905
  %v1324 = vpack.c.b16 %v908, %v906
  %v1325 = vpack.c.b16 %v911, %v909
  %v1326 = vpack.c.b16 %v912, %v910
  %v1327 = vpack.c.b16 %v915, %v913
  %v1328 = vpack.c.b16 %v916, %v914
  %v1329 = vpack.c.b16 %v919, %v917
  %v1330 = vpack.c.b16 %v920, %v918
  %v1331 = vpack.c.b16 %v923, %v921
  %v1332 = vpack.c.b16 %v924, %v922
  %v1333 = vpack.c.b16 %v927, %v925
  %v1334 = vpack.c.b16 %v928, %v926
  %v1335 = vpack.c.b16 %v931, %v929
  %v1336 = vpack.c.b16 %v932, %v930
  %v1337 = vpack.c.b16 %v935, %v933
  %v1338 = vpack.c.b16 %v936, %v934
  %v1339 = vpack.c.b16 %v939, %v937
  %v1340 = vpack.c.b16 %v940, %v938
  %v1341 = vpack.c.b16 %v943, %v941
  %v1342 = vpack.c.b16 %v944, %v942
  %v1343 = vpack.c.b16 %v947, %v945
  %v1344 = vpack.c.b16 %v948, %v946
  %v1345 = vpack.c.b16 %v951, %v949
  %v1346 = vpack.c.b16 %v952, %v950
  %v1347 = vpack.c.b16 %v955, %v953
  %v1348 = vpack.c.b16 %v956, %v954
  %v1349 = vpack.c.b16 %v959, %v957
  %v1350 = vpack.c.b16 %v960, %v958
  %v1351 = vpack.c.b16 %v963, %v961
  %v1352 = vpack.c.b16 %v964, %v962
  %v1353 = vpack.c.b16 %v967, %v965
  %v1354 = vpack.c.b16 %v968, %v966
  %v1355 = vpack.c.b16 %v971, %v969
  %v1356 = vpack.c.b16 %v972, %v970
  %v1357 = vpack.c.b16 %v975, %v973
  %v1358 = vpack.c.b16 %v976, %v974
  %v1359 = vpack.c.b16 %v979, %v977
  %v1360 = vpack.c.b16 %v980, %v978
  %v1361 = vpack.c.b16 %v983, %v981
  %v1362 = vpack.c.b16 %v984, %v982
  %v1363 = vpack.c.b16 %v987, %v985
  %v1364 = vpack.c.b16 %v988, %v986
  %v1365 = vpack.c.b16 %v991, %v989
  %v1366 = vpack.c.b16 %v992, %v990
  %v1367 = vpack.c.b16 %v995, %v993
  %v1368 = vpack.c.b16 %v996, %v994
  %v1369 = vpack.c.b16 %v999, %v997
  %v1370 = vpack.c.b16 %v1000, %v998
  %v1371 = vpack.c.b16 %v1003, %v1001
  %v1372 = vpack.c.b16 %v1004, %v1002
  %v1373 = vpack.c.b16 %v1007, %v1005
  %v1374 = vpack.c.b16 %v1008, %v1006
  %v1375 = vpack.c.b16 %v1011, %v1009
  %v1376 = vpack.c.b16 %v1012, %v1010
  %v1377 = vpack.c.b16 %v1015, %v1013
  %v1378 = vpack.c.b16 %v1016, %v1014
  %v1379 = vpack.c.b16 %v1019, %v1017
  %v1380 = vpack.c.b16 %v1020, %v1018
  %v1381 = vpack.c.b16 %v1023, %v1021
  %v1382 = vpack.c.b16 %v1024, %v1022
  %v1383 = vpack.c.b16 %v1027, %v1025
  %v1384 = vpack.c.b16 %v1028, %v1026
  %v1385 = vpack.c.b16 %v1031, %v1029
  %v1386 = vpack.c.b16 %v1032, %v1030
  %v1387 = vpack.c.b16 %v1035, %v1033
  %v1388 = vpack.c.b16 %v1036, %v1034
  %v1389 = vpack.c.b16 %v1039, %v1037
  %v1390 = vpack.c.b16 %v1040, %v1038
  %v1391 = vpack.c.b16 %v1043, %v1041
  %v1392 = vpack.c.b16 %v1044, %v1042
  %v1393 = vpack.c.b16 %v1047, %v1045
  %v1394 = vpack.c.b16 %v1048, %v1046
  %v1395 = vpack.c.b16 %v1051, %v1049
  %v1396 = vpack.c.b16 %v1052, %v1050
  %v1397 = vpack.c.b16 %v1055, %v1053
  %v1398 = vpack.c.b16 %v1056, %v1054
  %v1399 = vpack.c.b16 %v1059, %v1057
  %v1400 = vpack.c.b16 %v1060, %v1058
  %v1401 = vpack.c.b16 %v1063, %v1061
  %v1402 = vpack.c.b16 %v1064, %v1062
  %v1403 = vpack.c.b16 %v1067, %v1065
  %v1404 = vpack.c.b16 %v1068, %v1066
  %v1405 = vpack.c.b16 %v1071, %v1069
  %v1406 = vpack.c.b16 %v1072, %v1070
  %v1407 = vpack.c.b16 %v1075, %v1073
  %v1408 = vpack.c.b16 %v1076, %v1074
  %v1409 = vpack.c.b16 %v1079, %v1077
  %v1410 = vpack.c.b16 %v1080, %v1078
  %v1411 = vpack.c.b16 %v1083, %v1081
  %v1412 = vpack.c.b16 %v1084, %v1082
  %v1413 = vpack.c.b16 %v1087, %v1085
  %v1414 = vpack.c.b16 %v1088, %v1086
  %v1415 = vpack.c.b16 %v1091, %v1089
  %v1416 = vpack.c.b16 %v1092, %v1090
  %v1417 = vpack.c.b16 %v1095, %v1093
  %v1418 = vpack.c.b16 %v1096, %v1094
  %v1419 = vpack.c.b16 %v1099, %v1097
  %v1420 = vpack.c.b16 %v1100, %v1098
  %v1421 = vpack.c.b16 %v1103, %v1101
  %v1422 = vpack.c.b16 %v1104, %v1102
  %v1423 = vpack.c.b16 %v1107, %v1105
  %v1424 = vpack.c.b16 %v1108, %v1106
  %v1425 = vpack.c.b16 %v1111, %v1109
  %v1426 = vpack.c.b16 %v1112, %v1110
  %v1427 = vpack.c.b16 %v1115, %v1113
  %v1428 = vpack.c.b16 %v1116, %v1114
  %v1429 = vpack.c.b16 %v1119, %v1117
  %v1430 = vpack.c.b16 %v1120, %v1118
  %v1431 = vpack.c.b16 %v1123, %v1121
  %v1432 = vpack.c.b16 %v1124, %v1122
  %v1433 = vpack.c.b16 %v1127, %v1125
  %v1434 = vpack.c.b16 %v1128, %v1126
  %v1435 = vpack.c.b16 %v1131, %v1129
  %v1436 = vpack.c.b16 %v1132, %v1130
  %v1437 = vpack.c.b16 %v1135, %v1133
  %v1438 = vpack.c.b16 %v1136, %v1134
  %v1439 = vpack.c.b16 %v1139, %v1137
  %v1440 = vpack.c.b16 %v1140, %v1138
  %v1441 = vpack.c.b16 %v1143, %v1141
  %v1442 = vpack.c.b16 %v1144, %v1142
  %v1443 = vpack.c.b16 %v1147, %v1145
  %v1444 = vpack.c.b16 %v1148, %v1146
  %v1445 = vpack.c.b16 %v1151, %v1149
  %v1446 = vpack.c.b16 %v1152, %v1150
  %v1447 = vpack.c.b16 %v1155, %v1153
  %v1448 = vpack.c.b16 %v1156, %v1154
  %v1449 = vpack.c.b16 %v1159, %v1157
  %v1450 = vpack.c.b16 %v1160, %v1158
  %v1451 = vpack.c.b16 %v1163, %v1161
  %v1452 = vpack.c.b16 %v1164, %v1162
  %v1453 = vpack.c.b16 %v1167, %v1165
  %v1454 = vpack.c.b16 %v1168, %v1166
  %v1455 = vpack.c.b16 %v1171, %v1169
  %v1456 = vpack.c.b16 %v1172, %v1170
  %v1457 = vpack.c.b16 %v1175, %v1173
  %v1458 = vpack.c.b16 %v1176, %v1174
  %v1459 = vpack.c.b16 %v1179, %v1177
  %v1460 = vpack.c.b16 %v1180, %v1178
  %v1461 = vpack.c.b16 %v1183, %v1181
  %v1462 = vpack.c.b16 %v1184, %v1182
  %v1463 = vpack.c.b16 %v1187, %v1185
  %v1464 = vpack.c.b16 %v1188, %v1186
  %v1465 = vpack.c.b16 %v1191, %v1189
  %v1466 = vpack.c.b16 %v1192, %v1190
  %v1467 = vpack.c.b16 %v1195, %v1193
  %v1468 = vpack.c.b16 %v1196, %v1194
  %v1469 = vpack.c.b16 %v1199, %v1197
  %v1470 = vpack.c.b16 %v1200, %v1198
  %v1471 = vpack.c.b16 %v1203, %v1201
  %v1472 = vpack.c.b16 %v1204, %v1202
  %v1473 = vpack.c.b16 %v1207, %v1205
  %v1474 = vpack.c.b16 %v1208, %v1206
  %v1475 = vpack.c.b16 %v1211, %v1209
  %v1476 = vpack.c.b16 %v1212, %v1210
  %v1477 = vpack.c.b16 %v1215, %v1213
  %v1478 = vpack.c.b16 %v1216, %v1214
  %v1479 = vpack.c.b16 %v1219, %v1217
  %v1480 = vpack.c.b16 %v1220, %v1218
  %v1481 = vpack.c.b16 %v1223, %v1221
  %v1482 = vpack.c.b16 %v1224, %v1222
  %v1483 = vpack.c.b16 %v1227, %v1225
  %v1484 = vpack.c.b16 %v1228, %v1226
  %1741 = vmatprep.subr.bf16.mxu0 %v1230
  %1742 = vmatpush1.bf16.msra.mxu0 %v1229
  %1743 = vmatprep.subr.bf16.mxu0 %v1232
  %1744 = vmatpush1.bf16.msra.mxu0 %v1231
  %1745 = vmatprep.subr.bf16.mxu0 %v1234
  %1746 = vmatpush1.bf16.msra.mxu0 %v1233
  %1747 = vmatprep.subr.bf16.mxu0 %v1236
  %1748 = vmatpush1.bf16.msra.mxu0 %v1235
  %1749 = vmatprep.subr.bf16.mxu0 %v1238
  %1750 = vmatpush1.bf16.msra.mxu0 %v1237
  %1751 = vmatprep.subr.bf16.mxu0 %v1240
  %1752 = vmatpush1.bf16.msra.mxu0 %v1239
  %1753 = vmatprep.subr.bf16.mxu0 %v1242
  %1754 = vmatpush1.bf16.msra.mxu0 %v1241
  %1755 = vmatprep.subr.bf16.mxu0 %v1244
  %1756 = vmatpush1.bf16.msra.mxu0 %v1243
  %1757 = vmatprep.subr.bf16.mxu0 %v1246
  %1758 = vmatpush1.bf16.msra.mxu0 %v1245
  %1759 = vmatprep.subr.bf16.mxu0 %v1248
  %1760 = vmatpush1.bf16.msra.mxu0 %v1247
  %1761 = vmatprep.subr.bf16.mxu0 %v1250
  %1762 = vmatpush1.bf16.msra.mxu0 %v1249
  %1763 = vmatprep.subr.bf16.mxu0 %v1252
  %1764 = vmatpush1.bf16.msra.mxu0 %v1251
  %1765 = vmatprep.subr.bf16.mxu0 %v1254
  %1766 = vmatpush1.bf16.msra.mxu0 %v1253
  %1767 = vmatprep.subr.bf16.mxu0 %v1256
  %1768 = vmatpush1.bf16.msra.mxu0 %v1255
  %1769 = vmatprep.subr.bf16.mxu0 %v1258
  %1770 = vmatpush1.bf16.msra.mxu0 %v1257
  %1771 = vmatprep.subr.bf16.mxu0 %v1260
  %1772 = vmatpush1.bf16.msra.mxu0 %v1259
  %1773 = vmatprep.mubr.bf16.mxu0 %v398
  %1774 = vmatmul.mubr.bf16.gmra.mrb[0].mxu0 %v397
  %v1775 = vpop.f32.mrb[0].mxu0
  %v1776 = vadd.f32 0.0, %v1775
  %v1777 = vpop.f32.mrb[0].mxu0
  %v1778 = vadd.f32 0.0, %v1777
  %v1779 = vpop.f32.mrb[0].mxu0
  %v1780 = vadd.f32 0.0, %v1779
  %v1781 = vpop.f32.mrb[0].mxu0
  %v1782 = vadd.f32 0.0, %v1781
  %1783 = vmatprep.mubr.bf16.mxu0 %v414
  %1784 = vmatmul.mubr.bf16.gmra.mrb[0].mxu0 %v413
  %v1785 = vpop.f32.mrb[0].mxu0
  %v1786 = vadd.f32 0.0, %v1785
  %v1787 = vpop.f32.mrb[0].mxu0
  %v1788 = vadd.f32 0.0, %v1787
  %v1789 = vpop.f32.mrb[0].mxu0
  %v1790 = vadd.f32 0.0, %v1789
  %v1791 = vpop.f32.mrb[0].mxu0
  %v1792 = vadd.f32 0.0, %v1791
  %1793 = vdwg.mxu0
  %1794 = vmatprep.subr.bf16.mxu0 %v1262
  %1795 = vmatpush1.bf16.msra.mxu0 %v1261
  %1796 = vmatprep.subr.bf16.mxu0 %v1264
  %1797 = vmatpush1.bf16.msra.mxu0 %v1263
  %1798 = vmatprep.subr.bf16.mxu0 %v1266
  %1799 = vmatpush1.bf16.msra.mxu0 %v1265
  %1800 = vmatprep.subr.bf16.mxu0 %v1268
  %1801 = vmatpush1.bf16.msra.mxu0 %v1267
  %1802 = vmatprep.subr.bf16.mxu0 %v1270
  %1803 = vmatpush1.bf16.msra.mxu0 %v1269
  %1804 = vmatprep.subr.bf16.mxu0 %v1272
  %1805 = vmatpush1.bf16.msra.mxu0 %v1271
  %1806 = vmatprep.subr.bf16.mxu0 %v1274
  %1807 = vmatpush1.bf16.msra.mxu0 %v1273
  %1808 = vmatprep.subr.bf16.mxu0 %v1276
  %1809 = vmatpush1.bf16.msra.mxu0 %v1275
  %1810 = vmatprep.subr.bf16.mxu0 %v1278
  %1811 = vmatpush1.bf16.msra.mxu0 %v1277
  %1812 = vmatprep.subr.bf16.mxu0 %v1280
  %1813 = vmatpush1.bf16.msra.mxu0 %v1279
  %1814 = vmatprep.subr.bf16.mxu0 %v1282
  %1815 = vmatpush1.bf16.msra.mxu0 %v1281
  %1816 = vmatprep.subr.bf16.mxu0 %v1284
  %1817 = vmatpush1.bf16.msra.mxu0 %v1283
  %1818 = vmatprep.subr.bf16.mxu0 %v1286
  %1819 = vmatpush1.bf16.msra.mxu0 %v1285
  %1820 = vmatprep.subr.bf16.mxu0 %v1288
  %1821 = vmatpush1.bf16.msra.mxu0 %v1287
  %1822 = vmatprep.subr.bf16.mxu0 %v1290
  %1823 = vmatpush1.bf16.msra.mxu0 %v1289
  %1824 = vmatprep.subr.bf16.mxu0 %v1292
  %1825 = vmatpush1.bf16.msra.mxu0 %v1291
  %1826 = vmatprep.mubr.bf16.mxu0 %v400
  %1827 = vmatmul.mubr.bf16.gmra.mrb[0].mxu0 %v399
  %v1828 = vpop.f32.mrb[0].mxu0
  %v1829 = vadd.f32 %v1776, %v1828
  %v1830 = vpop.f32.mrb[0].mxu0
  %v1831 = vadd.f32 %v1778, %v1830
  %v1832 = vpop.f32.mrb[0].mxu0
  %v1833 = vadd.f32 %v1780, %v1832
  %v1834 = vpop.f32.mrb[0].mxu0
  %v1835 = vadd.f32 %v1782, %v1834
  %1836 = vmatprep.mubr.bf16.mxu0 %v416
  %1837 = vmatmul.mubr.bf16.gmra.mrb[0].mxu0 %v415
  %v1838 = vpop.f32.mrb[0].mxu0
  %v1839 = vadd.f32 %v1786, %v1838
  %v1840 = vpop.f32.mrb[0].mxu0
  %v1841 = vadd.f32 %v1788, %v1840
  %v1842 = vpop.f32.mrb[0].mxu0
  %v1843 = vadd.f32 %v1790, %v1842
  %v1844 = vpop.f32.mrb[0].mxu0
  %v1845 = vadd.f32 %v1792, %v1844
  %1846 = vdwg.mxu0
  %1847 = vmatprep.subr.bf16.mxu0 %v1294
  %1848 = vmatpush1.bf16.msra.mxu0 %v1293
  %1849 = vmatprep.subr.bf16.mxu0 %v1296
  %1850 = vmatpush1.bf16.msra.mxu0 %v1295
  %1851 = vmatprep.subr.bf16.mxu0 %v1298
  %1852 = vmatpush1.bf16.msra.mxu0 %v1297
  %1853 = vmatprep.subr.bf16.mxu0 %v1300
  %1854 = vmatpush1.bf16.msra.mxu0 %v1299
  %1855 = vmatprep.subr.bf16.mxu0 %v1302
  %1856 = vmatpush1.bf16.msra.mxu0 %v1301
  %1857 = vmatprep.subr.bf16.mxu0 %v1304
  %1858 = vmatpush1.bf16.msra.mxu0 %v1303
  %1859 = vmatprep.subr.bf16.mxu0 %v1306
  %1860 = vmatpush1.bf16.msra.mxu0 %v1305
  %1861 = vmatprep.subr.bf16.mxu0 %v1308
  %1862 = vmatpush1.bf16.msra.mxu0 %v1307
  %1863 = vmatprep.subr.bf16.mxu0 %v1310
  %1864 = vmatpush1.bf16.msra.mxu0 %v1309
  %1865 = vmatprep.subr.bf16.mxu0 %v1312
  %1866 = vmatpush1.bf16.msra.mxu0 %v1311
  %1867 = vmatprep.subr.bf16.mxu0 %v1314
  %1868 = vmatpush1.bf16.msra.mxu0 %v1313
  %1869 = vmatprep.subr.bf16.mxu0 %v1316
  %1870 = vmatpush1.bf16.msra.mxu0 %v1315
  %1871 = vmatprep.subr.bf16.mxu0 %v1318
  %1872 = vmatpush1.bf16.msra.mxu0 %v1317
  %1873 = vmatprep.subr.bf16.mxu0 %v1320
  %1874 = vmatpush1.bf16.msra.mxu0 %v1319
  %1875 = vmatprep.subr.bf16.mxu0 %v1322
  %1876 = vmatpush1.bf16.msra.mxu0 %v1321
  %1877 = vmatprep.subr.bf16.mxu0 %v1324
  %1878 = vmatpush1.bf16.msra.mxu0 %v1323
  %1879 = vmatprep.mubr.bf16.mxu0 %v402
  %1880 = vmatmul.mubr.bf16.gmra.mrb[0].mxu0 %v401
  %v1881 = vpop.f32.mrb[0].mxu0
  %v1882 = vadd.f32 %v1829, %v1881
  %v1883 = vpop.f32.mrb[0].mxu0
  %v1884 = vadd.f32 %v1831, %v1883
  %v1885 = vpop.f32.mrb[0].mxu0
  %v1886 = vadd.f32 %v1833, %v1885
  %v1887 = vpop.f32.mrb[0].mxu0
  %v1888 = vadd.f32 %v1835, %v1887
  %1889 = vmatprep.mubr.bf16.mxu0 %v418
  %1890 = vmatmul.mubr.bf16.gmra.mrb[0].mxu0 %v417
  %v1891 = vpop.f32.mrb[0].mxu0
  %v1892 = vadd.f32 %v1839, %v1891
  %v1893 = vpop.f32.mrb[0].mxu0
  %v1894 = vadd.f32 %v1841, %v1893
  %v1895 = vpop.f32.mrb[0].mxu0
  %v1896 = vadd.f32 %v1843, %v1895
  %v1897 = vpop.f32.mrb[0].mxu0
  %v1898 = vadd.f32 %v1845, %v1897
  %1899 = vdwg.mxu0
  %1900 = vmatprep.subr.bf16.mxu0 %v1326
  %1901 = vmatpush1.bf16.msra.mxu0 %v1325
  %1902 = vmatprep.subr.bf16.mxu0 %v1328
  %1903 = vmatpush1.bf16.msra.mxu0 %v1327
  %1904 = vmatprep.subr.bf16.mxu0 %v1330
  %1905 = vmatpush1.bf16.msra.mxu0 %v1329
  %1906 = vmatprep.subr.bf16.mxu0 %v1332
  %1907 = vmatpush1.bf16.msra.mxu0 %v1331
  %1908 = vmatprep.subr.bf16.mxu0 %v1334
  %1909 = vmatpush1.bf16.msra.mxu0 %v1333
  %1910 = vmatprep.subr.bf16.mxu0 %v1336
  %1911 = vmatpush1.bf16.msra.mxu0 %v1335
  %1912 = vmatprep.subr.bf16.mxu0 %v1338
  %1913 = vmatpush1.bf16.msra.mxu0 %v1337
  %1914 = vmatprep.subr.bf16.mxu0 %v1340
  %1915 = vmatpush1.bf16.msra.mxu0 %v1339
  %1916 = vmatprep.subr.bf16.mxu0 %v1342
  %1917 = vmatpush1.bf16.msra.mxu0 %v1341
  %1918 = vmatprep.subr.bf16.mxu0 %v1344
  %1919 = vmatpush1.bf16.msra.mxu0 %v1343
  %1920 = vmatprep.subr.bf16.mxu0 %v1346
  %1921 = vmatpush1.bf16.msra.mxu0 %v1345
  %1922 = vmatprep.subr.bf16.mxu0 %v1348
  %1923 = vmatpush1.bf16.msra.mxu0 %v1347
  %1924 = vmatprep.subr.bf16.mxu0 %v1350
  %1925 = vmatpush1.bf16.msra.mxu0 %v1349
  %1926 = vmatprep.subr.bf16.mxu0 %v1352
  %1927 = vmatpush1.bf16.msra.mxu0 %v1351
  %1928 = vmatprep.subr.bf16.mxu0 %v1354
  %1929 = vmatpush1.bf16.msra.mxu0 %v1353
  %1930 = vmatprep.subr.bf16.mxu0 %v1356
  %1931 = vmatpush1.bf16.msra.mxu0 %v1355
  %1932 = vmatprep.mubr.bf16.mxu0 %v404
  %1933 = vmatmul.mubr.bf16.gmra.mrb[0].mxu0 %v403
  %v1934 = vpop.f32.mrb[0].mxu0
  %v1935 = vadd.f32 %v1882, %v1934
  %v1936 = vpop.f32.mrb[0].mxu0
  %v1937 = vadd.f32 %v1884, %v1936
  %v1938 = vpop.f32.mrb[0].mxu0
  %v1939 = vadd.f32 %v1886, %v1938
  %v1940 = vpop.f32.mrb[0].mxu0
  %v1941 = vadd.f32 %v1888, %v1940
  %1942 = vmatprep.mubr.bf16.mxu0 %v420
  %1943 = vmatmul.mubr.bf16.gmra.mrb[0].mxu0 %v419
  %v1944 = vpop.f32.mrb[0].mxu0
  %v1945 = vadd.f32 %v1892, %v1944
  %v1946 = vpop.f32.mrb[0].mxu0
  %v1947 = vadd.f32 %v1894, %v1946
  %v1948 = vpop.f32.mrb[0].mxu0
  %v1949 = vadd.f32 %v1896, %v1948
  %v1950 = vpop.f32.mrb[0].mxu0
  %v1951 = vadd.f32 %v1898, %v1950
  %1952 = vdwg.mxu0
  %1953 = vmatprep.subr.bf16.mxu0 %v1358
  %1954 = vmatpush1.bf16.msra.mxu0 %v1357
  %1955 = vmatprep.subr.bf16.mxu0 %v1360
  %1956 = vmatpush1.bf16.msra.mxu0 %v1359
  %1957 = vmatprep.subr.bf16.mxu0 %v1362
  %1958 = vmatpush1.bf16.msra.mxu0 %v1361
  %1959 = vmatprep.subr.bf16.mxu0 %v1364
  %1960 = vmatpush1.bf16.msra.mxu0 %v1363
  %1961 = vmatprep.subr.bf16.mxu0 %v1366
  %1962 = vmatpush1.bf16.msra.mxu0 %v1365
  %1963 = vmatprep.subr.bf16.mxu0 %v1368
  %1964 = vmatpush1.bf16.msra.mxu0 %v1367
  %1965 = vmatprep.subr.bf16.mxu0 %v1370
  %1966 = vmatpush1.bf16.msra.mxu0 %v1369
  %1967 = vmatprep.subr.bf16.mxu0 %v1372
  %1968 = vmatpush1.bf16.msra.mxu0 %v1371
  %1969 = vmatprep.subr.bf16.mxu0 %v1374
  %1970 = vmatpush1.bf16.msra.mxu0 %v1373
  %1971 = vmatprep.subr.bf16.mxu0 %v1376
  %1972 = vmatpush1.bf16.msra.mxu0 %v1375
  %1973 = vmatprep.subr.bf16.mxu0 %v1378
  %1974 = vmatpush1.bf16.msra.mxu0 %v1377
  %1975 = vmatprep.subr.bf16.mxu0 %v1380
  %1976 = vmatpush1.bf16.msra.mxu0 %v1379
  %1977 = vmatprep.subr.bf16.mxu0 %v1382
  %1978 = vmatpush1.bf16.msra.mxu0 %v1381
  %1979 = vmatprep.subr.bf16.mxu0 %v1384
  %1980 = vmatpush1.bf16.msra.mxu0 %v1383
  %1981 = vmatprep.subr.bf16.mxu0 %v1386
  %1982 = vmatpush1.bf16.msra.mxu0 %v1385
  %1983 = vmatprep.subr.bf16.mxu0 %v1388
  %1984 = vmatpush1.bf16.msra.mxu0 %v1387
  %1985 = vmatprep.mubr.bf16.mxu0 %v406
  %1986 = vmatmul.mubr.bf16.gmra.mrb[0].mxu0 %v405
  %v1987 = vpop.f32.mrb[0].mxu0
  %v1988 = vadd.f32 %v1935, %v1987
  %v1989 = vpop.f32.mrb[0].mxu0
  %v1990 = vadd.f32 %v1937, %v1989
  %v1991 = vpop.f32.mrb[0].mxu0
  %v1992 = vadd.f32 %v1939, %v1991
  %v1993 = vpop.f32.mrb[0].mxu0
  %v1994 = vadd.f32 %v1941, %v1993
  %1995 = vmatprep.mubr.bf16.mxu0 %v422
  %1996 = vmatmul.mubr.bf16.gmra.mrb[0].mxu0 %v421
  %v1997 = vpop.f32.mrb[0].mxu0
  %v1998 = vadd.f32 %v1945, %v1997
  %v1999 = vpop.f32.mrb[0].mxu0
  %v2000 = vadd.f32 %v1947, %v1999
  %v2001 = vpop.f32.mrb[0].mxu0
  %v2002 = vadd.f32 %v1949, %v2001
  %v2003 = vpop.f32.mrb[0].mxu0
  %v2004 = vadd.f32 %v1951, %v2003
  %2005 = vdwg.mxu0
  %2006 = vmatprep.subr.bf16.mxu0 %v1390
  %2007 = vmatpush1.bf16.msra.mxu0 %v1389
  %2008 = vmatprep.subr.bf16.mxu0 %v1392
  %2009 = vmatpush1.bf16.msra.mxu0 %v1391
  %2010 = vmatprep.subr.bf16.mxu0 %v1394
  %2011 = vmatpush1.bf16.msra.mxu0 %v1393
  %2012 = vmatprep.subr.bf16.mxu0 %v1396
  %2013 = vmatpush1.bf16.msra.mxu0 %v1395
  %2014 = vmatprep.subr.bf16.mxu0 %v1398
  %2015 = vmatpush1.bf16.msra.mxu0 %v1397
  %2016 = vmatprep.subr.bf16.mxu0 %v1400
  %2017 = vmatpush1.bf16.msra.mxu0 %v1399
  %2018 = vmatprep.subr.bf16.mxu0 %v1402
  %2019 = vmatpush1.bf16.msra.mxu0 %v1401
  %2020 = vmatprep.subr.bf16.mxu0 %v1404
  %2021 = vmatpush1.bf16.msra.mxu0 %v1403
  %2022 = vmatprep.subr.bf16.mxu0 %v1406
  %2023 = vmatpush1.bf16.msra.mxu0 %v1405
  %2024 = vmatprep.subr.bf16.mxu0 %v1408
  %2025 = vmatpush1.bf16.msra.mxu0 %v1407
  %2026 = vmatprep.subr.bf16.mxu0 %v1410
  %2027 = vmatpush1.bf16.msra.mxu0 %v1409
  %2028 = vmatprep.subr.bf16.mxu0 %v1412
  %2029 = vmatpush1.bf16.msra.mxu0 %v1411
  %2030 = vmatprep.subr.bf16.mxu0 %v1414
  %2031 = vmatpush1.bf16.msra.mxu0 %v1413
  %2032 = vmatprep.subr.bf16.mxu0 %v1416
  %2033 = vmatpush1.bf16.msra.mxu0 %v1415
  %2034 = vmatprep.subr.bf16.mxu0 %v1418
  %2035 = vmatpush1.bf16.msra.mxu0 %v1417
  %2036 = vmatprep.subr.bf16.mxu0 %v1420
  %2037 = vmatpush1.bf16.msra.mxu0 %v1419
  %2038 = vmatprep.mubr.bf16.mxu0 %v408
  %2039 = vmatmul.mubr.bf16.gmra.mrb[0].mxu0 %v407
  %v2040 = vpop.f32.mrb[0].mxu0
  %v2041 = vadd.f32 %v1988, %v2040
  %v2042 = vpop.f32.mrb[0].mxu0
  %v2043 = vadd.f32 %v1990, %v2042
  %v2044 = vpop.f32.mrb[0].mxu0
  %v2045 = vadd.f32 %v1992, %v2044
  %v2046 = vpop.f32.mrb[0].mxu0
  %v2047 = vadd.f32 %v1994, %v2046
  %2048 = vmatprep.mubr.bf16.mxu0 %v424
  %2049 = vmatmul.mubr.bf16.gmra.mrb[0].mxu0 %v423
  %v2050 = vpop.f32.mrb[0].mxu0
  %v2051 = vadd.f32 %v1998, %v2050
  %v2052 = vpop.f32.mrb[0].mxu0
  %v2053 = vadd.f32 %v2000, %v2052
  %v2054 = vpop.f32.mrb[0].mxu0
  %v2055 = vadd.f32 %v2002, %v2054
  %v2056 = vpop.f32.mrb[0].mxu0
  %v2057 = vadd.f32 %v2004, %v2056
  %2058 = vdwg.mxu0
  %2059 = vmatprep.subr.bf16.mxu0 %v1422
  %2060 = vmatpush1.bf16.msra.mxu0 %v1421
  %2061 = vmatprep.subr.bf16.mxu0 %v1424
  %2062 = vmatpush1.bf16.msra.mxu0 %v1423
  %2063 = vmatprep.subr.bf16.mxu0 %v1426
  %2064 = vmatpush1.bf16.msra.mxu0 %v1425
  %2065 = vmatprep.subr.bf16.mxu0 %v1428
  %2066 = vmatpush1.bf16.msra.mxu0 %v1427
  %2067 = vmatprep.subr.bf16.mxu0 %v1430
  %2068 = vmatpush1.bf16.msra.mxu0 %v1429
  %2069 = vmatprep.subr.bf16.mxu0 %v1432
  %2070 = vmatpush1.bf16.msra.mxu0 %v1431
  %2071 = vmatprep.subr.bf16.mxu0 %v1434
  %2072 = vmatpush1.bf16.msra.mxu0 %v1433
  %2073 = vmatprep.subr.bf16.mxu0 %v1436
  %2074 = vmatpush1.bf16.msra.mxu0 %v1435
  %2075 = vmatprep.subr.bf16.mxu0 %v1438
  %2076 = vmatpush1.bf16.msra.mxu0 %v1437
  %2077 = vmatprep.subr.bf16.mxu0 %v1440
  %2078 = vmatpush1.bf16.msra.mxu0 %v1439
  %2079 = vmatprep.subr.bf16.mxu0 %v1442
  %2080 = vmatpush1.bf16.msra.mxu0 %v1441
  %2081 = vmatprep.subr.bf16.mxu0 %v1444
  %2082 = vmatpush1.bf16.msra.mxu0 %v1443
  %2083 = vmatprep.subr.bf16.mxu0 %v1446
  %2084 = vmatpush1.bf16.msra.mxu0 %v1445
  %2085 = vmatprep.subr.bf16.mxu0 %v1448
  %2086 = vmatpush1.bf16.msra.mxu0 %v1447
  %2087 = vmatprep.subr.bf16.mxu0 %v1450
  %2088 = vmatpush1.bf16.msra.mxu0 %v1449
  %2089 = vmatprep.subr.bf16.mxu0 %v1452
  %2090 = vmatpush1.bf16.msra.mxu0 %v1451
  %2091 = vmatprep.mubr.bf16.mxu0 %v410
  %2092 = vmatmul.mubr.bf16.gmra.mrb[0].mxu0 %v409
  %v2093 = vpop.f32.mrb[0].mxu0
  %v2094 = vadd.f32 %v2041, %v2093
  %v2095 = vpop.f32.mrb[0].mxu0
  %v2096 = vadd.f32 %v2043, %v2095
  %v2097 = vpop.f32.mrb[0].mxu0
  %v2098 = vadd.f32 %v2045, %v2097
  %v2099 = vpop.f32.mrb[0].mxu0
  %v2100 = vadd.f32 %v2047, %v2099
  %2101 = vmatprep.mubr.bf16.mxu0 %v426
  %2102 = vmatmul.mubr.bf16.gmra.mrb[0].mxu0 %v425
  %v2103 = vpop.f32.mrb[0].mxu0
  %v2104 = vadd.f32 %v2051, %v2103
  %v2105 = vpop.f32.mrb[0].mxu0
  %v2106 = vadd.f32 %v2053, %v2105
  %v2107 = vpop.f32.mrb[0].mxu0
  %v2108 = vadd.f32 %v2055, %v2107
  %v2109 = vpop.f32.mrb[0].mxu0
  %v2110 = vadd.f32 %v2057, %v2109
  %2111 = vdwg.mxu0
  %2112 = vmatprep.subr.bf16.mxu0 %v1454
  %2113 = vmatpush1.bf16.msra.mxu0 %v1453
  %2114 = vmatprep.subr.bf16.mxu0 %v1456
  %2115 = vmatpush1.bf16.msra.mxu0 %v1455
  %2116 = vmatprep.subr.bf16.mxu0 %v1458
  %2117 = vmatpush1.bf16.msra.mxu0 %v1457
  %2118 = vmatprep.subr.bf16.mxu0 %v1460
  %2119 = vmatpush1.bf16.msra.mxu0 %v1459
  %2120 = vmatprep.subr.bf16.mxu0 %v1462
  %2121 = vmatpush1.bf16.msra.mxu0 %v1461
  %2122 = vmatprep.subr.bf16.mxu0 %v1464
  %2123 = vmatpush1.bf16.msra.mxu0 %v1463
  %2124 = vmatprep.subr.bf16.mxu0 %v1466
  %2125 = vmatpush1.bf16.msra.mxu0 %v1465
  %2126 = vmatprep.subr.bf16.mxu0 %v1468
  %2127 = vmatpush1.bf16.msra.mxu0 %v1467
  %2128 = vmatprep.subr.bf16.mxu0 %v1470
  %2129 = vmatpush1.bf16.msra.mxu0 %v1469
  %2130 = vmatprep.subr.bf16.mxu0 %v1472
  %2131 = vmatpush1.bf16.msra.mxu0 %v1471
  %2132 = vmatprep.subr.bf16.mxu0 %v1474
  %2133 = vmatpush1.bf16.msra.mxu0 %v1473
  %2134 = vmatprep.subr.bf16.mxu0 %v1476
  %2135 = vmatpush1.bf16.msra.mxu0 %v1475
  %2136 = vmatprep.subr.bf16.mxu0 %v1478
  %2137 = vmatpush1.bf16.msra.mxu0 %v1477
  %2138 = vmatprep.subr.bf16.mxu0 %v1480
  %2139 = vmatpush1.bf16.msra.mxu0 %v1479
  %2140 = vmatprep.subr.bf16.mxu0 %v1482
  %2141 = vmatpush1.bf16.msra.mxu0 %v1481
  %2142 = vmatprep.subr.bf16.mxu0 %v1484
  %2143 = vmatpush1.bf16.msra.mxu0 %v1483
  %2144 = vmatprep.mubr.bf16.mxu0 %v412
  %2145 = vmatmul.mubr.bf16.gmra.mrb[0].mxu0 %v411
  %v2146 = vpop.f32.mrb[0].mxu0
  %v2147 = vadd.f32 %v2094, %v2146
  %v2148 = vpop.f32.mrb[0].mxu0
  %v2149 = vadd.f32 %v2096, %v2148
  %v2150 = vpop.f32.mrb[0].mxu0
  %v2151 = vadd.f32 %v2098, %v2150
  %v2152 = vpop.f32.mrb[0].mxu0
  %v2153 = vadd.f32 %v2100, %v2152
  %2154 = vmatprep.mubr.bf16.mxu0 %v428
  %2155 = vmatmul.mubr.bf16.gmra.mrb[0].mxu0 %v427
  %v2156 = vpop.f32.mrb[0].mxu0
  %v2157 = vadd.f32 %v2104, %v2156
  %v2158 = vpop.f32.mrb[0].mxu0
  %v2159 = vadd.f32 %v2106, %v2158
  %v2160 = vpop.f32.mrb[0].mxu0
  %v2161 = vadd.f32 %v2108, %v2160
  %v2162 = vpop.f32.mrb[0].mxu0
  %v2163 = vadd.f32 %v2110, %v2162
  %2164 = vdwg.mxu0
  %v2165 = vpack.c.bf16 %v2151, %v2147
  %v2166 = vpack.c.bf16 %v2153, %v2149
  %v2167 = vpack.c.bf16 %v2161, %v2157
  %v2168 = vpack.c.bf16 %v2163, %v2159
  %v2173 = vunpack.c.l.b16 %v2165
  %v2174 = vunpack.c.l.b16 %v2166
  %v2175 = vunpack.c.h.b16 %v2165
  %v2176 = vunpack.c.h.b16 %v2166
  %v2177 = vunpack.c.l.b16 %v2167
  %v2178 = vunpack.c.l.b16 %v2168
  %v2179 = vunpack.c.h.b16 %v2167
  %v2180 = vunpack.c.h.b16 %v2168
  %v2181 = vpack.c.b16 %v2174, %v2173
  %v2182 = vpack.c.b16 %v2176, %v2175
  %v2183 = vpack.c.b16 %v2178, %v2177
  %v2184 = vpack.c.b16 %v2180, %v2179
  %2189 = vst [vmem:[%s2] sm:$0xff] %v2181
  %2190 = vst [vmem:[%s2 + $0x8] sm:$0xff] %v2182
  %2191 = vst [vmem:[%s2 + $0x10] sm:$0xff] %v2183
  %2192 = vst [vmem:[%s2 + $0x18] sm:$0xff] %v2184
  %v2193 = vunpack.c.l.bf16 %v2165
  %v2194 = vunpack.c.l.bf16 %v2166
  %v2195 = vunpack.c.h.bf16 %v2165
  %v2196 = vunpack.c.h.bf16 %v2166
  %v2197 = vunpack.c.l.bf16 %v2167
  %v2198 = vunpack.c.l.bf16 %v2168
  %v2199 = vunpack.c.h.bf16 %v2167
  %v2200 = vunpack.c.h.bf16 %v2168
  %v2201 = vadd.f32 %v2193, %v2195
  %v2202 = vadd.f32 %v2201, %v2197
  %v2203 = vadd.f32 %v2202, %v2199
  %v2204 = vrot.slane %v2203, 4
  %v2205 = vadd.f32 %v2203, %v2204
  %v2206 = vrot.slane %v2205, 2
  %v2207 = vadd.f32 %v2205, %v2206
  %v2208 = vrot.slane %v2207, 1
  %v2209 = vadd.f32 %v2207, %v2208
  %v2210 = vadd.f32 %v2194, %v2196
  %v2211 = vadd.f32 %v2210, %v2198
  %v2212 = vadd.f32 %v2211, %v2200
  %v2213 = vrot.slane %v2212, 4
  %v2214 = vadd.f32 %v2212, %v2213
  %v2215 = vrot.slane %v2214, 2
  %v2216 = vadd.f32 %v2214, %v2215
  %v2217 = vrot.slane %v2216, 1
  %v2218 = vadd.f32 %v2216, %v2217
  %v2221 = vcombine.low %v2209, %v2218
  %v2223 = vunpack.c.l.s4 1966171168
  %v2224 = vunpack.c.0.s8 %v2223
  %v2225 = vlaneseq
  %v2226 = vshrl.u32 %v2225, 7
  %v2227 = vsub.s32 %v2224, %v2226
  %v2228 = vrot.slane %v2221, %v2227
  %v2230 = vunpack.c.l.s4 1966171168
  %v2231 = vunpack.c.0.s8 %v2230
  %v2232 = vlaneseq
  %v2233 = vshrl.u32 %v2232, 7
  %v2234 = vsub.s32 %v2231, %v2233
  %v2235 = vrot.slane %v2228, %v2234
  %v2237 = vlaneseq
  %vm2238 = vcmp.ge.s32.totalorder %v2237, 0
  %vm2239 = vcmp.lt.s32.totalorder %v2237, 256
  %vm2240 = vmand %vm2238, %vm2239
  %2241 = vst.msk [vmem:[%s3] ss:$2 sm:$0x3] %vm2240, %v2235
  %v2242 = vmul.f32 %v2193, %v2193
  %v2243 = vmul.f32 %v2194, %v2194
  %v2244 = vmul.f32 %v2195, %v2195
  %v2245 = vmul.f32 %v2196, %v2196
  %v2246 = vmul.f32 %v2197, %v2197
  %v2247 = vmul.f32 %v2198, %v2198
  %v2248 = vmul.f32 %v2199, %v2199
  %v2249 = vmul.f32 %v2200, %v2200
  %v2250 = vadd.f32 %v2242, %v2244
  %v2251 = vadd.f32 %v2250, %v2246
  %v2252 = vadd.f32 %v2251, %v2248
  %v2253 = vrot.slane %v2252, 4
  %v2254 = vadd.f32 %v2252, %v2253
  %v2255 = vrot.slane %v2254, 2
  %v2256 = vadd.f32 %v2254, %v2255
  %v2257 = vrot.slane %v2256, 1
  %v2258 = vadd.f32 %v2256, %v2257
  %v2259 = vadd.f32 %v2243, %v2245
  %v2260 = vadd.f32 %v2259, %v2247
  %v2261 = vadd.f32 %v2260, %v2249
  %v2262 = vrot.slane %v2261, 4
  %v2263 = vadd.f32 %v2261, %v2262
  %v2264 = vrot.slane %v2263, 2
  %v2265 = vadd.f32 %v2263, %v2264
  %v2266 = vrot.slane %v2265, 1
  %v2267 = vadd.f32 %v2265, %v2266
  %v2270 = vcombine.low %v2258, %v2267
  %v2272 = vunpack.c.l.s4 1966171168
  %v2273 = vunpack.c.0.s8 %v2272
  %v2274 = vlaneseq
  %v2275 = vshrl.u32 %v2274, 7
  %v2276 = vsub.s32 %v2273, %v2275
  %v2277 = vrot.slane %v2270, %v2276
  %v2279 = vunpack.c.l.s4 1966171168
  %v2280 = vunpack.c.0.s8 %v2279
  %v2281 = vlaneseq
  %v2282 = vshrl.u32 %v2281, 7
  %v2283 = vsub.s32 %v2280, %v2282
  %v2284 = vrot.slane %v2277, %v2283
  %s2286 = scalar_lea.vmem %s3, 1
  %2287 = vst.msk [vmem:[%s2286] ss:$2 sm:$0x3] %vm2240, %v2284
  // Predicated region
  $region10: #{discriminator_forward.9} parent=0 // pred_check
    _
  $region11: #{discriminator_forward.9} parent=0 // pred_check_branch
    %2289 = sbr.rel (0) target = $region13
  $region12: #{discriminator_forward.9} parent=0 // pred_region
    _
  $region13: #{discriminator_forward.9} parent=0 // pred_fallthru
    _
  // Predicated region
  $region14: #{discriminator_forward.9} parent=0 // pred_check
    _
  $region15: #{discriminator_forward.9} parent=0 // pred_check_branch
    %2291 = sbr.rel (0) target = $region17
  $region16: #{discriminator_forward.9} parent=0 // pred_region
    _
  $region17: #{discriminator_forward.9} parent=0 // pred_fallthru
    _
  // Predicated region
  $region18: #{discriminator_forward.9} parent=0 // pred_check
    _
  $region19: #{discriminator_forward.9} parent=0 // pred_check_branch
    %2293 = sbr.rel (0) target = $region21
  $region20: #{discriminator_forward.9} parent=0 // pred_region
    _
  $region21: #{discriminator_forward.9} parent=0 // pred_fallthru
    _
  // Predicated region
  $region22: #{discriminator_forward.9} parent=0 // pred_check
    _
  $region23: #{discriminator_forward.9} parent=0 // pred_check_branch
    %2295 = sbr.rel (0) target = $region25
  $region24: #{discriminator_forward.9} parent=0 // pred_region
    _
  $region25: #{discriminator_forward.9} parent=0 // pred_fallthru
    _

// kernel: discriminator_forward.10
$region0: #{discriminator_forward.10}
  #allocation0 [shape = 'u32[]', space=smem, size = 0x4, offset = 0x4, fixed_abs, tag = 'smem constant byte address 0x4 - core index']
  #allocation1 [shape = 'u32[144,128]{1,0:T(1,128)}', space=vmem, size = 0x12000, scoped, tag = 'internal scratch']
  %s0 = inlined_call_operand.vmem [shape: bf16[32,256], index: 0, kind: input, shape index: {}]
  %s1 = inlined_call_operand.vmem [shape: f32[1,256], index: 1, kind: input, shape index: {}]
  %s2 = inlined_call_operand.vmem [shape: f32[1,256], index: 2, kind: input, shape index: {}]
  %s3 = inlined_call_operand.vmem [shape: bf16[32,256], index: 3, kind: output, shape index: {}]
  %s4 = sld [smem:[#allocation0]]
  $region22: #{discriminator_forward.10} parent=0
    _
  %s6 = ssub.s32 1, %s4
  %s7 = scalar_select 0, %s6, %s4
  // Predicated region
  $region2: #{discriminator_forward.10} parent=0 // pred_check
    _
  $region3: #{discriminator_forward.10} parent=0 // pred_check_branch
    %9 = sbr.rel (0) target = $region5
  $region4: #{discriminator_forward.10} parent=0 // pred_region
    _
  $region5: #{discriminator_forward.10} parent=0 // pred_fallthru
    _
  // Predicated region
  $region6: #{discriminator_forward.10} parent=0 // pred_check
    _
  $region7: #{discriminator_forward.10} parent=0 // pred_check_branch
    %11 = sbr.rel (0) target = $region9
  $region8: #{discriminator_forward.10} parent=0 // pred_region
    _
  $region9: #{discriminator_forward.10} parent=0 // pred_fallthru
    _
  // Predicated region
  $region10: #{discriminator_forward.10} parent=0 // pred_check
    _
  $region11: #{discriminator_forward.10} parent=0 // pred_check_branch
    %13 = sbr.rel (0) target = $region13
  $region12: #{discriminator_forward.10} parent=0 // pred_region
    _
  $region13: #{discriminator_forward.10} parent=0 // pred_fallthru
    _
  %v14 = vld [vmem:[%s0] sm:$0xff]
  %v15 = vld [vmem:[%s0 + $0x8] sm:$0xff]
  %v16 = vld [vmem:[%s0 + $0x10] sm:$0xff]
  %v17 = vld [vmem:[%s0 + $0x18] sm:$0xff]
  %v18 = vunpack.c.l.bf16 %v14
  %v19 = vunpack.c.h.bf16 %v14
  %v20 = vunpack.c.l.bf16 %v15
  %v21 = vunpack.c.h.bf16 %v15
  %v22 = vunpack.c.l.bf16 %v16
  %v23 = vunpack.c.h.bf16 %v16
  %v24 = vunpack.c.l.bf16 %v17
  %v25 = vunpack.c.h.bf16 %v17
  %v26 = vld [vmem:[%s1] sm:$0x3]
  %v28 = vlaneseq
  %v29 = vshrl.u32 %v28, 7
  %v30 = vsub.s32 0, %v29
  %v31 = vrot.slane %v26, %v30
  %v32 = vlaneseq
  %v33 = vshrl.u32 %v32, 7
  %v34 = vsub.s32 1, %v33
  %v35 = vrot.slane %v26, %v34
  %v38 = vmul.f32 %v18, %v31
  %v39 = vmul.f32 %v19, %v35
  %v40 = vmul.f32 %v20, %v31
  %v41 = vmul.f32 %v21, %v35
  %v42 = vmul.f32 %v22, %v31
  %v43 = vmul.f32 %v23, %v35
  %v44 = vmul.f32 %v24, %v31
  %v45 = vmul.f32 %v25, %v35
  %v46 = vld [vmem:[%s2] sm:$0x3]
  %v48 = vlaneseq
  %v49 = vshrl.u32 %v48, 7
  %v50 = vsub.s32 0, %v49
  %v51 = vrot.slane %v46, %v50
  %v52 = vlaneseq
  %v53 = vshrl.u32 %v52, 7
  %v54 = vsub.s32 1, %v53
  %v55 = vrot.slane %v46, %v54
  %v58 = vadd.f32 %v38, %v51
  %v59 = vadd.f32 %v39, %v55
  %v60 = vadd.f32 %v40, %v51
  %v61 = vadd.f32 %v41, %v55
  %v62 = vadd.f32 %v42, %v51
  %v63 = vadd.f32 %v43, %v55
  %v64 = vadd.f32 %v44, %v51
  %v65 = vadd.f32 %v45, %v55
  %vm66 = vcmp.ge.f32.partialorder %v58, 0.0
  %vm67 = vcmp.ge.f32.partialorder %v59, 0.0
  %vm68 = vcmp.ge.f32.partialorder %v60, 0.0
  %vm69 = vcmp.ge.f32.partialorder %v61, 0.0
  %vm70 = vcmp.ge.f32.partialorder %v62, 0.0
  %vm71 = vcmp.ge.f32.partialorder %v63, 0.0
  %vm72 = vcmp.ge.f32.partialorder %v64, 0.0
  %vm73 = vcmp.ge.f32.partialorder %v65, 0.0
  %v74 = vmul.f32 %v58, 0.2
  %v75 = vmul.f32 %v59, 0.2
  %v76 = vmul.f32 %v60, 0.2
  %v77 = vmul.f32 %v61, 0.2
  %v78 = vmul.f32 %v62, 0.2
  %v79 = vmul.f32 %v63, 0.2
  %v80 = vmul.f32 %v64, 0.2
  %v81 = vmul.f32 %v65, 0.2
  %v82 = vsel %vm66, %v58, %v74
  %v83 = vsel %vm67, %v59, %v75
  %v84 = vsel %vm68, %v60, %v76
  %v85 = vsel %vm69, %v61, %v77
  %v86 = vsel %vm70, %v62, %v78
  %v87 = vsel %vm71, %v63, %v79
  %v88 = vsel %vm72, %v64, %v80
  %v89 = vsel %vm73, %v65, %v81
  %v90 = vpack.c.bf16 %v84, %v82
  %v91 = vpack.c.bf16 %v85, %v83
  %v92 = vpack.c.bf16 %v88, %v86
  %v93 = vpack.c.bf16 %v89, %v87
  %v98 = vunpack.c.l.b16 %v90
  %v99 = vunpack.c.l.b16 %v91
  %v100 = vunpack.c.h.b16 %v90
  %v101 = vunpack.c.h.b16 %v91
  %v102 = vunpack.c.l.b16 %v92
  %v103 = vunpack.c.l.b16 %v93
  %v104 = vunpack.c.h.b16 %v92
  %v105 = vunpack.c.h.b16 %v93
  %v106 = vpack.c.b16 %v99, %v98
  %v107 = vpack.c.b16 %v101, %v100
  %v108 = vpack.c.b16 %v103, %v102
  %v109 = vpack.c.b16 %v105, %v104
  %114 = vst [vmem:[%s3] sm:$0xff] %v106
  %115 = vst [vmem:[%s3 + $0x8] sm:$0xff] %v107
  %116 = vst [vmem:[%s3 + $0x10] sm:$0xff] %v108
  %117 = vst [vmem:[%s3 + $0x18] sm:$0xff] %v109
  // Predicated region
  $region14: #{discriminator_forward.10} parent=0 // pred_check
    _
  $region15: #{discriminator_forward.10} parent=0 // pred_check_branch
    %119 = sbr.rel (0) target = $region17
  $region16: #{discriminator_forward.10} parent=0 // pred_region
    _
  $region17: #{discriminator_forward.10} parent=0 // pred_fallthru
    _
  // Predicated region
  $region18: #{discriminator_forward.10} parent=0 // pred_check
    _
  $region19: #{discriminator_forward.10} parent=0 // pred_check_branch
    %121 = sbr.rel (0) target = $region21
  $region20: #{discriminator_forward.10} parent=0 // pred_region
    _
  $region21: #{discriminator_forward.10} parent=0 // pred_fallthru
    _

// kernel: discriminator_forward.11
$region0: #{discriminator_forward.11}
  #allocation0 [shape = 'u32[]', space=smem, size = 0x4, offset = 0x4, fixed_abs, tag = 'smem constant byte address 0x4 - core index']
  #allocation1 [shape = 'u32[144,128]{1,0:T(1,128)}', space=vmem, size = 0x12000, scoped, tag = 'internal scratch']
  %s0 = inlined_call_operand.vmem [shape: bf16[8,4096], index: 0, kind: input, shape index: {}]
  %s1 = inlined_call_operand.vmem [shape: bf16[1,4096], index: 1, kind: input, shape index: {}]
  %s2 = inlined_call_operand.vmem [shape: f32[8,1], index: 2, kind: output, shape index: {}]
  %s3 = sld [smem:[#allocation0]]
  $region18: #{discriminator_forward.11} parent=0
    _
  %s5 = ssub.s32 1, %s3
  %s6 = scalar_select 0, %s5, %s3
  // Predicated region
  $region2: #{discriminator_forward.11} parent=0 // pred_check
    _
  $region3: #{discriminator_forward.11} parent=0 // pred_check_branch
    %8 = sbr.rel (0) target = $region5
  $region4: #{discriminator_forward.11} parent=0 // pred_region
    _
  $region5: #{discriminator_forward.11} parent=0 // pred_fallthru
    _
  // Predicated region
  $region6: #{discriminator_forward.11} parent=0 // pred_check
    _
  $region7: #{discriminator_forward.11} parent=0 // pred_check_branch
    %10 = sbr.rel (0) target = $region9
  $region8: #{discriminator_forward.11} parent=0 // pred_region
    _
  $region9: #{discriminator_forward.11} parent=0 // pred_fallthru
    _
  %v11 = vld [vmem:[%s0] sm:$0xff]
  %v12 = vld [vmem:[%s0 + $0x8] sm:$0xff]
  %v13 = vld [vmem:[%s0 + $0x10] sm:$0xff]
  %v14 = vld [vmem:[%s0 + $0x18] sm:$0xff]
  %v15 = vld [vmem:[%s0 + $0x20] sm:$0xff]
  %v16 = vld [vmem:[%s0 + $0x28] sm:$0xff]
  %v17 = vld [vmem:[%s0 + $0x30] sm:$0xff]
  %v18 = vld [vmem:[%s0 + $0x38] sm:$0xff]
  %v19 = vld [vmem:[%s0 + $0x40] sm:$0xff]
  %v20 = vld [vmem:[%s0 + $0x48] sm:$0xff]
  %v21 = vld [vmem:[%s0 + $0x50] sm:$0xff]
  %v22 = vld [vmem:[%s0 + $0x58] sm:$0xff]
  %v23 = vld [vmem:[%s0 + $0x60] sm:$0xff]
  %v24 = vld [vmem:[%s0 + $0x68] sm:$0xff]
  %v25 = vld [vmem:[%s0 + $0x70] sm:$0xff]
  %v26 = vld [vmem:[%s0 + $0x78] sm:$0xff]
  %v27 = vunpack.c.l.bf16 %v11
  %v28 = vunpack.c.h.bf16 %v11
  %v29 = vunpack.c.l.bf16 %v12
  %v30 = vunpack.c.h.bf16 %v12
  %v31 = vunpack.c.l.bf16 %v13
  %v32 = vunpack.c.h.bf16 %v13
  %v33 = vunpack.c.l.bf16 %v14
  %v34 = vunpack.c.h.bf16 %v14
  %v35 = vunpack.c.l.bf16 %v15
  %v36 = vunpack.c.h.bf16 %v15
  %v37 = vunpack.c.l.bf16 %v16
  %v38 = vunpack.c.h.bf16 %v16
  %v39 = vunpack.c.l.bf16 %v17
  %v40 = vunpack.c.h.bf16 %v17
  %v41 = vunpack.c.l.bf16 %v18
  %v42 = vunpack.c.h.bf16 %v18
  %v43 = vunpack.c.l.bf16 %v19
  %v44 = vunpack.c.h.bf16 %v19
  %v45 = vunpack.c.l.bf16 %v20
  %v46 = vunpack.c.h.bf16 %v20
  %v47 = vunpack.c.l.bf16 %v21
  %v48 = vunpack.c.h.bf16 %v21
  %v49 = vunpack.c.l.bf16 %v22
  %v50 = vunpack.c.h.bf16 %v22
  %v51 = vunpack.c.l.bf16 %v23
  %v52 = vunpack.c.h.bf16 %v23
  %v53 = vunpack.c.l.bf16 %v24
  %v54 = vunpack.c.h.bf16 %v24
  %v55 = vunpack.c.l.bf16 %v25
  %v56 = vunpack.c.h.bf16 %v25
  %v57 = vunpack.c.l.bf16 %v26
  %v58 = vunpack.c.h.bf16 %v26
  %v59 = vld [vmem:[%s1] sm:$0xff]
  %v60 = vld [vmem:[%s1 + $0x8] sm:$0xff]
  %v61 = vld [vmem:[%s1 + $0x10] sm:$0xff]
  %v62 = vld [vmem:[%s1 + $0x18] sm:$0xff]
  %v63 = vunpack.c.l.bf16 %v59
  %v64 = vunpack.c.h.bf16 %v59
  %v65 = vunpack.c.l.bf16 %v60
  %v66 = vunpack.c.h.bf16 %v60
  %v67 = vunpack.c.l.bf16 %v61
  %v68 = vunpack.c.h.bf16 %v61
  %v69 = vunpack.c.l.bf16 %v62
  %v70 = vunpack.c.h.bf16 %v62
  %v79 = vlaneseq
  %v80 = vshrl.u32 %v79, 7
  %v81 = vsub.s32 0, %v80
  %v82 = vrot.slane %v63, %v81
  %v83 = vlaneseq
  %v84 = vshrl.u32 %v83, 7
  %v85 = vsub.s32 2, %v84
  %v86 = vrot.slane %v63, %v85
  %v87 = vlaneseq
  %v88 = vshrl.u32 %v87, 7
  %v89 = vsub.s32 4, %v88
  %v90 = vrot.slane %v63, %v89
  %v91 = vlaneseq
  %v92 = vshrl.u32 %v91, 7
  %v93 = vsub.s32 6, %v92
  %v94 = vrot.slane %v63, %v93
  %v95 = vlaneseq
  %v96 = vshrl.u32 %v95, 7
  %v97 = vsub.s32 0, %v96
  %v98 = vrot.slane %v64, %v97
  %v99 = vlaneseq
  %v100 = vshrl.u32 %v99, 7
  %v101 = vsub.s32 2, %v100
  %v102 = vrot.slane %v64, %v101
  %v103 = vlaneseq
  %v104 = vshrl.u32 %v103, 7
  %v105 = vsub.s32 4, %v104
  %v106 = vrot.slane %v64, %v105
  %v107 = vlaneseq
  %v108 = vshrl.u32 %v107, 7
  %v109 = vsub.s32 6, %v108
  %v110 = vrot.slane %v64, %v109
  %v111 = vlaneseq
  %v112 = vshrl.u32 %v111, 7
  %v113 = vsub.s32 0, %v112
  %v114 = vrot.slane %v65, %v113
  %v115 = vlaneseq
  %v116 = vshrl.u32 %v115, 7
  %v117 = vsub.s32 2, %v116
  %v118 = vrot.slane %v65, %v117
  %v119 = vlaneseq
  %v120 = vshrl.u32 %v119, 7
  %v121 = vsub.s32 4, %v120
  %v122 = vrot.slane %v65, %v121
  %v123 = vlaneseq
  %v124 = vshrl.u32 %v123, 7
  %v125 = vsub.s32 6, %v124
  %v126 = vrot.slane %v65, %v125
  %v127 = vlaneseq
  %v128 = vshrl.u32 %v127, 7
  %v129 = vsub.s32 0, %v128
  %v130 = vrot.slane %v66, %v129
  %v131 = vlaneseq
  %v132 = vshrl.u32 %v131, 7
  %v133 = vsub.s32 2, %v132
  %v134 = vrot.slane %v66, %v133
  %v135 = vlaneseq
  %v136 = vshrl.u32 %v135, 7
  %v137 = vsub.s32 4, %v136
  %v138 = vrot.slane %v66, %v137
  %v139 = vlaneseq
  %v140 = vshrl.u32 %v139, 7
  %v141 = vsub.s32 6, %v140
  %v142 = vrot.slane %v66, %v141
  %v143 = vlaneseq
  %v144 = vshrl.u32 %v143, 7
  %v145 = vsub.s32 0, %v144
  %v146 = vrot.slane %v67, %v145
  %v147 = vlaneseq
  %v148 = vshrl.u32 %v147, 7
  %v149 = vsub.s32 2, %v148
  %v150 = vrot.slane %v67, %v149
  %v151 = vlaneseq
  %v152 = vshrl.u32 %v151, 7
  %v153 = vsub.s32 4, %v152
  %v154 = vrot.slane %v67, %v153
  %v155 = vlaneseq
  %v156 = vshrl.u32 %v155, 7
  %v157 = vsub.s32 6, %v156
  %v158 = vrot.slane %v67, %v157
  %v159 = vlaneseq
  %v160 = vshrl.u32 %v159, 7
  %v161 = vsub.s32 0, %v160
  %v162 = vrot.slane %v68, %v161
  %v163 = vlaneseq
  %v164 = vshrl.u32 %v163, 7
  %v165 = vsub.s32 2, %v164
  %v166 = vrot.slane %v68, %v165
  %v167 = vlaneseq
  %v168 = vshrl.u32 %v167, 7
  %v169 = vsub.s32 4, %v168
  %v170 = vrot.slane %v68, %v169
  %v171 = vlaneseq
  %v172 = vshrl.u32 %v171, 7
  %v173 = vsub.s32 6, %v172
  %v174 = vrot.slane %v68, %v173
  %v175 = vlaneseq
  %v176 = vshrl.u32 %v175, 7
  %v177 = vsub.s32 0, %v176
  %v178 = vrot.slane %v69, %v177
  %v179 = vlaneseq
  %v180 = vshrl.u32 %v179, 7
  %v181 = vsub.s32 2, %v180
  %v182 = vrot.slane %v69, %v181
  %v183 = vlaneseq
  %v184 = vshrl.u32 %v183, 7
  %v185 = vsub.s32 4, %v184
  %v186 = vrot.slane %v69, %v185
  %v187 = vlaneseq
  %v188 = vshrl.u32 %v187, 7
  %v189 = vsub.s32 6, %v188
  %v190 = vrot.slane %v69, %v189
  %v191 = vlaneseq
  %v192 = vshrl.u32 %v191, 7
  %v193 = vsub.s32 0, %v192
  %v194 = vrot.slane %v70, %v193
  %v195 = vlaneseq
  %v196 = vshrl.u32 %v195, 7
  %v197 = vsub.s32 2, %v196
  %v198 = vrot.slane %v70, %v197
  %v199 = vlaneseq
  %v200 = vshrl.u32 %v199, 7
  %v201 = vsub.s32 4, %v200
  %v202 = vrot.slane %v70, %v201
  %v203 = vlaneseq
  %v204 = vshrl.u32 %v203, 7
  %v205 = vsub.s32 6, %v204
  %v206 = vrot.slane %v70, %v205
  %v239 = vlaneseq
  %v240 = vshrl.u32 %v239, 7
  %v241 = vsub.s32 0, %v240
  %v242 = vrot.slane %v82, %v241
  %v243 = vlaneseq
  %v244 = vshrl.u32 %v243, 7
  %v245 = vsub.s32 0, %v244
  %v246 = vrot.slane %v86, %v245
  %v247 = vlaneseq
  %v248 = vshrl.u32 %v247, 7
  %v249 = vsub.s32 0, %v248
  %v250 = vrot.slane %v90, %v249
  %v251 = vlaneseq
  %v252 = vshrl.u32 %v251, 7
  %v253 = vsub.s32 0, %v252
  %v254 = vrot.slane %v94, %v253
  %v255 = vlaneseq
  %v256 = vshrl.u32 %v255, 7
  %v257 = vsub.s32 0, %v256
  %v258 = vrot.slane %v98, %v257
  %v259 = vlaneseq
  %v260 = vshrl.u32 %v259, 7
  %v261 = vsub.s32 0, %v260
  %v262 = vrot.slane %v102, %v261
  %v263 = vlaneseq
  %v264 = vshrl.u32 %v263, 7
  %v265 = vsub.s32 0, %v264
  %v266 = vrot.slane %v106, %v265
  %v267 = vlaneseq
  %v268 = vshrl.u32 %v267, 7
  %v269 = vsub.s32 0, %v268
  %v270 = vrot.slane %v110, %v269
  %v271 = vlaneseq
  %v272 = vshrl.u32 %v271, 7
  %v273 = vsub.s32 0, %v272
  %v274 = vrot.slane %v114, %v273
  %v275 = vlaneseq
  %v276 = vshrl.u32 %v275, 7
  %v277 = vsub.s32 0, %v276
  %v278 = vrot.slane %v118, %v277
  %v279 = vlaneseq
  %v280 = vshrl.u32 %v279, 7
  %v281 = vsub.s32 0, %v280
  %v282 = vrot.slane %v122, %v281
  %v283 = vlaneseq
  %v284 = vshrl.u32 %v283, 7
  %v285 = vsub.s32 0, %v284
  %v286 = vrot.slane %v126, %v285
  %v287 = vlaneseq
  %v288 = vshrl.u32 %v287, 7
  %v289 = vsub.s32 0, %v288
  %v290 = vrot.slane %v130, %v289
  %v291 = vlaneseq
  %v292 = vshrl.u32 %v291, 7
  %v293 = vsub.s32 0, %v292
  %v294 = vrot.slane %v134, %v293
  %v295 = vlaneseq
  %v296 = vshrl.u32 %v295, 7
  %v297 = vsub.s32 0, %v296
  %v298 = vrot.slane %v138, %v297
  %v299 = vlaneseq
  %v300 = vshrl.u32 %v299, 7
  %v301 = vsub.s32 0, %v300
  %v302 = vrot.slane %v142, %v301
  %v303 = vlaneseq
  %v304 = vshrl.u32 %v303, 7
  %v305 = vsub.s32 0, %v304
  %v306 = vrot.slane %v146, %v305
  %v307 = vlaneseq
  %v308 = vshrl.u32 %v307, 7
  %v309 = vsub.s32 0, %v308
  %v310 = vrot.slane %v150, %v309
  %v311 = vlaneseq
  %v312 = vshrl.u32 %v311, 7
  %v313 = vsub.s32 0, %v312
  %v314 = vrot.slane %v154, %v313
  %v315 = vlaneseq
  %v316 = vshrl.u32 %v315, 7
  %v317 = vsub.s32 0, %v316
  %v318 = vrot.slane %v158, %v317
  %v319 = vlaneseq
  %v320 = vshrl.u32 %v319, 7
  %v321 = vsub.s32 0, %v320
  %v322 = vrot.slane %v162, %v321
  %v323 = vlaneseq
  %v324 = vshrl.u32 %v323, 7
  %v325 = vsub.s32 0, %v324
  %v326 = vrot.slane %v166, %v325
  %v327 = vlaneseq
  %v328 = vshrl.u32 %v327, 7
  %v329 = vsub.s32 0, %v328
  %v330 = vrot.slane %v170, %v329
  %v331 = vlaneseq
  %v332 = vshrl.u32 %v331, 7
  %v333 = vsub.s32 0, %v332
  %v334 = vrot.slane %v174, %v333
  %v335 = vlaneseq
  %v336 = vshrl.u32 %v335, 7
  %v337 = vsub.s32 0, %v336
  %v338 = vrot.slane %v178, %v337
  %v339 = vlaneseq
  %v340 = vshrl.u32 %v339, 7
  %v341 = vsub.s32 0, %v340
  %v342 = vrot.slane %v182, %v341
  %v343 = vlaneseq
  %v344 = vshrl.u32 %v343, 7
  %v345 = vsub.s32 0, %v344
  %v346 = vrot.slane %v186, %v345
  %v347 = vlaneseq
  %v348 = vshrl.u32 %v347, 7
  %v349 = vsub.s32 0, %v348
  %v350 = vrot.slane %v190, %v349
  %v351 = vlaneseq
  %v352 = vshrl.u32 %v351, 7
  %v353 = vsub.s32 0, %v352
  %v354 = vrot.slane %v194, %v353
  %v355 = vlaneseq
  %v356 = vshrl.u32 %v355, 7
  %v357 = vsub.s32 0, %v356
  %v358 = vrot.slane %v198, %v357
  %v359 = vlaneseq
  %v360 = vshrl.u32 %v359, 7
  %v361 = vsub.s32 0, %v360
  %v362 = vrot.slane %v202, %v361
  %v363 = vlaneseq
  %v364 = vshrl.u32 %v363, 7
  %v365 = vsub.s32 0, %v364
  %v366 = vrot.slane %v206, %v365
  %v367 = vmul.f32 %v27, %v242
  %v368 = vmul.f32 %v28, %v246
  %v369 = vmul.f32 %v29, %v250
  %v370 = vmul.f32 %v30, %v254
  %v371 = vmul.f32 %v31, %v258
  %v372 = vmul.f32 %v32, %v262
  %v373 = vmul.f32 %v33, %v266
  %v374 = vmul.f32 %v34, %v270
  %v375 = vmul.f32 %v35, %v274
  %v376 = vmul.f32 %v36, %v278
  %v377 = vmul.f32 %v37, %v282
  %v378 = vmul.f32 %v38, %v286
  %v379 = vmul.f32 %v39, %v290
  %v380 = vmul.f32 %v40, %v294
  %v381 = vmul.f32 %v41, %v298
  %v382 = vmul.f32 %v42, %v302
  %v383 = vmul.f32 %v43, %v306
  %v384 = vmul.f32 %v44, %v310
  %v385 = vmul.f32 %v45, %v314
  %v386 = vmul.f32 %v46, %v318
  %v387 = vmul.f32 %v47, %v322
  %v388 = vmul.f32 %v48, %v326
  %v389 = vmul.f32 %v49, %v330
  %v390 = vmul.f32 %v50, %v334
  %v391 = vmul.f32 %v51, %v338
  %v392 = vmul.f32 %v52, %v342
  %v393 = vmul.f32 %v53, %v346
  %v394 = vmul.f32 %v54, %v350
  %v395 = vmul.f32 %v55, %v354
  %v396 = vmul.f32 %v56, %v358
  %v397 = vmul.f32 %v57, %v362
  %v398 = vmul.f32 %v58, %v366
  %v399 = vadd.f32 %v367, %v368
  %v400 = vadd.f32 %v399, %v369
  %v401 = vadd.f32 %v400, %v370
  %v402 = vadd.f32 %v401, %v371
  %v403 = vadd.f32 %v402, %v372
  %v404 = vadd.f32 %v403, %v373
  %v405 = vadd.f32 %v404, %v374
  %v406 = vadd.f32 %v405, %v375
  %v407 = vadd.f32 %v406, %v376
  %v408 = vadd.f32 %v407, %v377
  %v409 = vadd.f32 %v408, %v378
  %v410 = vadd.f32 %v409, %v379
  %v411 = vadd.f32 %v410, %v380
  %v412 = vadd.f32 %v411, %v381
  %v413 = vadd.f32 %v412, %v382
  %v414 = vadd.f32 %v413, %v383
  %v415 = vadd.f32 %v414, %v384
  %v416 = vadd.f32 %v415, %v385
  %v417 = vadd.f32 %v416, %v386
  %v418 = vadd.f32 %v417, %v387
  %v419 = vadd.f32 %v418, %v388
  %v420 = vadd.f32 %v419, %v389
  %v421 = vadd.f32 %v420, %v390
  %v422 = vadd.f32 %v421, %v391
  %v423 = vadd.f32 %v422, %v392
  %v424 = vadd.f32 %v423, %v393
  %v425 = vadd.f32 %v424, %v394
  %v426 = vadd.f32 %v425, %v395
  %v427 = vadd.f32 %v426, %v396
  %v428 = vadd.f32 %v427, %v397
  %v429 = vadd.f32 %v428, %v398
  %430 = vadd.xlane.f32.xlu0 %v429
  %v431 = vpop.xlane.xlu0 %430
  %v432 = vxor.u32 %v431, 2147483648
  %v433 = vmul.f32 %v432, 1.442695
  %v434 = vpow.pop %v433
  %v435 = vadd.f32 %v434, 1.0
  %v436 = vrcp.pop %v435
  %v437 = vmul.f32 1.0, %v436
  %vm438 = vcmask 7168
  %439 = vst.msk [vmem:[%s2] sm:$0xff] %vm438, %v437
  // Predicated region
  $region10: #{discriminator_forward.11} parent=0 // pred_check
    _
  $region11: #{discriminator_forward.11} parent=0 // pred_check_branch
    %441 = sbr.rel (0) target = $region13
  $region12: #{discriminator_forward.11} parent=0 // pred_region
    _
  $region13: #{discriminator_forward.11} parent=0 // pred_fallthru
    _
  // Predicated region
  $region14: #{discriminator_forward.11} parent=0 // pred_check
    _
  $region15: #{discriminator_forward.11} parent=0 // pred_check_branch
    %443 = sbr.rel (0) target = $region17
  $region16: #{discriminator_forward.11} parent=0 // pred_region
    _
  $region17: #{discriminator_forward.11} parent=0 // pred_fallthru
    _

</llo_original>
